<compile_context>
chip_gen: v7x
topology: tpu7x:2x2x1
jax: 0.10.0
libtpu: 0.0.40
codegen_flags: <defaults>
</compile_context>

<pallas_src>
import functools

import jax
import jax.numpy as jnp
from jax.experimental import pallas as pl
from jax.experimental.pallas import tpu as pltpu


def _lstm_cell(gates, c_prev, H):
    """Gate columns are pre-reordered to (i, f, o, g): one sigmoid over 3H lanes, one tanh over H."""
    sig = jax.nn.sigmoid(gates[:, 0:3 * H])
    g = jnp.tanh(gates[:, 3 * H:4 * H])
    i = sig[:, 0:H]
    f = sig[:, H:2 * H]
    o = sig[:, 2 * H:3 * H]
    c_new = f * c_prev + i * g
    h_new = o * jnp.tanh(c_new)
    return h_new, c_new


def _encoder_kernel(*refs, S, B, H, V, L):
    """Single fused kernel: embedding + L bidirectional LSTM layers, everything VMEM-resident."""
    ids_ref, table_ref = refs[0], refs[1]
    w_refs = refs[2:2 + 4 * L]           # per layer: wih(in,8H), whh_f(H,4H), whh_b(H,4H), b(1,8H)
    hN_ref = refs[2 + 4 * L]             # (2*L*B, H)
    cN_ref = refs[3 + 4 * L]             # (2*L*B, H)
    y_sc = refs[4 + 4 * L]               # (S*B, 2H) inter-layer activations (VMEM scratch)

    # Embedding gather fused as a one-hot matmul (bit-exact for f32 tables).
    ids = ids_ref[...]                                                         # (S*B, 1) int32
    onehot = (ids == jax.lax.broadcasted_iota(jnp.int32, (S * B, V), 1)).astype(jnp.float32)
    x = jnp.dot(onehot, table_ref[...], preferred_element_type=jnp.float32)    # (S*B, E)
    # TODO(synk): nn.Dropout on the embedding is eval-mode identity (no stochastic mask).

    for layer in range(L):
        wih = w_refs[4 * layer][...]         # (in, 8H): fwd(i,f,o,g) | bwd(i,f,o,g)
        whh_f = w_refs[4 * layer + 1][...]   # (H, 4H)
        whh_b = w_refs[4 * layer + 2][...]   # (H, 4H)
        b = w_refs[4 * layer + 3][...]       # (1, 8H)

        # Hoisted input projection: one matmul for the whole sequence and both directions.
        gin = jnp.dot(x, wih, preferred_element_type=jnp.float32) + b          # (S*B, 8H)

        h_f = jnp.zeros((B, H), jnp.float32)
        c_f = jnp.zeros((B, H), jnp.float32)
        h_b = jnp.zeros((B, H), jnp.float32)
        c_b = jnp.zeros((B, H), jnp.float32)
        write_y = layer < L - 1   # last layer's per-step outputs are never consumed

        for s in range(S):        # S is small & static: fully unrolled, static slices only
            tf = s
            tb = S - 1 - s
            gf = gin[tf * B:(tf + 1) * B, 0:4 * H] + jnp.dot(
                h_f, whh_f, preferred_element_type=jnp.float32)
            gb = gin[tb * B:(tb + 1) * B, 4 * H:8 * H] + jnp.dot(
                h_b, whh_b, preferred_element_type=jnp.float32)
            h_f, c_f = _lstm_cell(gf, c_f, H)
            h_b, c_b = _lstm_cell(gb, c_b, H)
            if write_y:
                y_sc[tf * B:(tf + 1) * B, 0:H] = h_f          # forward half, original time slot
                y_sc[tb * B:(tb + 1) * B, H:2 * H] = h_b      # backward half, original time slot

        # PyTorch state layout: rows [2*layer]=forward, [2*layer+1]=backward (flattened over B).
        hN_ref[(2 * layer) * B:(2 * layer + 1) * B, :] = h_f
        hN_ref[(2 * layer + 1) * B:(2 * layer + 2) * B, :] = h_b
        cN_ref[(2 * layer) * B:(2 * layer + 1) * B, :] = c_f
        cN_ref[(2 * layer + 1) * B:(2 * layer + 2) * B, :] = c_b

        if write_y:
            x = y_sc[...]   # (S*B, 2H): next layer's input, never leaves VMEM


def encoder_rnn_forward(prepared, x_tokens):
    """Forward of EncoderRNN: returns (hidden, cell), each (num_layers*2, B, H)."""
    S, B = x_tokens.shape
    V, _E = prepared["embedding"].shape
    layers = prepared["layers"]
    L = len(layers)
    H = layers[0]["whh_f"].shape[0]

    ids = x_tokens.reshape(S * B, 1).astype(jnp.int32)
    flat_w = []
    for ld in layers:
        flat_w += [ld["wih"], ld["whh_f"], ld["whh_b"], ld["b"]]

    kernel = functools.partial(_encoder_kernel, S=S, B=B, H=H, V=V, L=L)
    h_flat, c_flat = pl.pallas_call(
        kernel,
        out_shape=(
            jax.ShapeDtypeStruct((2 * L * B, H), jnp.float32),
            jax.ShapeDtypeStruct((2 * L * B, H), jnp.float32),
        ),
        scratch_shapes=[pltpu.VMEM((S * B, 2 * H), jnp.float32)],
    )(ids, prepared["embedding"], *flat_w)
    hidden = h_flat.reshape(2 * L, B, H)
    cell = c_flat.reshape(2 * L, B, H)
    return hidden, cell


# ----------------------------- parameters (PyTorch layout) -----------------------------

def init_params(key, input_size, embedding_size, hidden_size, num_layers):
    """Synthetic params in nn.Embedding / nn.LSTM layout (gate order i,f,g,o; w_ih: (4H, in))."""
    H = hidden_size
    keys = jax.random.split(key, 1 + num_layers * 2)
    params = {"embedding": jax.random.normal(keys[0], (input_size, embedding_size), jnp.float32)}
    k = 1.0 / (hidden_size ** 0.5)
    layers = []
    for layer in range(num_layers):
        in_dim = embedding_size if layer == 0 else 2 * hidden_size
        ld = {}
        for d_idx, tag in enumerate(("f", "b")):
            kk = jax.random.split(keys[1 + layer * 2 + d_idx], 4)
            ld[f"w_ih_{tag}"] = jax.random.uniform(kk[0], (4 * H, in_dim), jnp.float32, -k, k)
            ld[f"w_hh_{tag}"] = jax.random.uniform(kk[1], (4 * H, H), jnp.float32, -k, k)
            ld[f"b_ih_{tag}"] = jax.random.uniform(kk[2], (4 * H,), jnp.float32, -k, k)
            ld[f"b_hh_{tag}"] = jax.random.uniform(kk[3], (4 * H,), jnp.float32, -k, k)
        layers.append(ld)
    params["lstm"] = layers
    return params


def _reorder_gates(w, H):
    """PyTorch gate order (i, f, g, o) along axis 0 -> kernel order (i, f, o, g)."""
    return jnp.concatenate([w[0:2 * H], w[3 * H:4 * H], w[2 * H:3 * H]], axis=0)


def prepare_params(params, hidden_size):
    """Transpose, reorder gates and concatenate directions into the kernel's weight layout."""
    H = hidden_size
    out_layers = []
    for ld in params["lstm"]:
        per_dir = {}
        for tag in ("f", "b"):
            wih = _reorder_gates(ld[f"w_ih_{tag}"], H).T                        # (in, 4H)
            whh = _reorder_gates(ld[f"w_hh_{tag}"], H).T                        # (H, 4H)
            bias = _reorder_gates(ld[f"b_ih_{tag}"] + ld[f"b_hh_{tag}"], H)     # (4H,)
            per_dir[tag] = (wih, whh, bias)
        out_layers.append({
            "wih": jnp.concatenate([per_dir["f"][0], per_dir["b"][0]], axis=1),   # (in, 8H)
            "whh_f": per_dir["f"][1],
            "whh_b": per_dir["b"][1],
            "b": jnp.concatenate([per_dir["f"][2], per_dir["b"][2]])[None, :],    # (1, 8H)
        })
    return {"embedding": params["embedding"], "layers": out_layers}


# ----------------------------- plain-JAX reference (for verification) -----------------------------

def _reference_forward(params, x_tokens, hidden_size):
    H = hidden_size
    inp = jnp.take(params["embedding"], x_tokens, axis=0)   # (S, B, E)
    hs, cs = [], []
    for ld in params["lstm"]:
        outs = []
        for tag, reverse in (("f", False), ("b", True)):
            w_ih, w_hh = ld[f"w_ih_{tag}"], ld[f"w_hh_{tag}"]
            bias = ld[f"b_ih_{tag}"] + ld[f"b_hh_{tag}"]
            xs = inp[::-1] if reverse else inp
            h = jnp.zeros((xs.shape[1], H), jnp.float32)
            c = jnp.zeros((xs.shape[1], H), jnp.float32)
            ys = []
            for t in range(xs.shape[0]):
                g = xs[t] @ w_ih.T + h @ w_hh.T + bias
                i = jax.nn.sigmoid(g[:, 0:H])
                f = jax.nn.sigmoid(g[:, H:2 * H])
                gg = jnp.tanh(g[:, 2 * H:3 * H])
                o = jax.nn.sigmoid(g[:, 3 * H:4 * H])
                c = f * c + i * gg
                h = o * jnp.tanh(c)
                ys.append(h)
            y = jnp.stack(ys)
            if reverse:
                y = y[::-1]
            outs.append(y)
            hs.append(h)
            cs.append(c)
        inp = jnp.concatenate(outs, axis=-1)
    return jnp.stack(hs), jnp.stack(cs)


if __name__ == "__main__":
    INPUT_SIZE = 50      # vocab
    EMBEDDING_SIZE = 16
    HIDDEN_SIZE = 32
    NUM_LAYERS = 2
    SEQ = 8
    BATCH = 2

    key = jax.random.PRNGKey(0)
    pkey, xkey = jax.random.split(key)
    params = init_params(pkey, INPUT_SIZE, EMBEDDING_SIZE, HIDDEN_SIZE, NUM_LAYERS)
    prepared = prepare_params(params, HIDDEN_SIZE)

    x = jax.random.randint(xkey, (SEQ, BATCH), 0, INPUT_SIZE, dtype=jnp.int32)

    hidden, cell = jax.jit(encoder_rnn_forward)(prepared, x)
    jax.block_until_ready((hidden, cell))

    assert hidden.shape == (NUM_LAYERS * 2, BATCH, HIDDEN_SIZE)
    assert cell.shape == (NUM_LAYERS * 2, BATCH, HIDDEN_SIZE)
    assert bool(jnp.all(jnp.isfinite(hidden))) and bool(jnp.all(jnp.isfinite(cell)))

    h_ref, c_ref = _reference_forward(params, x, HIDDEN_SIZE)
    assert bool(jnp.allclose(hidden, h_ref, rtol=1e-4, atol=1e-4))
    assert bool(jnp.allclose(cell, c_ref, rtol=1e-4, atol=1e-4))

    print("KERNEL_OK")
</pallas_src>

<mosaic_0001>
module attributes {stable_mosaic.version = 11 : i64} {
  func.func @_encoder_kernel(%arg0: memref<16x1xi32, #tpu.memory_space<vmem>>, %arg1: memref<50x16xf32, #tpu.memory_space<vmem>>, %arg2: memref<16x256xf32, #tpu.memory_space<vmem>>, %arg3: memref<32x128xf32, #tpu.memory_space<vmem>>, %arg4: memref<32x128xf32, #tpu.memory_space<vmem>>, %arg5: memref<1x256xf32, #tpu.memory_space<vmem>>, %arg6: memref<64x256xf32, #tpu.memory_space<vmem>>, %arg7: memref<32x128xf32, #tpu.memory_space<vmem>>, %arg8: memref<32x128xf32, #tpu.memory_space<vmem>>, %arg9: memref<1x256xf32, #tpu.memory_space<vmem>>, %arg10: memref<8x32xf32, #tpu.memory_space<vmem>>, %arg11: memref<8x32xf32, #tpu.memory_space<vmem>>, %arg12: memref<16x64xf32, #tpu.memory_space<vmem>>) attributes {dimension_semantics = [], scalar_prefetch = 0 : i64, scratch_operands = 1 : i64, tpu.core_type = #tpu.core_type<tc>} {
    %c0 = arith.constant 0 : index
    %c0_0 = arith.constant 0 : index
    %0 = vector.load %arg0[%c0, %c0_0] : memref<16x1xi32, #tpu.memory_space<vmem>>, vector<16x1xi32>
    %1 = tpu.iota {dimensions = array<i32: 1>} : vector<16x50xi32>
    %2 = vector.broadcast %0 : vector<16x1xi32> to vector<16x50xi32>
    %3 = arith.cmpi eq, %2, %1 : vector<16x50xi32>
    %4 = arith.extui %3 : vector<16x50xi1> to vector<16x50xi32>
    %5 = arith.sitofp %4 : vector<16x50xi32> to vector<16x50xf32>
    %c0_1 = arith.constant 0 : index
    %c0_2 = arith.constant 0 : index
    %6 = vector.load %arg1[%c0_1, %c0_2] : memref<50x16xf32, #tpu.memory_space<vmem>>, vector<50x16xf32>
    %cst = arith.constant dense<0.000000e+00> : vector<16x16xf32>
    %7 = tpu.matmul %5, %6, %cst {dimension_numbers = #tpu.dot_dimension_numbers<[1], [0], [0], [1], [0, 0, 1, 1], [], []>} : vector<16x50xf32>, vector<50x16xf32>, vector<16x16xf32> -> vector<16x16xf32>
    %c0_3 = arith.constant 0 : index
    %c0_4 = arith.constant 0 : index
    %8 = vector.load %arg2[%c0_3, %c0_4] : memref<16x256xf32, #tpu.memory_space<vmem>>, vector<16x256xf32>
    %c0_5 = arith.constant 0 : index
    %c0_6 = arith.constant 0 : index
    %9 = vector.load %arg3[%c0_5, %c0_6] : memref<32x128xf32, #tpu.memory_space<vmem>>, vector<32x128xf32>
    %c0_7 = arith.constant 0 : index
    %c0_8 = arith.constant 0 : index
    %10 = vector.load %arg4[%c0_7, %c0_8] : memref<32x128xf32, #tpu.memory_space<vmem>>, vector<32x128xf32>
    %c0_9 = arith.constant 0 : index
    %c0_10 = arith.constant 0 : index
    %11 = vector.load %arg5[%c0_9, %c0_10] : memref<1x256xf32, #tpu.memory_space<vmem>>, vector<1x256xf32>
    %cst_11 = arith.constant dense<0.000000e+00> : vector<16x256xf32>
    %12 = tpu.matmul %7, %8, %cst_11 {dimension_numbers = #tpu.dot_dimension_numbers<[1], [0], [0], [1], [0, 0, 1, 1], [], []>} : vector<16x16xf32>, vector<16x256xf32>, vector<16x256xf32> -> vector<16x256xf32>
    %13 = vector.broadcast %11 : vector<1x256xf32> to vector<16x256xf32>
    %14 = arith.addf %12, %13 : vector<16x256xf32>
    %cst_12 = arith.constant 0.000000e+00 : f32
    %15 = vector.broadcast %cst_12 : f32 to vector<2x32xf32>
    %cst_13 = arith.constant 0.000000e+00 : f32
    %16 = vector.broadcast %cst_13 : f32 to vector<2x32xf32>
    %cst_14 = arith.constant 0.000000e+00 : f32
    %17 = vector.broadcast %cst_14 : f32 to vector<2x32xf32>
    %cst_15 = arith.constant 0.000000e+00 : f32
    %18 = vector.broadcast %cst_15 : f32 to vector<2x32xf32>
    %19 = vector.extract_strided_slice %14 {offsets = [0, 0], sizes = [2, 128], strides = [1, 1]} : vector<16x256xf32> to vector<2x128xf32>
    %cst_16 = arith.constant dense<0.000000e+00> : vector<2x128xf32>
    %20 = tpu.matmul %15, %9, %cst_16 {dimension_numbers = #tpu.dot_dimension_numbers<[1], [0], [0], [1], [0, 0, 1, 1], [], []>} : vector<2x32xf32>, vector<32x128xf32>, vector<2x128xf32> -> vector<2x128xf32>
    %21 = arith.addf %19, %20 : vector<2x128xf32>
    %22 = vector.extract_strided_slice %14 {offsets = [14, 128], sizes = [2, 128], strides = [1, 1]} : vector<16x256xf32> to vector<2x128xf32>
    %cst_17 = arith.constant dense<0.000000e+00> : vector<2x128xf32>
    %23 = tpu.matmul %17, %10, %cst_17 {dimension_numbers = #tpu.dot_dimension_numbers<[1], [0], [0], [1], [0, 0, 1, 1], [], []>} : vector<2x32xf32>, vector<32x128xf32>, vector<2x128xf32> -> vector<2x128xf32>
    %24 = arith.addf %22, %23 : vector<2x128xf32>
    %25 = vector.extract_strided_slice %21 {offsets = [0, 0], sizes = [2, 96], strides = [1, 1]} : vector<2x128xf32> to vector<2x96xf32>
    %26 = arith.negf %25 : vector<2x96xf32>
    %27 = math.exp %26 : vector<2x96xf32>
    %cst_18 = arith.constant 1.000000e+00 : f32
    %28 = vector.broadcast %cst_18 : f32 to vector<2x96xf32>
    %29 = arith.addf %28, %27 : vector<2x96xf32>
    %30 = arith.divf %28, %29 : vector<2x96xf32>
    %31 = vector.extract_strided_slice %21 {offsets = [0, 96], sizes = [2, 32], strides = [1, 1]} : vector<2x128xf32> to vector<2x32xf32>
    %32 = math.tanh %31 : vector<2x32xf32>
    %33 = vector.extract_strided_slice %30 {offsets = [0, 0], sizes = [2, 32], strides = [1, 1]} : vector<2x96xf32> to vector<2x32xf32>
    %34 = vector.extract_strided_slice %30 {offsets = [0, 32], sizes = [2, 32], strides = [1, 1]} : vector<2x96xf32> to vector<2x32xf32>
    %35 = vector.extract_strided_slice %30 {offsets = [0, 64], sizes = [2, 32], strides = [1, 1]} : vector<2x96xf32> to vector<2x32xf32>
    %36 = arith.mulf %34, %16 : vector<2x32xf32>
    %37 = arith.mulf %33, %32 : vector<2x32xf32>
    %38 = arith.addf %36, %37 : vector<2x32xf32>
    %39 = math.tanh %38 : vector<2x32xf32>
    %40 = arith.mulf %35, %39 : vector<2x32xf32>
    %41 = vector.extract_strided_slice %24 {offsets = [0, 0], sizes = [2, 96], strides = [1, 1]} : vector<2x128xf32> to vector<2x96xf32>
    %42 = arith.negf %41 : vector<2x96xf32>
    %43 = math.exp %42 : vector<2x96xf32>
    %cst_19 = arith.constant 1.000000e+00 : f32
    %44 = vector.broadcast %cst_19 : f32 to vector<2x96xf32>
    %45 = arith.addf %44, %43 : vector<2x96xf32>
    %46 = arith.divf %44, %45 : vector<2x96xf32>
    %47 = vector.extract_strided_slice %24 {offsets = [0, 96], sizes = [2, 32], strides = [1, 1]} : vector<2x128xf32> to vector<2x32xf32>
    %48 = math.tanh %47 : vector<2x32xf32>
    %49 = vector.extract_strided_slice %46 {offsets = [0, 0], sizes = [2, 32], strides = [1, 1]} : vector<2x96xf32> to vector<2x32xf32>
    %50 = vector.extract_strided_slice %46 {offsets = [0, 32], sizes = [2, 32], strides = [1, 1]} : vector<2x96xf32> to vector<2x32xf32>
    %51 = vector.extract_strided_slice %46 {offsets = [0, 64], sizes = [2, 32], strides = [1, 1]} : vector<2x96xf32> to vector<2x32xf32>
    %52 = arith.mulf %50, %18 : vector<2x32xf32>
    %53 = arith.mulf %49, %48 : vector<2x32xf32>
    %54 = arith.addf %52, %53 : vector<2x32xf32>
    %55 = math.tanh %54 : vector<2x32xf32>
    %56 = arith.mulf %51, %55 : vector<2x32xf32>
    %c0_20 = arith.constant 0 : index
    %c0_21 = arith.constant 0 : index
    %57 = vector.load %arg12[%c0_20, %c0_21] : memref<16x64xf32, #tpu.memory_space<vmem>>, vector<2x32xf32>
    tpu.vector_store %arg12[%c0_20, %c0_21], %40 {strides = array<i32>} : memref<16x64xf32, #tpu.memory_space<vmem>>, vector<2x32xf32>,
    %c14 = arith.constant 14 : index
    %c32 = arith.constant 32 : index
    %58 = vector.load %arg12[%c14, %c32] : memref<16x64xf32, #tpu.memory_space<vmem>>, vector<2x32xf32>
    tpu.vector_store %arg12[%c14, %c32], %56 {strides = array<i32>} : memref<16x64xf32, #tpu.memory_space<vmem>>, vector<2x32xf32>,
    %59 = vector.extract_strided_slice %14 {offsets = [2, 0], sizes = [2, 128], strides = [1, 1]} : vector<16x256xf32> to vector<2x128xf32>
    %cst_22 = arith.constant dense<0.000000e+00> : vector<2x128xf32>
    %60 = tpu.matmul %40, %9, %cst_22 {dimension_numbers = #tpu.dot_dimension_numbers<[1], [0], [0], [1], [0, 0, 1, 1], [], []>} : vector<2x32xf32>, vector<32x128xf32>, vector<2x128xf32> -> vector<2x128xf32>
    %61 = arith.addf %59, %60 : vector<2x128xf32>
    %62 = vector.extract_strided_slice %14 {offsets = [12, 128], sizes = [2, 128], strides = [1, 1]} : vector<16x256xf32> to vector<2x128xf32>
    %cst_23 = arith.constant dense<0.000000e+00> : vector<2x128xf32>
    %63 = tpu.matmul %56, %10, %cst_23 {dimension_numbers = #tpu.dot_dimension_numbers<[1], [0], [0], [1], [0, 0, 1, 1], [], []>} : vector<2x32xf32>, vector<32x128xf32>, vector<2x128xf32> -> vector<2x128xf32>
    %64 = arith.addf %62, %63 : vector<2x128xf32>
    %65 = vector.extract_strided_slice %61 {offsets = [0, 0], sizes = [2, 96], strides = [1, 1]} : vector<2x128xf32> to vector<2x96xf32>
    %66 = arith.negf %65 : vector<2x96xf32>
    %67 = math.exp %66 : vector<2x96xf32>
    %cst_24 = arith.constant 1.000000e+00 : f32
    %68 = vector.broadcast %cst_24 : f32 to vector<2x96xf32>
    %69 = arith.addf %68, %67 : vector<2x96xf32>
    %70 = arith.divf %68, %69 : vector<2x96xf32>
    %71 = vector.extract_strided_slice %61 {offsets = [0, 96], sizes = [2, 32], strides = [1, 1]} : vector<2x128xf32> to vector<2x32xf32>
    %72 = math.tanh %71 : vector<2x32xf32>
    %73 = vector.extract_strided_slice %70 {offsets = [0, 0], sizes = [2, 32], strides = [1, 1]} : vector<2x96xf32> to vector<2x32xf32>
    %74 = vector.extract_strided_slice %70 {offsets = [0, 32], sizes = [2, 32], strides = [1, 1]} : vector<2x96xf32> to vector<2x32xf32>
    %75 = vector.extract_strided_slice %70 {offsets = [0, 64], sizes = [2, 32], strides = [1, 1]} : vector<2x96xf32> to vector<2x32xf32>
    %76 = arith.mulf %74, %38 : vector<2x32xf32>
    %77 = arith.mulf %73, %72 : vector<2x32xf32>
    %78 = arith.addf %76, %77 : vector<2x32xf32>
    %79 = math.tanh %78 : vector<2x32xf32>
    %80 = arith.mulf %75, %79 : vector<2x32xf32>
    %81 = vector.extract_strided_slice %64 {offsets = [0, 0], sizes = [2, 96], strides = [1, 1]} : vector<2x128xf32> to vector<2x96xf32>
    %82 = arith.negf %81 : vector<2x96xf32>
    %83 = math.exp %82 : vector<2x96xf32>
    %cst_25 = arith.constant 1.000000e+00 : f32
    %84 = vector.broadcast %cst_25 : f32 to vector<2x96xf32>
    %85 = arith.addf %84, %83 : vector<2x96xf32>
    %86 = arith.divf %84, %85 : vector<2x96xf32>
    %87 = vector.extract_strided_slice %64 {offsets = [0, 96], sizes = [2, 32], strides = [1, 1]} : vector<2x128xf32> to vector<2x32xf32>
    %88 = math.tanh %87 : vector<2x32xf32>
    %89 = vector.extract_strided_slice %86 {offsets = [0, 0], sizes = [2, 32], strides = [1, 1]} : vector<2x96xf32> to vector<2x32xf32>
    %90 = vector.extract_strided_slice %86 {offsets = [0, 32], sizes = [2, 32], strides = [1, 1]} : vector<2x96xf32> to vector<2x32xf32>
    %91 = vector.extract_strided_slice %86 {offsets = [0, 64], sizes = [2, 32], strides = [1, 1]} : vector<2x96xf32> to vector<2x32xf32>
    %92 = arith.mulf %90, %54 : vector<2x32xf32>
    %93 = arith.mulf %89, %88 : vector<2x32xf32>
    %94 = arith.addf %92, %93 : vector<2x32xf32>
    %95 = math.tanh %94 : vector<2x32xf32>
    %96 = arith.mulf %91, %95 : vector<2x32xf32>
    %c2 = arith.constant 2 : index
    %c0_26 = arith.constant 0 : index
    %97 = vector.load %arg12[%c2, %c0_26] : memref<16x64xf32, #tpu.memory_space<vmem>>, vector<2x32xf32>
    tpu.vector_store %arg12[%c2, %c0_26], %80 {strides = array<i32>} : memref<16x64xf32, #tpu.memory_space<vmem>>, vector<2x32xf32>,
    %c12 = arith.constant 12 : index
    %c32_27 = arith.constant 32 : index
    %98 = vector.load %arg12[%c12, %c32_27] : memref<16x64xf32, #tpu.memory_space<vmem>>, vector<2x32xf32>
    tpu.vector_store %arg12[%c12, %c32_27], %96 {strides = array<i32>} : memref<16x64xf32, #tpu.memory_space<vmem>>, vector<2x32xf32>,
    %99 = vector.extract_strided_slice %14 {offsets = [4, 0], sizes = [2, 128], strides = [1, 1]} : vector<16x256xf32> to vector<2x128xf32>
    %cst_28 = arith.constant dense<0.000000e+00> : vector<2x128xf32>
    %100 = tpu.matmul %80, %9, %cst_28 {dimension_numbers = #tpu.dot_dimension_numbers<[1], [0], [0], [1], [0, 0, 1, 1], [], []>} : vector<2x32xf32>, vector<32x128xf32>, vector<2x128xf32> -> vector<2x128xf32>
    %101 = arith.addf %99, %100 : vector<2x128xf32>
    %102 = vector.extract_strided_slice %14 {offsets = [10, 128], sizes = [2, 128], strides = [1, 1]} : vector<16x256xf32> to vector<2x128xf32>
    %cst_29 = arith.constant dense<0.000000e+00> : vector<2x128xf32>
    %103 = tpu.matmul %96, %10, %cst_29 {dimension_numbers = #tpu.dot_dimension_numbers<[1], [0], [0], [1], [0, 0, 1, 1], [], []>} : vector<2x32xf32>, vector<32x128xf32>, vector<2x128xf32> -> vector<2x128xf32>
    %104 = arith.addf %102, %103 : vector<2x128xf32>
    %105 = vector.extract_strided_slice %101 {offsets = [0, 0], sizes = [2, 96], strides = [1, 1]} : vector<2x128xf32> to vector<2x96xf32>
    %106 = arith.negf %105 : vector<2x96xf32>
    %107 = math.exp %106 : vector<2x96xf32>
    %cst_30 = arith.constant 1.000000e+00 : f32
    %108 = vector.broadcast %cst_30 : f32 to vector<2x96xf32>
    %109 = arith.addf %108, %107 : vector<2x96xf32>
    %110 = arith.divf %108, %109 : vector<2x96xf32>
    %111 = vector.extract_strided_slice %101 {offsets = [0, 96], sizes = [2, 32], strides = [1, 1]} : vector<2x128xf32> to vector<2x32xf32>
    %112 = math.tanh %111 : vector<2x32xf32>
    %113 = vector.extract_strided_slice %110 {offsets = [0, 0], sizes = [2, 32], strides = [1, 1]} : vector<2x96xf32> to vector<2x32xf32>
    %114 = vector.extract_strided_slice %110 {offsets = [0, 32], sizes = [2, 32], strides = [1, 1]} : vector<2x96xf32> to vector<2x32xf32>
    %115 = vector.extract_strided_slice %110 {offsets = [0, 64], sizes = [2, 32], strides = [1, 1]} : vector<2x96xf32> to vector<2x32xf32>
    %116 = arith.mulf %114, %78 : vector<2x32xf32>
    %117 = arith.mulf %113, %112 : vector<2x32xf32>
    %118 = arith.addf %116, %117 : vector<2x32xf32>
    %119 = math.tanh %118 : vector<2x32xf32>
    %120 = arith.mulf %115, %119 : vector<2x32xf32>
    %121 = vector.extract_strided_slice %104 {offsets = [0, 0], sizes = [2, 96], strides = [1, 1]} : vector<2x128xf32> to vector<2x96xf32>
    %122 = arith.negf %121 : vector<2x96xf32>
    %123 = math.exp %122 : vector<2x96xf32>
    %cst_31 = arith.constant 1.000000e+00 : f32
    %124 = vector.broadcast %cst_31 : f32 to vector<2x96xf32>
    %125 = arith.addf %124, %123 : vector<2x96xf32>
    %126 = arith.divf %124, %125 : vector<2x96xf32>
    %127 = vector.extract_strided_slice %104 {offsets = [0, 96], sizes = [2, 32], strides = [1, 1]} : vector<2x128xf32> to vector<2x32xf32>
    %128 = math.tanh %127 : vector<2x32xf32>
    %129 = vector.extract_strided_slice %126 {offsets = [0, 0], sizes = [2, 32], strides = [1, 1]} : vector<2x96xf32> to vector<2x32xf32>
    %130 = vector.extract_strided_slice %126 {offsets = [0, 32], sizes = [2, 32], strides = [1, 1]} : vector<2x96xf32> to vector<2x32xf32>
    %131 = vector.extract_strided_slice %126 {offsets = [0, 64], sizes = [2, 32], strides = [1, 1]} : vector<2x96xf32> to vector<2x32xf32>
    %132 = arith.mulf %130, %94 : vector<2x32xf32>
    %133 = arith.mulf %129, %128 : vector<2x32xf32>
    %134 = arith.addf %132, %133 : vector<2x32xf32>
    %135 = math.tanh %134 : vector<2x32xf32>
    %136 = arith.mulf %131, %135 : vector<2x32xf32>
    %c4 = arith.constant 4 : index
    %c0_32 = arith.constant 0 : index
    %137 = vector.load %arg12[%c4, %c0_32] : memref<16x64xf32, #tpu.memory_space<vmem>>, vector<2x32xf32>
    tpu.vector_store %arg12[%c4, %c0_32], %120 {strides = array<i32>} : memref<16x64xf32, #tpu.memory_space<vmem>>, vector<2x32xf32>,
    %c10 = arith.constant 10 : index
    %c32_33 = arith.constant 32 : index
    %138 = vector.load %arg12[%c10, %c32_33] : memref<16x64xf32, #tpu.memory_space<vmem>>, vector<2x32xf32>
    tpu.vector_store %arg12[%c10, %c32_33], %136 {strides = array<i32>} : memref<16x64xf32, #tpu.memory_space<vmem>>, vector<2x32xf32>,
    %139 = vector.extract_strided_slice %14 {offsets = [6, 0], sizes = [2, 128], strides = [1, 1]} : vector<16x256xf32> to vector<2x128xf32>
    %cst_34 = arith.constant dense<0.000000e+00> : vector<2x128xf32>
    %140 = tpu.matmul %120, %9, %cst_34 {dimension_numbers = #tpu.dot_dimension_numbers<[1], [0], [0], [1], [0, 0, 1, 1], [], []>} : vector<2x32xf32>, vector<32x128xf32>, vector<2x128xf32> -> vector<2x128xf32>
    %141 = arith.addf %139, %140 : vector<2x128xf32>
    %142 = vector.extract_strided_slice %14 {offsets = [8, 128], sizes = [2, 128], strides = [1, 1]} : vector<16x256xf32> to vector<2x128xf32>
    %cst_35 = arith.constant dense<0.000000e+00> : vector<2x128xf32>
    %143 = tpu.matmul %136, %10, %cst_35 {dimension_numbers = #tpu.dot_dimension_numbers<[1], [0], [0], [1], [0, 0, 1, 1], [], []>} : vector<2x32xf32>, vector<32x128xf32>, vector<2x128xf32> -> vector<2x128xf32>
    %144 = arith.addf %142, %143 : vector<2x128xf32>
    %145 = vector.extract_strided_slice %141 {offsets = [0, 0], sizes = [2, 96], strides = [1, 1]} : vector<2x128xf32> to vector<2x96xf32>
    %146 = arith.negf %145 : vector<2x96xf32>
    %147 = math.exp %146 : vector<2x96xf32>
    %cst_36 = arith.constant 1.000000e+00 : f32
    %148 = vector.broadcast %cst_36 : f32 to vector<2x96xf32>
    %149 = arith.addf %148, %147 : vector<2x96xf32>
    %150 = arith.divf %148, %149 : vector<2x96xf32>
    %151 = vector.extract_strided_slice %141 {offsets = [0, 96], sizes = [2, 32], strides = [1, 1]} : vector<2x128xf32> to vector<2x32xf32>
    %152 = math.tanh %151 : vector<2x32xf32>
    %153 = vector.extract_strided_slice %150 {offsets = [0, 0], sizes = [2, 32], strides = [1, 1]} : vector<2x96xf32> to vector<2x32xf32>
    %154 = vector.extract_strided_slice %150 {offsets = [0, 32], sizes = [2, 32], strides = [1, 1]} : vector<2x96xf32> to vector<2x32xf32>
    %155 = vector.extract_strided_slice %150 {offsets = [0, 64], sizes = [2, 32], strides = [1, 1]} : vector<2x96xf32> to vector<2x32xf32>
    %156 = arith.mulf %154, %118 : vector<2x32xf32>
    %157 = arith.mulf %153, %152 : vector<2x32xf32>
    %158 = arith.addf %156, %157 : vector<2x32xf32>
    %159 = math.tanh %158 : vector<2x32xf32>
    %160 = arith.mulf %155, %159 : vector<2x32xf32>
    %161 = vector.extract_strided_slice %144 {offsets = [0, 0], sizes = [2, 96], strides = [1, 1]} : vector<2x128xf32> to vector<2x96xf32>
    %162 = arith.negf %161 : vector<2x96xf32>
    %163 = math.exp %162 : vector<2x96xf32>
    %cst_37 = arith.constant 1.000000e+00 : f32
    %164 = vector.broadcast %cst_37 : f32 to vector<2x96xf32>
    %165 = arith.addf %164, %163 : vector<2x96xf32>
    %166 = arith.divf %164, %165 : vector<2x96xf32>
    %167 = vector.extract_strided_slice %144 {offsets = [0, 96], sizes = [2, 32], strides = [1, 1]} : vector<2x128xf32> to vector<2x32xf32>
    %168 = math.tanh %167 : vector<2x32xf32>
    %169 = vector.extract_strided_slice %166 {offsets = [0, 0], sizes = [2, 32], strides = [1, 1]} : vector<2x96xf32> to vector<2x32xf32>
    %170 = vector.extract_strided_slice %166 {offsets = [0, 32], sizes = [2, 32], strides = [1, 1]} : vector<2x96xf32> to vector<2x32xf32>
    %171 = vector.extract_strided_slice %166 {offsets = [0, 64], sizes = [2, 32], strides = [1, 1]} : vector<2x96xf32> to vector<2x32xf32>
    %172 = arith.mulf %170, %134 : vector<2x32xf32>
    %173 = arith.mulf %169, %168 : vector<2x32xf32>
    %174 = arith.addf %172, %173 : vector<2x32xf32>
    %175 = math.tanh %174 : vector<2x32xf32>
    %176 = arith.mulf %171, %175 : vector<2x32xf32>
    %c6 = arith.constant 6 : index
    %c0_38 = arith.constant 0 : index
    %177 = vector.load %arg12[%c6, %c0_38] : memref<16x64xf32, #tpu.memory_space<vmem>>, vector<2x32xf32>
    tpu.vector_store %arg12[%c6, %c0_38], %160 {strides = array<i32>} : memref<16x64xf32, #tpu.memory_space<vmem>>, vector<2x32xf32>,
    %c8 = arith.constant 8 : index
    %c32_39 = arith.constant 32 : index
    %178 = vector.load %arg12[%c8, %c32_39] : memref<16x64xf32, #tpu.memory_space<vmem>>, vector<2x32xf32>
    tpu.vector_store %arg12[%c8, %c32_39], %176 {strides = array<i32>} : memref<16x64xf32, #tpu.memory_space<vmem>>, vector<2x32xf32>,
    %179 = vector.extract_strided_slice %14 {offsets = [8, 0], sizes = [2, 128], strides = [1, 1]} : vector<16x256xf32> to vector<2x128xf32>
    %cst_40 = arith.constant dense<0.000000e+00> : vector<2x128xf32>
    %180 = tpu.matmul %160, %9, %cst_40 {dimension_numbers = #tpu.dot_dimension_numbers<[1], [0], [0], [1], [0, 0, 1, 1], [], []>} : vector<2x32xf32>, vector<32x128xf32>, vector<2x128xf32> -> vector<2x128xf32>
    %181 = arith.addf %179, %180 : vector<2x128xf32>
    %182 = vector.extract_strided_slice %14 {offsets = [6, 128], sizes = [2, 128], strides = [1, 1]} : vector<16x256xf32> to vector<2x128xf32>
    %cst_41 = arith.constant dense<0.000000e+00> : vector<2x128xf32>
    %183 = tpu.matmul %176, %10, %cst_41 {dimension_numbers = #tpu.dot_dimension_numbers<[1], [0], [0], [1], [0, 0, 1, 1], [], []>} : vector<2x32xf32>, vector<32x128xf32>, vector<2x128xf32> -> vector<2x128xf32>
    %184 = arith.addf %182, %183 : vector<2x128xf32>
    %185 = vector.extract_strided_slice %181 {offsets = [0, 0], sizes = [2, 96], strides = [1, 1]} : vector<2x128xf32> to vector<2x96xf32>
    %186 = arith.negf %185 : vector<2x96xf32>
    %187 = math.exp %186 : vector<2x96xf32>
    %cst_42 = arith.constant 1.000000e+00 : f32
    %188 = vector.broadcast %cst_42 : f32 to vector<2x96xf32>
    %189 = arith.addf %188, %187 : vector<2x96xf32>
    %190 = arith.divf %188, %189 : vector<2x96xf32>
    %191 = vector.extract_strided_slice %181 {offsets = [0, 96], sizes = [2, 32], strides = [1, 1]} : vector<2x128xf32> to vector<2x32xf32>
    %192 = math.tanh %191 : vector<2x32xf32>
    %193 = vector.extract_strided_slice %190 {offsets = [0, 0], sizes = [2, 32], strides = [1, 1]} : vector<2x96xf32> to vector<2x32xf32>
    %194 = vector.extract_strided_slice %190 {offsets = [0, 32], sizes = [2, 32], strides = [1, 1]} : vector<2x96xf32> to vector<2x32xf32>
    %195 = vector.extract_strided_slice %190 {offsets = [0, 64], sizes = [2, 32], strides = [1, 1]} : vector<2x96xf32> to vector<2x32xf32>
    %196 = arith.mulf %194, %158 : vector<2x32xf32>
    %197 = arith.mulf %193, %192 : vector<2x32xf32>
    %198 = arith.addf %196, %197 : vector<2x32xf32>
    %199 = math.tanh %198 : vector<2x32xf32>
    %200 = arith.mulf %195, %199 : vector<2x32xf32>
    %201 = vector.extract_strided_slice %184 {offsets = [0, 0], sizes = [2, 96], strides = [1, 1]} : vector<2x128xf32> to vector<2x96xf32>
    %202 = arith.negf %201 : vector<2x96xf32>
    %203 = math.exp %202 : vector<2x96xf32>
    %cst_43 = arith.constant 1.000000e+00 : f32
    %204 = vector.broadcast %cst_43 : f32 to vector<2x96xf32>
    %205 = arith.addf %204, %203 : vector<2x96xf32>
    %206 = arith.divf %204, %205 : vector<2x96xf32>
    %207 = vector.extract_strided_slice %184 {offsets = [0, 96], sizes = [2, 32], strides = [1, 1]} : vector<2x128xf32> to vector<2x32xf32>
    %208 = math.tanh %207 : vector<2x32xf32>
    %209 = vector.extract_strided_slice %206 {offsets = [0, 0], sizes = [2, 32], strides = [1, 1]} : vector<2x96xf32> to vector<2x32xf32>
    %210 = vector.extract_strided_slice %206 {offsets = [0, 32], sizes = [2, 32], strides = [1, 1]} : vector<2x96xf32> to vector<2x32xf32>
    %211 = vector.extract_strided_slice %206 {offsets = [0, 64], sizes = [2, 32], strides = [1, 1]} : vector<2x96xf32> to vector<2x32xf32>
    %212 = arith.mulf %210, %174 : vector<2x32xf32>
    %213 = arith.mulf %209, %208 : vector<2x32xf32>
    %214 = arith.addf %212, %213 : vector<2x32xf32>
    %215 = math.tanh %214 : vector<2x32xf32>
    %216 = arith.mulf %211, %215 : vector<2x32xf32>
    %c8_44 = arith.constant 8 : index
    %c0_45 = arith.constant 0 : index
    %217 = vector.load %arg12[%c8_44, %c0_45] : memref<16x64xf32, #tpu.memory_space<vmem>>, vector<2x32xf32>
    tpu.vector_store %arg12[%c8_44, %c0_45], %200 {strides = array<i32>} : memref<16x64xf32, #tpu.memory_space<vmem>>, vector<2x32xf32>,
    %c6_46 = arith.constant 6 : index
    %c32_47 = arith.constant 32 : index
    %218 = vector.load %arg12[%c6_46, %c32_47] : memref<16x64xf32, #tpu.memory_space<vmem>>, vector<2x32xf32>
    tpu.vector_store %arg12[%c6_46, %c32_47], %216 {strides = array<i32>} : memref<16x64xf32, #tpu.memory_space<vmem>>, vector<2x32xf32>,
    %219 = vector.extract_strided_slice %14 {offsets = [10, 0], sizes = [2, 128], strides = [1, 1]} : vector<16x256xf32> to vector<2x128xf32>
    %cst_48 = arith.constant dense<0.000000e+00> : vector<2x128xf32>
    %220 = tpu.matmul %200, %9, %cst_48 {dimension_numbers = #tpu.dot_dimension_numbers<[1], [0], [0], [1], [0, 0, 1, 1], [], []>} : vector<2x32xf32>, vector<32x128xf32>, vector<2x128xf32> -> vector<2x128xf32>
    %221 = arith.addf %219, %220 : vector<2x128xf32>
    %222 = vector.extract_strided_slice %14 {offsets = [4, 128], sizes = [2, 128], strides = [1, 1]} : vector<16x256xf32> to vector<2x128xf32>
    %cst_49 = arith.constant dense<0.000000e+00> : vector<2x128xf32>
    %223 = tpu.matmul %216, %10, %cst_49 {dimension_numbers = #tpu.dot_dimension_numbers<[1], [0], [0], [1], [0, 0, 1, 1], [], []>} : vector<2x32xf32>, vector<32x128xf32>, vector<2x128xf32> -> vector<2x128xf32>
    %224 = arith.addf %222, %223 : vector<2x128xf32>
    %225 = vector.extract_strided_slice %221 {offsets = [0, 0], sizes = [2, 96], strides = [1, 1]} : vector<2x128xf32> to vector<2x96xf32>
    %226 = arith.negf %225 : vector<2x96xf32>
    %227 = math.exp %226 : vector<2x96xf32>
    %cst_50 = arith.constant 1.000000e+00 : f32
    %228 = vector.broadcast %cst_50 : f32 to vector<2x96xf32>
    %229 = arith.addf %228, %227 : vector<2x96xf32>
    %230 = arith.divf %228, %229 : vector<2x96xf32>
    %231 = vector.extract_strided_slice %221 {offsets = [0, 96], sizes = [2, 32], strides = [1, 1]} : vector<2x128xf32> to vector<2x32xf32>
    %232 = math.tanh %231 : vector<2x32xf32>
    %233 = vector.extract_strided_slice %230 {offsets = [0, 0], sizes = [2, 32], strides = [1, 1]} : vector<2x96xf32> to vector<2x32xf32>
    %234 = vector.extract_strided_slice %230 {offsets = [0, 32], sizes = [2, 32], strides = [1, 1]} : vector<2x96xf32> to vector<2x32xf32>
    %235 = vector.extract_strided_slice %230 {offsets = [0, 64], sizes = [2, 32], strides = [1, 1]} : vector<2x96xf32> to vector<2x32xf32>
    %236 = arith.mulf %234, %198 : vector<2x32xf32>
    %237 = arith.mulf %233, %232 : vector<2x32xf32>
    %238 = arith.addf %236, %237 : vector<2x32xf32>
    %239 = math.tanh %238 : vector<2x32xf32>
    %240 = arith.mulf %235, %239 : vector<2x32xf32>
    %241 = vector.extract_strided_slice %224 {offsets = [0, 0], sizes = [2, 96], strides = [1, 1]} : vector<2x128xf32> to vector<2x96xf32>
    %242 = arith.negf %241 : vector<2x96xf32>
    %243 = math.exp %242 : vector<2x96xf32>
    %cst_51 = arith.constant 1.000000e+00 : f32
    %244 = vector.broadcast %cst_51 : f32 to vector<2x96xf32>
    %245 = arith.addf %244, %243 : vector<2x96xf32>
    %246 = arith.divf %244, %245 : vector<2x96xf32>
    %247 = vector.extract_strided_slice %224 {offsets = [0, 96], sizes = [2, 32], strides = [1, 1]} : vector<2x128xf32> to vector<2x32xf32>
    %248 = math.tanh %247 : vector<2x32xf32>
    %249 = vector.extract_strided_slice %246 {offsets = [0, 0], sizes = [2, 32], strides = [1, 1]} : vector<2x96xf32> to vector<2x32xf32>
    %250 = vector.extract_strided_slice %246 {offsets = [0, 32], sizes = [2, 32], strides = [1, 1]} : vector<2x96xf32> to vector<2x32xf32>
    %251 = vector.extract_strided_slice %246 {offsets = [0, 64], sizes = [2, 32], strides = [1, 1]} : vector<2x96xf32> to vector<2x32xf32>
    %252 = arith.mulf %250, %214 : vector<2x32xf32>
    %253 = arith.mulf %249, %248 : vector<2x32xf32>
    %254 = arith.addf %252, %253 : vector<2x32xf32>
    %255 = math.tanh %254 : vector<2x32xf32>
    %256 = arith.mulf %251, %255 : vector<2x32xf32>
    %c10_52 = arith.constant 10 : index
    %c0_53 = arith.constant 0 : index
    %257 = vector.load %arg12[%c10_52, %c0_53] : memref<16x64xf32, #tpu.memory_space<vmem>>, vector<2x32xf32>
    tpu.vector_store %arg12[%c10_52, %c0_53], %240 {strides = array<i32>} : memref<16x64xf32, #tpu.memory_space<vmem>>, vector<2x32xf32>,
    %c4_54 = arith.constant 4 : index
    %c32_55 = arith.constant 32 : index
    %258 = vector.load %arg12[%c4_54, %c32_55] : memref<16x64xf32, #tpu.memory_space<vmem>>, vector<2x32xf32>
    tpu.vector_store %arg12[%c4_54, %c32_55], %256 {strides = array<i32>} : memref<16x64xf32, #tpu.memory_space<vmem>>, vector<2x32xf32>,
    %259 = vector.extract_strided_slice %14 {offsets = [12, 0], sizes = [2, 128], strides = [1, 1]} : vector<16x256xf32> to vector<2x128xf32>
    %cst_56 = arith.constant dense<0.000000e+00> : vector<2x128xf32>
    %260 = tpu.matmul %240, %9, %cst_56 {dimension_numbers = #tpu.dot_dimension_numbers<[1], [0], [0], [1], [0, 0, 1, 1], [], []>} : vector<2x32xf32>, vector<32x128xf32>, vector<2x128xf32> -> vector<2x128xf32>
    %261 = arith.addf %259, %260 : vector<2x128xf32>
    %262 = vector.extract_strided_slice %14 {offsets = [2, 128], sizes = [2, 128], strides = [1, 1]} : vector<16x256xf32> to vector<2x128xf32>
    %cst_57 = arith.constant dense<0.000000e+00> : vector<2x128xf32>
    %263 = tpu.matmul %256, %10, %cst_57 {dimension_numbers = #tpu.dot_dimension_numbers<[1], [0], [0], [1], [0, 0, 1, 1], [], []>} : vector<2x32xf32>, vector<32x128xf32>, vector<2x128xf32> -> vector<2x128xf32>
    %264 = arith.addf %262, %263 : vector<2x128xf32>
    %265 = vector.extract_strided_slice %261 {offsets = [0, 0], sizes = [2, 96], strides = [1, 1]} : vector<2x128xf32> to vector<2x96xf32>
    %266 = arith.negf %265 : vector<2x96xf32>
    %267 = math.exp %266 : vector<2x96xf32>
    %cst_58 = arith.constant 1.000000e+00 : f32
    %268 = vector.broadcast %cst_58 : f32 to vector<2x96xf32>
    %269 = arith.addf %268, %267 : vector<2x96xf32>
    %270 = arith.divf %268, %269 : vector<2x96xf32>
    %271 = vector.extract_strided_slice %261 {offsets = [0, 96], sizes = [2, 32], strides = [1, 1]} : vector<2x128xf32> to vector<2x32xf32>
    %272 = math.tanh %271 : vector<2x32xf32>
    %273 = vector.extract_strided_slice %270 {offsets = [0, 0], sizes = [2, 32], strides = [1, 1]} : vector<2x96xf32> to vector<2x32xf32>
    %274 = vector.extract_strided_slice %270 {offsets = [0, 32], sizes = [2, 32], strides = [1, 1]} : vector<2x96xf32> to vector<2x32xf32>
    %275 = vector.extract_strided_slice %270 {offsets = [0, 64], sizes = [2, 32], strides = [1, 1]} : vector<2x96xf32> to vector<2x32xf32>
    %276 = arith.mulf %274, %238 : vector<2x32xf32>
    %277 = arith.mulf %273, %272 : vector<2x32xf32>
    %278 = arith.addf %276, %277 : vector<2x32xf32>
    %279 = math.tanh %278 : vector<2x32xf32>
    %280 = arith.mulf %275, %279 : vector<2x32xf32>
    %281 = vector.extract_strided_slice %264 {offsets = [0, 0], sizes = [2, 96], strides = [1, 1]} : vector<2x128xf32> to vector<2x96xf32>
    %282 = arith.negf %281 : vector<2x96xf32>
    %283 = math.exp %282 : vector<2x96xf32>
    %cst_59 = arith.constant 1.000000e+00 : f32
    %284 = vector.broadcast %cst_59 : f32 to vector<2x96xf32>
    %285 = arith.addf %284, %283 : vector<2x96xf32>
    %286 = arith.divf %284, %285 : vector<2x96xf32>
    %287 = vector.extract_strided_slice %264 {offsets = [0, 96], sizes = [2, 32], strides = [1, 1]} : vector<2x128xf32> to vector<2x32xf32>
    %288 = math.tanh %287 : vector<2x32xf32>
    %289 = vector.extract_strided_slice %286 {offsets = [0, 0], sizes = [2, 32], strides = [1, 1]} : vector<2x96xf32> to vector<2x32xf32>
    %290 = vector.extract_strided_slice %286 {offsets = [0, 32], sizes = [2, 32], strides = [1, 1]} : vector<2x96xf32> to vector<2x32xf32>
    %291 = vector.extract_strided_slice %286 {offsets = [0, 64], sizes = [2, 32], strides = [1, 1]} : vector<2x96xf32> to vector<2x32xf32>
    %292 = arith.mulf %290, %254 : vector<2x32xf32>
    %293 = arith.mulf %289, %288 : vector<2x32xf32>
    %294 = arith.addf %292, %293 : vector<2x32xf32>
    %295 = math.tanh %294 : vector<2x32xf32>
    %296 = arith.mulf %291, %295 : vector<2x32xf32>
    %c12_60 = arith.constant 12 : index
    %c0_61 = arith.constant 0 : index
    %297 = vector.load %arg12[%c12_60, %c0_61] : memref<16x64xf32, #tpu.memory_space<vmem>>, vector<2x32xf32>
    tpu.vector_store %arg12[%c12_60, %c0_61], %280 {strides = array<i32>} : memref<16x64xf32, #tpu.memory_space<vmem>>, vector<2x32xf32>,
    %c2_62 = arith.constant 2 : index
    %c32_63 = arith.constant 32 : index
    %298 = vector.load %arg12[%c2_62, %c32_63] : memref<16x64xf32, #tpu.memory_space<vmem>>, vector<2x32xf32>
    tpu.vector_store %arg12[%c2_62, %c32_63], %296 {strides = array<i32>} : memref<16x64xf32, #tpu.memory_space<vmem>>, vector<2x32xf32>,
    %299 = vector.extract_strided_slice %14 {offsets = [14, 0], sizes = [2, 128], strides = [1, 1]} : vector<16x256xf32> to vector<2x128xf32>
    %cst_64 = arith.constant dense<0.000000e+00> : vector<2x128xf32>
    %300 = tpu.matmul %280, %9, %cst_64 {dimension_numbers = #tpu.dot_dimension_numbers<[1], [0], [0], [1], [0, 0, 1, 1], [], []>} : vector<2x32xf32>, vector<32x128xf32>, vector<2x128xf32> -> vector<2x128xf32>
    %301 = arith.addf %299, %300 : vector<2x128xf32>
    %302 = vector.extract_strided_slice %14 {offsets = [0, 128], sizes = [2, 128], strides = [1, 1]} : vector<16x256xf32> to vector<2x128xf32>
    %cst_65 = arith.constant dense<0.000000e+00> : vector<2x128xf32>
    %303 = tpu.matmul %296, %10, %cst_65 {dimension_numbers = #tpu.dot_dimension_numbers<[1], [0], [0], [1], [0, 0, 1, 1], [], []>} : vector<2x32xf32>, vector<32x128xf32>, vector<2x128xf32> -> vector<2x128xf32>
    %304 = arith.addf %302, %303 : vector<2x128xf32>
    %305 = vector.extract_strided_slice %301 {offsets = [0, 0], sizes = [2, 96], strides = [1, 1]} : vector<2x128xf32> to vector<2x96xf32>
    %306 = arith.negf %305 : vector<2x96xf32>
    %307 = math.exp %306 : vector<2x96xf32>
    %cst_66 = arith.constant 1.000000e+00 : f32
    %308 = vector.broadcast %cst_66 : f32 to vector<2x96xf32>
    %309 = arith.addf %308, %307 : vector<2x96xf32>
    %310 = arith.divf %308, %309 : vector<2x96xf32>
    %311 = vector.extract_strided_slice %301 {offsets = [0, 96], sizes = [2, 32], strides = [1, 1]} : vector<2x128xf32> to vector<2x32xf32>
    %312 = math.tanh %311 : vector<2x32xf32>
    %313 = vector.extract_strided_slice %310 {offsets = [0, 0], sizes = [2, 32], strides = [1, 1]} : vector<2x96xf32> to vector<2x32xf32>
    %314 = vector.extract_strided_slice %310 {offsets = [0, 32], sizes = [2, 32], strides = [1, 1]} : vector<2x96xf32> to vector<2x32xf32>
    %315 = vector.extract_strided_slice %310 {offsets = [0, 64], sizes = [2, 32], strides = [1, 1]} : vector<2x96xf32> to vector<2x32xf32>
    %316 = arith.mulf %314, %278 : vector<2x32xf32>
    %317 = arith.mulf %313, %312 : vector<2x32xf32>
    %318 = arith.addf %316, %317 : vector<2x32xf32>
    %319 = math.tanh %318 : vector<2x32xf32>
    %320 = arith.mulf %315, %319 : vector<2x32xf32>
    %321 = vector.extract_strided_slice %304 {offsets = [0, 0], sizes = [2, 96], strides = [1, 1]} : vector<2x128xf32> to vector<2x96xf32>
    %322 = arith.negf %321 : vector<2x96xf32>
    %323 = math.exp %322 : vector<2x96xf32>
    %cst_67 = arith.constant 1.000000e+00 : f32
    %324 = vector.broadcast %cst_67 : f32 to vector<2x96xf32>
    %325 = arith.addf %324, %323 : vector<2x96xf32>
    %326 = arith.divf %324, %325 : vector<2x96xf32>
    %327 = vector.extract_strided_slice %304 {offsets = [0, 96], sizes = [2, 32], strides = [1, 1]} : vector<2x128xf32> to vector<2x32xf32>
    %328 = math.tanh %327 : vector<2x32xf32>
    %329 = vector.extract_strided_slice %326 {offsets = [0, 0], sizes = [2, 32], strides = [1, 1]} : vector<2x96xf32> to vector<2x32xf32>
    %330 = vector.extract_strided_slice %326 {offsets = [0, 32], sizes = [2, 32], strides = [1, 1]} : vector<2x96xf32> to vector<2x32xf32>
    %331 = vector.extract_strided_slice %326 {offsets = [0, 64], sizes = [2, 32], strides = [1, 1]} : vector<2x96xf32> to vector<2x32xf32>
    %332 = arith.mulf %330, %294 : vector<2x32xf32>
    %333 = arith.mulf %329, %328 : vector<2x32xf32>
    %334 = arith.addf %332, %333 : vector<2x32xf32>
    %335 = math.tanh %334 : vector<2x32xf32>
    %336 = arith.mulf %331, %335 : vector<2x32xf32>
    %c14_68 = arith.constant 14 : index
    %c0_69 = arith.constant 0 : index
    %337 = vector.load %arg12[%c14_68, %c0_69] : memref<16x64xf32, #tpu.memory_space<vmem>>, vector<2x32xf32>
    tpu.vector_store %arg12[%c14_68, %c0_69], %320 {strides = array<i32>} : memref<16x64xf32, #tpu.memory_space<vmem>>, vector<2x32xf32>,
    %c0_70 = arith.constant 0 : index
    %c32_71 = arith.constant 32 : index
    %338 = vector.load %arg12[%c0_70, %c32_71] : memref<16x64xf32, #tpu.memory_space<vmem>>, vector<2x32xf32>
    tpu.vector_store %arg12[%c0_70, %c32_71], %336 {strides = array<i32>} : memref<16x64xf32, #tpu.memory_space<vmem>>, vector<2x32xf32>,
    %c0_72 = arith.constant 0 : index
    %c0_73 = arith.constant 0 : index
    %339 = vector.load %arg10[%c0_72, %c0_73] : memref<8x32xf32, #tpu.memory_space<vmem>>, vector<2x32xf32>
    tpu.vector_store %arg10[%c0_72, %c0_73], %320 {strides = array<i32>} : memref<8x32xf32, #tpu.memory_space<vmem>>, vector<2x32xf32>,
    %c2_74 = arith.constant 2 : index
    %c0_75 = arith.constant 0 : index
    %340 = vector.load %arg10[%c2_74, %c0_75] : memref<8x32xf32, #tpu.memory_space<vmem>>, vector<2x32xf32>
    tpu.vector_store %arg10[%c2_74, %c0_75], %336 {strides = array<i32>} : memref<8x32xf32, #tpu.memory_space<vmem>>, vector<2x32xf32>,
    %c0_76 = arith.constant 0 : index
    %c0_77 = arith.constant 0 : index
    %341 = vector.load %arg11[%c0_76, %c0_77] : memref<8x32xf32, #tpu.memory_space<vmem>>, vector<2x32xf32>
    tpu.vector_store %arg11[%c0_76, %c0_77], %318 {strides = array<i32>} : memref<8x32xf32, #tpu.memory_space<vmem>>, vector<2x32xf32>,
    %c2_78 = arith.constant 2 : index
    %c0_79 = arith.constant 0 : index
    %342 = vector.load %arg11[%c2_78, %c0_79] : memref<8x32xf32, #tpu.memory_space<vmem>>, vector<2x32xf32>
    tpu.vector_store %arg11[%c2_78, %c0_79], %334 {strides = array<i32>} : memref<8x32xf32, #tpu.memory_space<vmem>>, vector<2x32xf32>,
    %c0_80 = arith.constant 0 : index
    %c0_81 = arith.constant 0 : index
    %343 = vector.load %arg12[%c0_80, %c0_81] : memref<16x64xf32, #tpu.memory_space<vmem>>, vector<16x64xf32>
    %c0_82 = arith.constant 0 : index
    %c0_83 = arith.constant 0 : index
    %344 = vector.load %arg6[%c0_82, %c0_83] : memref<64x256xf32, #tpu.memory_space<vmem>>, vector<64x256xf32>
    %c0_84 = arith.constant 0 : index
    %c0_85 = arith.constant 0 : index
    %345 = vector.load %arg7[%c0_84, %c0_85] : memref<32x128xf32, #tpu.memory_space<vmem>>, vector<32x128xf32>
    %c0_86 = arith.constant 0 : index
    %c0_87 = arith.constant 0 : index
    %346 = vector.load %arg8[%c0_86, %c0_87] : memref<32x128xf32, #tpu.memory_space<vmem>>, vector<32x128xf32>
    %c0_88 = arith.constant 0 : index
    %c0_89 = arith.constant 0 : index
    %347 = vector.load %arg9[%c0_88, %c0_89] : memref<1x256xf32, #tpu.memory_space<vmem>>, vector<1x256xf32>
    %cst_90 = arith.constant dense<0.000000e+00> : vector<16x256xf32>
    %348 = tpu.matmul %343, %344, %cst_90 {dimension_numbers = #tpu.dot_dimension_numbers<[1], [0], [0], [1], [0, 0, 1, 1], [], []>} : vector<16x64xf32>, vector<64x256xf32>, vector<16x256xf32> -> vector<16x256xf32>
    %349 = vector.broadcast %347 : vector<1x256xf32> to vector<16x256xf32>
    %350 = arith.addf %348, %349 : vector<16x256xf32>
    %cst_91 = arith.constant 0.000000e+00 : f32
    %351 = vector.broadcast %cst_91 : f32 to vector<2x32xf32>
    %cst_92 = arith.constant 0.000000e+00 : f32
    %352 = vector.broadcast %cst_92 : f32 to vector<2x32xf32>
    %cst_93 = arith.constant 0.000000e+00 : f32
    %353 = vector.broadcast %cst_93 : f32 to vector<2x32xf32>
    %cst_94 = arith.constant 0.000000e+00 : f32
    %354 = vector.broadcast %cst_94 : f32 to vector<2x32xf32>
    %355 = vector.extract_strided_slice %350 {offsets = [0, 0], sizes = [2, 128], strides = [1, 1]} : vector<16x256xf32> to vector<2x128xf32>
    %cst_95 = arith.constant dense<0.000000e+00> : vector<2x128xf32>
    %356 = tpu.matmul %351, %345, %cst_95 {dimension_numbers = #tpu.dot_dimension_numbers<[1], [0], [0], [1], [0, 0, 1, 1], [], []>} : vector<2x32xf32>, vector<32x128xf32>, vector<2x128xf32> -> vector<2x128xf32>
    %357 = arith.addf %355, %356 : vector<2x128xf32>
    %358 = vector.extract_strided_slice %350 {offsets = [14, 128], sizes = [2, 128], strides = [1, 1]} : vector<16x256xf32> to vector<2x128xf32>
    %cst_96 = arith.constant dense<0.000000e+00> : vector<2x128xf32>
    %359 = tpu.matmul %353, %346, %cst_96 {dimension_numbers = #tpu.dot_dimension_numbers<[1], [0], [0], [1], [0, 0, 1, 1], [], []>} : vector<2x32xf32>, vector<32x128xf32>, vector<2x128xf32> -> vector<2x128xf32>
    %360 = arith.addf %358, %359 : vector<2x128xf32>
    %361 = vector.extract_strided_slice %357 {offsets = [0, 0], sizes = [2, 96], strides = [1, 1]} : vector<2x128xf32> to vector<2x96xf32>
    %362 = arith.negf %361 : vector<2x96xf32>
    %363 = math.exp %362 : vector<2x96xf32>
    %cst_97 = arith.constant 1.000000e+00 : f32
    %364 = vector.broadcast %cst_97 : f32 to vector<2x96xf32>
    %365 = arith.addf %364, %363 : vector<2x96xf32>
    %366 = arith.divf %364, %365 : vector<2x96xf32>
    %367 = vector.extract_strided_slice %357 {offsets = [0, 96], sizes = [2, 32], strides = [1, 1]} : vector<2x128xf32> to vector<2x32xf32>
    %368 = math.tanh %367 : vector<2x32xf32>
    %369 = vector.extract_strided_slice %366 {offsets = [0, 0], sizes = [2, 32], strides = [1, 1]} : vector<2x96xf32> to vector<2x32xf32>
    %370 = vector.extract_strided_slice %366 {offsets = [0, 32], sizes = [2, 32], strides = [1, 1]} : vector<2x96xf32> to vector<2x32xf32>
    %371 = vector.extract_strided_slice %366 {offsets = [0, 64], sizes = [2, 32], strides = [1, 1]} : vector<2x96xf32> to vector<2x32xf32>
    %372 = arith.mulf %370, %352 : vector<2x32xf32>
    %373 = arith.mulf %369, %368 : vector<2x32xf32>
    %374 = arith.addf %372, %373 : vector<2x32xf32>
    %375 = math.tanh %374 : vector<2x32xf32>
    %376 = arith.mulf %371, %375 : vector<2x32xf32>
    %377 = vector.extract_strided_slice %360 {offsets = [0, 0], sizes = [2, 96], strides = [1, 1]} : vector<2x128xf32> to vector<2x96xf32>
    %378 = arith.negf %377 : vector<2x96xf32>
    %379 = math.exp %378 : vector<2x96xf32>
    %cst_98 = arith.constant 1.000000e+00 : f32
    %380 = vector.broadcast %cst_98 : f32 to vector<2x96xf32>
    %381 = arith.addf %380, %379 : vector<2x96xf32>
    %382 = arith.divf %380, %381 : vector<2x96xf32>
    %383 = vector.extract_strided_slice %360 {offsets = [0, 96], sizes = [2, 32], strides = [1, 1]} : vector<2x128xf32> to vector<2x32xf32>
    %384 = math.tanh %383 : vector<2x32xf32>
    %385 = vector.extract_strided_slice %382 {offsets = [0, 0], sizes = [2, 32], strides = [1, 1]} : vector<2x96xf32> to vector<2x32xf32>
    %386 = vector.extract_strided_slice %382 {offsets = [0, 32], sizes = [2, 32], strides = [1, 1]} : vector<2x96xf32> to vector<2x32xf32>
    %387 = vector.extract_strided_slice %382 {offsets = [0, 64], sizes = [2, 32], strides = [1, 1]} : vector<2x96xf32> to vector<2x32xf32>
    %388 = arith.mulf %386, %354 : vector<2x32xf32>
    %389 = arith.mulf %385, %384 : vector<2x32xf32>
    %390 = arith.addf %388, %389 : vector<2x32xf32>
    %391 = math.tanh %390 : vector<2x32xf32>
    %392 = arith.mulf %387, %391 : vector<2x32xf32>
    %393 = vector.extract_strided_slice %350 {offsets = [2, 0], sizes = [2, 128], strides = [1, 1]} : vector<16x256xf32> to vector<2x128xf32>
    %cst_99 = arith.constant dense<0.000000e+00> : vector<2x128xf32>
    %394 = tpu.matmul %376, %345, %cst_99 {dimension_numbers = #tpu.dot_dimension_numbers<[1], [0], [0], [1], [0, 0, 1, 1], [], []>} : vector<2x32xf32>, vector<32x128xf32>, vector<2x128xf32> -> vector<2x128xf32>
    %395 = arith.addf %393, %394 : vector<2x128xf32>
    %396 = vector.extract_strided_slice %350 {offsets = [12, 128], sizes = [2, 128], strides = [1, 1]} : vector<16x256xf32> to vector<2x128xf32>
    %cst_100 = arith.constant dense<0.000000e+00> : vector<2x128xf32>
    %397 = tpu.matmul %392, %346, %cst_100 {dimension_numbers = #tpu.dot_dimension_numbers<[1], [0], [0], [1], [0, 0, 1, 1], [], []>} : vector<2x32xf32>, vector<32x128xf32>, vector<2x128xf32> -> vector<2x128xf32>
    %398 = arith.addf %396, %397 : vector<2x128xf32>
    %399 = vector.extract_strided_slice %395 {offsets = [0, 0], sizes = [2, 96], strides = [1, 1]} : vector<2x128xf32> to vector<2x96xf32>
    %400 = arith.negf %399 : vector<2x96xf32>
    %401 = math.exp %400 : vector<2x96xf32>
    %cst_101 = arith.constant 1.000000e+00 : f32
    %402 = vector.broadcast %cst_101 : f32 to vector<2x96xf32>
    %403 = arith.addf %402, %401 : vector<2x96xf32>
    %404 = arith.divf %402, %403 : vector<2x96xf32>
    %405 = vector.extract_strided_slice %395 {offsets = [0, 96], sizes = [2, 32], strides = [1, 1]} : vector<2x128xf32> to vector<2x32xf32>
    %406 = math.tanh %405 : vector<2x32xf32>
    %407 = vector.extract_strided_slice %404 {offsets = [0, 0], sizes = [2, 32], strides = [1, 1]} : vector<2x96xf32> to vector<2x32xf32>
    %408 = vector.extract_strided_slice %404 {offsets = [0, 32], sizes = [2, 32], strides = [1, 1]} : vector<2x96xf32> to vector<2x32xf32>
    %409 = vector.extract_strided_slice %404 {offsets = [0, 64], sizes = [2, 32], strides = [1, 1]} : vector<2x96xf32> to vector<2x32xf32>
    %410 = arith.mulf %408, %374 : vector<2x32xf32>
    %411 = arith.mulf %407, %406 : vector<2x32xf32>
    %412 = arith.addf %410, %411 : vector<2x32xf32>
    %413 = math.tanh %412 : vector<2x32xf32>
    %414 = arith.mulf %409, %413 : vector<2x32xf32>
    %415 = vector.extract_strided_slice %398 {offsets = [0, 0], sizes = [2, 96], strides = [1, 1]} : vector<2x128xf32> to vector<2x96xf32>
    %416 = arith.negf %415 : vector<2x96xf32>
    %417 = math.exp %416 : vector<2x96xf32>
    %cst_102 = arith.constant 1.000000e+00 : f32
    %418 = vector.broadcast %cst_102 : f32 to vector<2x96xf32>
    %419 = arith.addf %418, %417 : vector<2x96xf32>
    %420 = arith.divf %418, %419 : vector<2x96xf32>
    %421 = vector.extract_strided_slice %398 {offsets = [0, 96], sizes = [2, 32], strides = [1, 1]} : vector<2x128xf32> to vector<2x32xf32>
    %422 = math.tanh %421 : vector<2x32xf32>
    %423 = vector.extract_strided_slice %420 {offsets = [0, 0], sizes = [2, 32], strides = [1, 1]} : vector<2x96xf32> to vector<2x32xf32>
    %424 = vector.extract_strided_slice %420 {offsets = [0, 32], sizes = [2, 32], strides = [1, 1]} : vector<2x96xf32> to vector<2x32xf32>
    %425 = vector.extract_strided_slice %420 {offsets = [0, 64], sizes = [2, 32], strides = [1, 1]} : vector<2x96xf32> to vector<2x32xf32>
    %426 = arith.mulf %424, %390 : vector<2x32xf32>
    %427 = arith.mulf %423, %422 : vector<2x32xf32>
    %428 = arith.addf %426, %427 : vector<2x32xf32>
    %429 = math.tanh %428 : vector<2x32xf32>
    %430 = arith.mulf %425, %429 : vector<2x32xf32>
    %431 = vector.extract_strided_slice %350 {offsets = [4, 0], sizes = [2, 128], strides = [1, 1]} : vector<16x256xf32> to vector<2x128xf32>
    %cst_103 = arith.constant dense<0.000000e+00> : vector<2x128xf32>
    %432 = tpu.matmul %414, %345, %cst_103 {dimension_numbers = #tpu.dot_dimension_numbers<[1], [0], [0], [1], [0, 0, 1, 1], [], []>} : vector<2x32xf32>, vector<32x128xf32>, vector<2x128xf32> -> vector<2x128xf32>
    %433 = arith.addf %431, %432 : vector<2x128xf32>
    %434 = vector.extract_strided_slice %350 {offsets = [10, 128], sizes = [2, 128], strides = [1, 1]} : vector<16x256xf32> to vector<2x128xf32>
    %cst_104 = arith.constant dense<0.000000e+00> : vector<2x128xf32>
    %435 = tpu.matmul %430, %346, %cst_104 {dimension_numbers = #tpu.dot_dimension_numbers<[1], [0], [0], [1], [0, 0, 1, 1], [], []>} : vector<2x32xf32>, vector<32x128xf32>, vector<2x128xf32> -> vector<2x128xf32>
    %436 = arith.addf %434, %435 : vector<2x128xf32>
    %437 = vector.extract_strided_slice %433 {offsets = [0, 0], sizes = [2, 96], strides = [1, 1]} : vector<2x128xf32> to vector<2x96xf32>
    %438 = arith.negf %437 : vector<2x96xf32>
    %439 = math.exp %438 : vector<2x96xf32>
    %cst_105 = arith.constant 1.000000e+00 : f32
    %440 = vector.broadcast %cst_105 : f32 to vector<2x96xf32>
    %441 = arith.addf %440, %439 : vector<2x96xf32>
    %442 = arith.divf %440, %441 : vector<2x96xf32>
    %443 = vector.extract_strided_slice %433 {offsets = [0, 96], sizes = [2, 32], strides = [1, 1]} : vector<2x128xf32> to vector<2x32xf32>
    %444 = math.tanh %443 : vector<2x32xf32>
    %445 = vector.extract_strided_slice %442 {offsets = [0, 0], sizes = [2, 32], strides = [1, 1]} : vector<2x96xf32> to vector<2x32xf32>
    %446 = vector.extract_strided_slice %442 {offsets = [0, 32], sizes = [2, 32], strides = [1, 1]} : vector<2x96xf32> to vector<2x32xf32>
    %447 = vector.extract_strided_slice %442 {offsets = [0, 64], sizes = [2, 32], strides = [1, 1]} : vector<2x96xf32> to vector<2x32xf32>
    %448 = arith.mulf %446, %412 : vector<2x32xf32>
    %449 = arith.mulf %445, %444 : vector<2x32xf32>
    %450 = arith.addf %448, %449 : vector<2x32xf32>
    %451 = math.tanh %450 : vector<2x32xf32>
    %452 = arith.mulf %447, %451 : vector<2x32xf32>
    %453 = vector.extract_strided_slice %436 {offsets = [0, 0], sizes = [2, 96], strides = [1, 1]} : vector<2x128xf32> to vector<2x96xf32>
    %454 = arith.negf %453 : vector<2x96xf32>
    %455 = math.exp %454 : vector<2x96xf32>
    %cst_106 = arith.constant 1.000000e+00 : f32
    %456 = vector.broadcast %cst_106 : f32 to vector<2x96xf32>
    %457 = arith.addf %456, %455 : vector<2x96xf32>
    %458 = arith.divf %456, %457 : vector<2x96xf32>
    %459 = vector.extract_strided_slice %436 {offsets = [0, 96], sizes = [2, 32], strides = [1, 1]} : vector<2x128xf32> to vector<2x32xf32>
    %460 = math.tanh %459 : vector<2x32xf32>
    %461 = vector.extract_strided_slice %458 {offsets = [0, 0], sizes = [2, 32], strides = [1, 1]} : vector<2x96xf32> to vector<2x32xf32>
    %462 = vector.extract_strided_slice %458 {offsets = [0, 32], sizes = [2, 32], strides = [1, 1]} : vector<2x96xf32> to vector<2x32xf32>
    %463 = vector.extract_strided_slice %458 {offsets = [0, 64], sizes = [2, 32], strides = [1, 1]} : vector<2x96xf32> to vector<2x32xf32>
    %464 = arith.mulf %462, %428 : vector<2x32xf32>
    %465 = arith.mulf %461, %460 : vector<2x32xf32>
    %466 = arith.addf %464, %465 : vector<2x32xf32>
    %467 = math.tanh %466 : vector<2x32xf32>
    %468 = arith.mulf %463, %467 : vector<2x32xf32>
    %469 = vector.extract_strided_slice %350 {offsets = [6, 0], sizes = [2, 128], strides = [1, 1]} : vector<16x256xf32> to vector<2x128xf32>
    %cst_107 = arith.constant dense<0.000000e+00> : vector<2x128xf32>
    %470 = tpu.matmul %452, %345, %cst_107 {dimension_numbers = #tpu.dot_dimension_numbers<[1], [0], [0], [1], [0, 0, 1, 1], [], []>} : vector<2x32xf32>, vector<32x128xf32>, vector<2x128xf32> -> vector<2x128xf32>
    %471 = arith.addf %469, %470 : vector<2x128xf32>
    %472 = vector.extract_strided_slice %350 {offsets = [8, 128], sizes = [2, 128], strides = [1, 1]} : vector<16x256xf32> to vector<2x128xf32>
    %cst_108 = arith.constant dense<0.000000e+00> : vector<2x128xf32>
    %473 = tpu.matmul %468, %346, %cst_108 {dimension_numbers = #tpu.dot_dimension_numbers<[1], [0], [0], [1], [0, 0, 1, 1], [], []>} : vector<2x32xf32>, vector<32x128xf32>, vector<2x128xf32> -> vector<2x128xf32>
    %474 = arith.addf %472, %473 : vector<2x128xf32>
    %475 = vector.extract_strided_slice %471 {offsets = [0, 0], sizes = [2, 96], strides = [1, 1]} : vector<2x128xf32> to vector<2x96xf32>
    %476 = arith.negf %475 : vector<2x96xf32>
    %477 = math.exp %476 : vector<2x96xf32>
    %cst_109 = arith.constant 1.000000e+00 : f32
    %478 = vector.broadcast %cst_109 : f32 to vector<2x96xf32>
    %479 = arith.addf %478, %477 : vector<2x96xf32>
    %480 = arith.divf %478, %479 : vector<2x96xf32>
    %481 = vector.extract_strided_slice %471 {offsets = [0, 96], sizes = [2, 32], strides = [1, 1]} : vector<2x128xf32> to vector<2x32xf32>
    %482 = math.tanh %481 : vector<2x32xf32>
    %483 = vector.extract_strided_slice %480 {offsets = [0, 0], sizes = [2, 32], strides = [1, 1]} : vector<2x96xf32> to vector<2x32xf32>
    %484 = vector.extract_strided_slice %480 {offsets = [0, 32], sizes = [2, 32], strides = [1, 1]} : vector<2x96xf32> to vector<2x32xf32>
    %485 = vector.extract_strided_slice %480 {offsets = [0, 64], sizes = [2, 32], strides = [1, 1]} : vector<2x96xf32> to vector<2x32xf32>
    %486 = arith.mulf %484, %450 : vector<2x32xf32>
    %487 = arith.mulf %483, %482 : vector<2x32xf32>
    %488 = arith.addf %486, %487 : vector<2x32xf32>
    %489 = math.tanh %488 : vector<2x32xf32>
    %490 = arith.mulf %485, %489 : vector<2x32xf32>
    %491 = vector.extract_strided_slice %474 {offsets = [0, 0], sizes = [2, 96], strides = [1, 1]} : vector<2x128xf32> to vector<2x96xf32>
    %492 = arith.negf %491 : vector<2x96xf32>
    %493 = math.exp %492 : vector<2x96xf32>
    %cst_110 = arith.constant 1.000000e+00 : f32
    %494 = vector.broadcast %cst_110 : f32 to vector<2x96xf32>
    %495 = arith.addf %494, %493 : vector<2x96xf32>
    %496 = arith.divf %494, %495 : vector<2x96xf32>
    %497 = vector.extract_strided_slice %474 {offsets = [0, 96], sizes = [2, 32], strides = [1, 1]} : vector<2x128xf32> to vector<2x32xf32>
    %498 = math.tanh %497 : vector<2x32xf32>
    %499 = vector.extract_strided_slice %496 {offsets = [0, 0], sizes = [2, 32], strides = [1, 1]} : vector<2x96xf32> to vector<2x32xf32>
    %500 = vector.extract_strided_slice %496 {offsets = [0, 32], sizes = [2, 32], strides = [1, 1]} : vector<2x96xf32> to vector<2x32xf32>
    %501 = vector.extract_strided_slice %496 {offsets = [0, 64], sizes = [2, 32], strides = [1, 1]} : vector<2x96xf32> to vector<2x32xf32>
    %502 = arith.mulf %500, %466 : vector<2x32xf32>
    %503 = arith.mulf %499, %498 : vector<2x32xf32>
    %504 = arith.addf %502, %503 : vector<2x32xf32>
    %505 = math.tanh %504 : vector<2x32xf32>
    %506 = arith.mulf %501, %505 : vector<2x32xf32>
    %507 = vector.extract_strided_slice %350 {offsets = [8, 0], sizes = [2, 128], strides = [1, 1]} : vector<16x256xf32> to vector<2x128xf32>
    %cst_111 = arith.constant dense<0.000000e+00> : vector<2x128xf32>
    %508 = tpu.matmul %490, %345, %cst_111 {dimension_numbers = #tpu.dot_dimension_numbers<[1], [0], [0], [1], [0, 0, 1, 1], [], []>} : vector<2x32xf32>, vector<32x128xf32>, vector<2x128xf32> -> vector<2x128xf32>
    %509 = arith.addf %507, %508 : vector<2x128xf32>
    %510 = vector.extract_strided_slice %350 {offsets = [6, 128], sizes = [2, 128], strides = [1, 1]} : vector<16x256xf32> to vector<2x128xf32>
    %cst_112 = arith.constant dense<0.000000e+00> : vector<2x128xf32>
    %511 = tpu.matmul %506, %346, %cst_112 {dimension_numbers = #tpu.dot_dimension_numbers<[1], [0], [0], [1], [0, 0, 1, 1], [], []>} : vector<2x32xf32>, vector<32x128xf32>, vector<2x128xf32> -> vector<2x128xf32>
    %512 = arith.addf %510, %511 : vector<2x128xf32>
    %513 = vector.extract_strided_slice %509 {offsets = [0, 0], sizes = [2, 96], strides = [1, 1]} : vector<2x128xf32> to vector<2x96xf32>
    %514 = arith.negf %513 : vector<2x96xf32>
    %515 = math.exp %514 : vector<2x96xf32>
    %cst_113 = arith.constant 1.000000e+00 : f32
    %516 = vector.broadcast %cst_113 : f32 to vector<2x96xf32>
    %517 = arith.addf %516, %515 : vector<2x96xf32>
    %518 = arith.divf %516, %517 : vector<2x96xf32>
    %519 = vector.extract_strided_slice %509 {offsets = [0, 96], sizes = [2, 32], strides = [1, 1]} : vector<2x128xf32> to vector<2x32xf32>
    %520 = math.tanh %519 : vector<2x32xf32>
    %521 = vector.extract_strided_slice %518 {offsets = [0, 0], sizes = [2, 32], strides = [1, 1]} : vector<2x96xf32> to vector<2x32xf32>
    %522 = vector.extract_strided_slice %518 {offsets = [0, 32], sizes = [2, 32], strides = [1, 1]} : vector<2x96xf32> to vector<2x32xf32>
    %523 = vector.extract_strided_slice %518 {offsets = [0, 64], sizes = [2, 32], strides = [1, 1]} : vector<2x96xf32> to vector<2x32xf32>
    %524 = arith.mulf %522, %488 : vector<2x32xf32>
    %525 = arith.mulf %521, %520 : vector<2x32xf32>
    %526 = arith.addf %524, %525 : vector<2x32xf32>
    %527 = math.tanh %526 : vector<2x32xf32>
    %528 = arith.mulf %523, %527 : vector<2x32xf32>
    %529 = vector.extract_strided_slice %512 {offsets = [0, 0], sizes = [2, 96], strides = [1, 1]} : vector<2x128xf32> to vector<2x96xf32>
    %530 = arith.negf %529 : vector<2x96xf32>
    %531 = math.exp %530 : vector<2x96xf32>
    %cst_114 = arith.constant 1.000000e+00 : f32
    %532 = vector.broadcast %cst_114 : f32 to vector<2x96xf32>
    %533 = arith.addf %532, %531 : vector<2x96xf32>
    %534 = arith.divf %532, %533 : vector<2x96xf32>
    %535 = vector.extract_strided_slice %512 {offsets = [0, 96], sizes = [2, 32], strides = [1, 1]} : vector<2x128xf32> to vector<2x32xf32>
    %536 = math.tanh %535 : vector<2x32xf32>
    %537 = vector.extract_strided_slice %534 {offsets = [0, 0], sizes = [2, 32], strides = [1, 1]} : vector<2x96xf32> to vector<2x32xf32>
    %538 = vector.extract_strided_slice %534 {offsets = [0, 32], sizes = [2, 32], strides = [1, 1]} : vector<2x96xf32> to vector<2x32xf32>
    %539 = vector.extract_strided_slice %534 {offsets = [0, 64], sizes = [2, 32], strides = [1, 1]} : vector<2x96xf32> to vector<2x32xf32>
    %540 = arith.mulf %538, %504 : vector<2x32xf32>
    %541 = arith.mulf %537, %536 : vector<2x32xf32>
    %542 = arith.addf %540, %541 : vector<2x32xf32>
    %543 = math.tanh %542 : vector<2x32xf32>
    %544 = arith.mulf %539, %543 : vector<2x32xf32>
    %545 = vector.extract_strided_slice %350 {offsets = [10, 0], sizes = [2, 128], strides = [1, 1]} : vector<16x256xf32> to vector<2x128xf32>
    %cst_115 = arith.constant dense<0.000000e+00> : vector<2x128xf32>
    %546 = tpu.matmul %528, %345, %cst_115 {dimension_numbers = #tpu.dot_dimension_numbers<[1], [0], [0], [1], [0, 0, 1, 1], [], []>} : vector<2x32xf32>, vector<32x128xf32>, vector<2x128xf32> -> vector<2x128xf32>
    %547 = arith.addf %545, %546 : vector<2x128xf32>
    %548 = vector.extract_strided_slice %350 {offsets = [4, 128], sizes = [2, 128], strides = [1, 1]} : vector<16x256xf32> to vector<2x128xf32>
    %cst_116 = arith.constant dense<0.000000e+00> : vector<2x128xf32>
    %549 = tpu.matmul %544, %346, %cst_116 {dimension_numbers = #tpu.dot_dimension_numbers<[1], [0], [0], [1], [0, 0, 1, 1], [], []>} : vector<2x32xf32>, vector<32x128xf32>, vector<2x128xf32> -> vector<2x128xf32>
    %550 = arith.addf %548, %549 : vector<2x128xf32>
    %551 = vector.extract_strided_slice %547 {offsets = [0, 0], sizes = [2, 96], strides = [1, 1]} : vector<2x128xf32> to vector<2x96xf32>
    %552 = arith.negf %551 : vector<2x96xf32>
    %553 = math.exp %552 : vector<2x96xf32>
    %cst_117 = arith.constant 1.000000e+00 : f32
    %554 = vector.broadcast %cst_117 : f32 to vector<2x96xf32>
    %555 = arith.addf %554, %553 : vector<2x96xf32>
    %556 = arith.divf %554, %555 : vector<2x96xf32>
    %557 = vector.extract_strided_slice %547 {offsets = [0, 96], sizes = [2, 32], strides = [1, 1]} : vector<2x128xf32> to vector<2x32xf32>
    %558 = math.tanh %557 : vector<2x32xf32>
    %559 = vector.extract_strided_slice %556 {offsets = [0, 0], sizes = [2, 32], strides = [1, 1]} : vector<2x96xf32> to vector<2x32xf32>
    %560 = vector.extract_strided_slice %556 {offsets = [0, 32], sizes = [2, 32], strides = [1, 1]} : vector<2x96xf32> to vector<2x32xf32>
    %561 = vector.extract_strided_slice %556 {offsets = [0, 64], sizes = [2, 32], strides = [1, 1]} : vector<2x96xf32> to vector<2x32xf32>
    %562 = arith.mulf %560, %526 : vector<2x32xf32>
    %563 = arith.mulf %559, %558 : vector<2x32xf32>
    %564 = arith.addf %562, %563 : vector<2x32xf32>
    %565 = math.tanh %564 : vector<2x32xf32>
    %566 = arith.mulf %561, %565 : vector<2x32xf32>
    %567 = vector.extract_strided_slice %550 {offsets = [0, 0], sizes = [2, 96], strides = [1, 1]} : vector<2x128xf32> to vector<2x96xf32>
    %568 = arith.negf %567 : vector<2x96xf32>
    %569 = math.exp %568 : vector<2x96xf32>
    %cst_118 = arith.constant 1.000000e+00 : f32
    %570 = vector.broadcast %cst_118 : f32 to vector<2x96xf32>
    %571 = arith.addf %570, %569 : vector<2x96xf32>
    %572 = arith.divf %570, %571 : vector<2x96xf32>
    %573 = vector.extract_strided_slice %550 {offsets = [0, 96], sizes = [2, 32], strides = [1, 1]} : vector<2x128xf32> to vector<2x32xf32>
    %574 = math.tanh %573 : vector<2x32xf32>
    %575 = vector.extract_strided_slice %572 {offsets = [0, 0], sizes = [2, 32], strides = [1, 1]} : vector<2x96xf32> to vector<2x32xf32>
    %576 = vector.extract_strided_slice %572 {offsets = [0, 32], sizes = [2, 32], strides = [1, 1]} : vector<2x96xf32> to vector<2x32xf32>
    %577 = vector.extract_strided_slice %572 {offsets = [0, 64], sizes = [2, 32], strides = [1, 1]} : vector<2x96xf32> to vector<2x32xf32>
    %578 = arith.mulf %576, %542 : vector<2x32xf32>
    %579 = arith.mulf %575, %574 : vector<2x32xf32>
    %580 = arith.addf %578, %579 : vector<2x32xf32>
    %581 = math.tanh %580 : vector<2x32xf32>
    %582 = arith.mulf %577, %581 : vector<2x32xf32>
    %583 = vector.extract_strided_slice %350 {offsets = [12, 0], sizes = [2, 128], strides = [1, 1]} : vector<16x256xf32> to vector<2x128xf32>
    %cst_119 = arith.constant dense<0.000000e+00> : vector<2x128xf32>
    %584 = tpu.matmul %566, %345, %cst_119 {dimension_numbers = #tpu.dot_dimension_numbers<[1], [0], [0], [1], [0, 0, 1, 1], [], []>} : vector<2x32xf32>, vector<32x128xf32>, vector<2x128xf32> -> vector<2x128xf32>
    %585 = arith.addf %583, %584 : vector<2x128xf32>
    %586 = vector.extract_strided_slice %350 {offsets = [2, 128], sizes = [2, 128], strides = [1, 1]} : vector<16x256xf32> to vector<2x128xf32>
    %cst_120 = arith.constant dense<0.000000e+00> : vector<2x128xf32>
    %587 = tpu.matmul %582, %346, %cst_120 {dimension_numbers = #tpu.dot_dimension_numbers<[1], [0], [0], [1], [0, 0, 1, 1], [], []>} : vector<2x32xf32>, vector<32x128xf32>, vector<2x128xf32> -> vector<2x128xf32>
    %588 = arith.addf %586, %587 : vector<2x128xf32>
    %589 = vector.extract_strided_slice %585 {offsets = [0, 0], sizes = [2, 96], strides = [1, 1]} : vector<2x128xf32> to vector<2x96xf32>
    %590 = arith.negf %589 : vector<2x96xf32>
    %591 = math.exp %590 : vector<2x96xf32>
    %cst_121 = arith.constant 1.000000e+00 : f32
    %592 = vector.broadcast %cst_121 : f32 to vector<2x96xf32>
    %593 = arith.addf %592, %591 : vector<2x96xf32>
    %594 = arith.divf %592, %593 : vector<2x96xf32>
    %595 = vector.extract_strided_slice %585 {offsets = [0, 96], sizes = [2, 32], strides = [1, 1]} : vector<2x128xf32> to vector<2x32xf32>
    %596 = math.tanh %595 : vector<2x32xf32>
    %597 = vector.extract_strided_slice %594 {offsets = [0, 0], sizes = [2, 32], strides = [1, 1]} : vector<2x96xf32> to vector<2x32xf32>
    %598 = vector.extract_strided_slice %594 {offsets = [0, 32], sizes = [2, 32], strides = [1, 1]} : vector<2x96xf32> to vector<2x32xf32>
    %599 = vector.extract_strided_slice %594 {offsets = [0, 64], sizes = [2, 32], strides = [1, 1]} : vector<2x96xf32> to vector<2x32xf32>
    %600 = arith.mulf %598, %564 : vector<2x32xf32>
    %601 = arith.mulf %597, %596 : vector<2x32xf32>
    %602 = arith.addf %600, %601 : vector<2x32xf32>
    %603 = math.tanh %602 : vector<2x32xf32>
    %604 = arith.mulf %599, %603 : vector<2x32xf32>
    %605 = vector.extract_strided_slice %588 {offsets = [0, 0], sizes = [2, 96], strides = [1, 1]} : vector<2x128xf32> to vector<2x96xf32>
    %606 = arith.negf %605 : vector<2x96xf32>
    %607 = math.exp %606 : vector<2x96xf32>
    %cst_122 = arith.constant 1.000000e+00 : f32
    %608 = vector.broadcast %cst_122 : f32 to vector<2x96xf32>
    %609 = arith.addf %608, %607 : vector<2x96xf32>
    %610 = arith.divf %608, %609 : vector<2x96xf32>
    %611 = vector.extract_strided_slice %588 {offsets = [0, 96], sizes = [2, 32], strides = [1, 1]} : vector<2x128xf32> to vector<2x32xf32>
    %612 = math.tanh %611 : vector<2x32xf32>
    %613 = vector.extract_strided_slice %610 {offsets = [0, 0], sizes = [2, 32], strides = [1, 1]} : vector<2x96xf32> to vector<2x32xf32>
    %614 = vector.extract_strided_slice %610 {offsets = [0, 32], sizes = [2, 32], strides = [1, 1]} : vector<2x96xf32> to vector<2x32xf32>
    %615 = vector.extract_strided_slice %610 {offsets = [0, 64], sizes = [2, 32], strides = [1, 1]} : vector<2x96xf32> to vector<2x32xf32>
    %616 = arith.mulf %614, %580 : vector<2x32xf32>
    %617 = arith.mulf %613, %612 : vector<2x32xf32>
    %618 = arith.addf %616, %617 : vector<2x32xf32>
    %619 = math.tanh %618 : vector<2x32xf32>
    %620 = arith.mulf %615, %619 : vector<2x32xf32>
    %621 = vector.extract_strided_slice %350 {offsets = [14, 0], sizes = [2, 128], strides = [1, 1]} : vector<16x256xf32> to vector<2x128xf32>
    %cst_123 = arith.constant dense<0.000000e+00> : vector<2x128xf32>
    %622 = tpu.matmul %604, %345, %cst_123 {dimension_numbers = #tpu.dot_dimension_numbers<[1], [0], [0], [1], [0, 0, 1, 1], [], []>} : vector<2x32xf32>, vector<32x128xf32>, vector<2x128xf32> -> vector<2x128xf32>
    %623 = arith.addf %621, %622 : vector<2x128xf32>
    %624 = vector.extract_strided_slice %350 {offsets = [0, 128], sizes = [2, 128], strides = [1, 1]} : vector<16x256xf32> to vector<2x128xf32>
    %cst_124 = arith.constant dense<0.000000e+00> : vector<2x128xf32>
    %625 = tpu.matmul %620, %346, %cst_124 {dimension_numbers = #tpu.dot_dimension_numbers<[1], [0], [0], [1], [0, 0, 1, 1], [], []>} : vector<2x32xf32>, vector<32x128xf32>, vector<2x128xf32> -> vector<2x128xf32>
    %626 = arith.addf %624, %625 : vector<2x128xf32>
    %627 = vector.extract_strided_slice %623 {offsets = [0, 0], sizes = [2, 96], strides = [1, 1]} : vector<2x128xf32> to vector<2x96xf32>
    %628 = arith.negf %627 : vector<2x96xf32>
    %629 = math.exp %628 : vector<2x96xf32>
    %cst_125 = arith.constant 1.000000e+00 : f32
    %630 = vector.broadcast %cst_125 : f32 to vector<2x96xf32>
    %631 = arith.addf %630, %629 : vector<2x96xf32>
    %632 = arith.divf %630, %631 : vector<2x96xf32>
    %633 = vector.extract_strided_slice %623 {offsets = [0, 96], sizes = [2, 32], strides = [1, 1]} : vector<2x128xf32> to vector<2x32xf32>
    %634 = math.tanh %633 : vector<2x32xf32>
    %635 = vector.extract_strided_slice %632 {offsets = [0, 0], sizes = [2, 32], strides = [1, 1]} : vector<2x96xf32> to vector<2x32xf32>
    %636 = vector.extract_strided_slice %632 {offsets = [0, 32], sizes = [2, 32], strides = [1, 1]} : vector<2x96xf32> to vector<2x32xf32>
    %637 = vector.extract_strided_slice %632 {offsets = [0, 64], sizes = [2, 32], strides = [1, 1]} : vector<2x96xf32> to vector<2x32xf32>
    %638 = arith.mulf %636, %602 : vector<2x32xf32>
    %639 = arith.mulf %635, %634 : vector<2x32xf32>
    %640 = arith.addf %638, %639 : vector<2x32xf32>
    %641 = math.tanh %640 : vector<2x32xf32>
    %642 = arith.mulf %637, %641 : vector<2x32xf32>
    %643 = vector.extract_strided_slice %626 {offsets = [0, 0], sizes = [2, 96], strides = [1, 1]} : vector<2x128xf32> to vector<2x96xf32>
    %644 = arith.negf %643 : vector<2x96xf32>
    %645 = math.exp %644 : vector<2x96xf32>
    %cst_126 = arith.constant 1.000000e+00 : f32
    %646 = vector.broadcast %cst_126 : f32 to vector<2x96xf32>
    %647 = arith.addf %646, %645 : vector<2x96xf32>
    %648 = arith.divf %646, %647 : vector<2x96xf32>
    %649 = vector.extract_strided_slice %626 {offsets = [0, 96], sizes = [2, 32], strides = [1, 1]} : vector<2x128xf32> to vector<2x32xf32>
    %650 = math.tanh %649 : vector<2x32xf32>
    %651 = vector.extract_strided_slice %648 {offsets = [0, 0], sizes = [2, 32], strides = [1, 1]} : vector<2x96xf32> to vector<2x32xf32>
    %652 = vector.extract_strided_slice %648 {offsets = [0, 32], sizes = [2, 32], strides = [1, 1]} : vector<2x96xf32> to vector<2x32xf32>
    %653 = vector.extract_strided_slice %648 {offsets = [0, 64], sizes = [2, 32], strides = [1, 1]} : vector<2x96xf32> to vector<2x32xf32>
    %654 = arith.mulf %652, %618 : vector<2x32xf32>
    %655 = arith.mulf %651, %650 : vector<2x32xf32>
    %656 = arith.addf %654, %655 : vector<2x32xf32>
    %657 = math.tanh %656 : vector<2x32xf32>
    %658 = arith.mulf %653, %657 : vector<2x32xf32>
    %c4_127 = arith.constant 4 : index
    %c0_128 = arith.constant 0 : index
    %659 = vector.load %arg10[%c4_127, %c0_128] : memref<8x32xf32, #tpu.memory_space<vmem>>, vector<2x32xf32>
    tpu.vector_store %arg10[%c4_127, %c0_128], %642 {strides = array<i32>} : memref<8x32xf32, #tpu.memory_space<vmem>>, vector<2x32xf32>,
    %c6_129 = arith.constant 6 : index
    %c0_130 = arith.constant 0 : index
    %660 = vector.load %arg10[%c6_129, %c0_130] : memref<8x32xf32, #tpu.memory_space<vmem>>, vector<2x32xf32>
    tpu.vector_store %arg10[%c6_129, %c0_130], %658 {strides = array<i32>} : memref<8x32xf32, #tpu.memory_space<vmem>>, vector<2x32xf32>,
    %c4_131 = arith.constant 4 : index
    %c0_132 = arith.constant 0 : index
    %661 = vector.load %arg11[%c4_131, %c0_132] : memref<8x32xf32, #tpu.memory_space<vmem>>, vector<2x32xf32>
    tpu.vector_store %arg11[%c4_131, %c0_132], %640 {strides = array<i32>} : memref<8x32xf32, #tpu.memory_space<vmem>>, vector<2x32xf32>,
    %c6_133 = arith.constant 6 : index
    %c0_134 = arith.constant 0 : index
    %662 = vector.load %arg11[%c6_133, %c0_134] : memref<8x32xf32, #tpu.memory_space<vmem>>, vector<2x32xf32>
    tpu.vector_store %arg11[%c6_133, %c0_134], %656 {strides = array<i32>} : memref<8x32xf32, #tpu.memory_space<vmem>>, vector<2x32xf32>,
    return
  }
}

</mosaic_0001>

<llo_original>
// kernel: encoder_rnn_forward.1
$region0: #{encoder_rnn_forward.1}
  #allocation0 [shape = 'u32[]', space=smem, size = 0x4, offset = 0x4, fixed_abs, tag = 'smem constant byte address 0x4 - core index']
  #allocation1 [shape = 'u32[144,128]{1,0:T(1,128)}', space=vmem, size = 0x12000, scoped, tag = 'internal scratch']
  #allocation2 [shape = 'f32[16,64]{1,0:T(8,128)}', space=vmem, size = 0x2000, scoped, tag = 'scratch operand']
  %s0 = inlined_call_operand.vmem [shape: s32[16,1], index: 0, kind: input, shape index: {}]
  %s1 = inlined_call_operand.vmem [shape: f32[50,16], index: 1, kind: input, shape index: {}]
  %s2 = inlined_call_operand.hbm [shape: f32[16,256], index: 2, kind: input, shape index: {}]
  %s3 = inlined_call_operand.hbm [shape: f32[32,128], index: 3, kind: input, shape index: {}]
  %s4 = inlined_call_operand.hbm [shape: f32[32,128], index: 4, kind: input, shape index: {}]
  %s5 = inlined_call_operand.vmem [shape: f32[1,256], index: 5, kind: input, shape index: {}]
  %s6 = inlined_call_operand.vmem [shape: f32[64,256], index: 6, kind: input, shape index: {}]
  %s7 = inlined_call_operand.hbm [shape: f32[32,128], index: 7, kind: input, shape index: {}]
  %s8 = inlined_call_operand.hbm [shape: f32[32,128], index: 8, kind: input, shape index: {}]
  %s9 = inlined_call_operand.vmem [shape: f32[1,256], index: 9, kind: input, shape index: {}]
  %s10 = inlined_call_operand.hbm [shape: f32[8,32], index: 10, kind: output, shape index: {0}]
  %s11 = inlined_call_operand.hbm [shape: f32[8,32], index: 11, kind: output, shape index: {1}]
  %12 = xla_tuple %s10, %s11
  %s13 = sld [smem:[#allocation0]]
  $region78: #{encoder_rnn_forward.1} parent=0
    _
  %s15 = ssub.s32 1, %s13
  %s16 = scalar_select 0, %s15, %s13
  $region1: #{encoder_rnn_forward.1} parent=0
    #allocation3 [shape = 'u8[16384]{0}', space=vmem, size = 0x4000, scoped, tag = 'input window, operand 2, single buffered']
    #allocation4 [shape = 's32[1]{0}', space=sflag, size = 0x4, scoped, tag = 'scoped memory for encoder_rnn_forward.1']
    #allocation5 [shape = 's32[1]{0}', space=sflag, size = 0x4, scoped, tag = 'scoped memory for encoder_rnn_forward.1']
    #allocation6 [shape = 'u8[16384]{0}', space=vmem, size = 0x4000, scoped, tag = 'input window, operand 3, single buffered']
    #allocation7 [shape = 's32[1]{0}', space=sflag, size = 0x4, scoped, tag = 'scoped memory for encoder_rnn_forward.1']
    #allocation8 [shape = 'u8[16384]{0}', space=vmem, size = 0x4000, scoped, tag = 'input window, operand 4, single buffered']
    #allocation9 [shape = 'u8[16384]{0}', space=vmem, size = 0x4000, scoped, tag = 'input window, operand 7, single buffered']
    #allocation10 [shape = 's32[1]{0}', space=sflag, size = 0x4, scoped, tag = 'scoped memory for encoder_rnn_forward.1']
    #allocation11 [shape = 'u8[16384]{0}', space=vmem, size = 0x4000, scoped, tag = 'input window, operand 8, single buffered']
    #allocation12 [shape = 'u8[4096]{0}', space=vmem, size = 0x1000, scoped, tag = 'output window, operand 0, single buffered']
    #allocation13 [shape = 'u8[4096]{0}', space=vmem, size = 0x1000, scoped, tag = 'output window, operand 1, single buffered']
    #allocation14 [shape = 's32[1]{0}', space=sflag, size = 0x4, scoped, tag = 'scoped memory for encoder_rnn_forward.1']
    %17 = vsyncpa [#allocation4], 0
    %18 = vsyncpa [#allocation7], 0
    %19 = vsyncpa [#allocation10], 0
    %20 = vsyncpa [#allocation5], 0
    %21 = vsyncpa [#allocation14], 0
    // Predicated region
    $region2: #{encoder_rnn_forward.1} parent=1 // pred_check
      _
    $region3: #{encoder_rnn_forward.1} parent=1 // pred_check_branch
      %23 = sbr.rel (0) target = $region5
    $region4: #{encoder_rnn_forward.1} parent=1 // pred_region
      _
    $region5: #{encoder_rnn_forward.1} parent=1 // pred_fallthru
      _
    // Predicated region
    $region6: #{encoder_rnn_forward.1} parent=1 // pred_check
      _
    $region7: #{encoder_rnn_forward.1} parent=1 // pred_check_branch
      %25 = sbr.rel (0) target = $region9
    $region8: #{encoder_rnn_forward.1} parent=1 // pred_region
      _
    $region9: #{encoder_rnn_forward.1} parent=1 // pred_fallthru
      _
    // Predicated region
    $region10: #{encoder_rnn_forward.1} parent=1 // pred_check
      _
    $region11: #{encoder_rnn_forward.1} parent=1 // pred_check_branch
      %27 = sbr.rel (0) target = $region13
    $region12: #{encoder_rnn_forward.1} parent=1 // pred_region
      %s29 = ssub.s32 512, 512
      %30 = vsyncadd [#allocation4], %s29
      %s31 = sshll.u32 [#allocation3], 4
      %s32 = int_to_ptr.vmem [resolvable:$true] %s31
      %37 = dma.hbm_to_vmem [thread:$0]  %s2, 512, %s32, [#allocation4], 256, 256, 16
    $region13: #{encoder_rnn_forward.1} parent=1 // pred_fallthru
      _
    // Predicated region
    $region14: #{encoder_rnn_forward.1} parent=1 // pred_check
      _
    $region15: #{encoder_rnn_forward.1} parent=1 // pred_check_branch
      %39 = sbr.rel (0) target = $region17
    $region16: #{encoder_rnn_forward.1} parent=1 // pred_region
      %s41 = ssub.s32 512, 512
      %42 = vsyncadd [#allocation7], %s41
      %s43 = sshll.u32 [#allocation6], 4
      %s44 = int_to_ptr.vmem [resolvable:$true] %s43
      %49 = dma.hbm_to_vmem [thread:$0]  %s3, 512, %s44, [#allocation7], 128, 128, 8
    $region17: #{encoder_rnn_forward.1} parent=1 // pred_fallthru
      _
    // Predicated region
    $region18: #{encoder_rnn_forward.1} parent=1 // pred_check
      _
    $region19: #{encoder_rnn_forward.1} parent=1 // pred_check_branch
      %51 = sbr.rel (0) target = $region21
    $region20: #{encoder_rnn_forward.1} parent=1 // pred_region
      %s53 = ssub.s32 512, 512
      %54 = vsyncadd [#allocation7], %s53
      %s55 = sshll.u32 [#allocation8], 4
      %s56 = int_to_ptr.vmem [resolvable:$true] %s55
      %61 = dma.hbm_to_vmem [thread:$0]  %s4, 512, %s56, [#allocation7], 128, 128, 8
    $region21: #{encoder_rnn_forward.1} parent=1 // pred_fallthru
      _
    // Predicated region
    $region22: #{encoder_rnn_forward.1} parent=1 // pred_check
      _
    $region23: #{encoder_rnn_forward.1} parent=1 // pred_check_branch
      %63 = sbr.rel (0) target = $region25
    $region24: #{encoder_rnn_forward.1} parent=1 // pred_region
      _
    $region25: #{encoder_rnn_forward.1} parent=1 // pred_fallthru
      _
    // Predicated region
    $region26: #{encoder_rnn_forward.1} parent=1 // pred_check
      _
    $region27: #{encoder_rnn_forward.1} parent=1 // pred_check_branch
      %65 = sbr.rel (0) target = $region29
    $region28: #{encoder_rnn_forward.1} parent=1 // pred_region
      _
    $region29: #{encoder_rnn_forward.1} parent=1 // pred_fallthru
      _
    // Predicated region
    $region30: #{encoder_rnn_forward.1} parent=1 // pred_check
      _
    $region31: #{encoder_rnn_forward.1} parent=1 // pred_check_branch
      %67 = sbr.rel (0) target = $region33
    $region32: #{encoder_rnn_forward.1} parent=1 // pred_region
      %s69 = ssub.s32 512, 512
      %70 = vsyncadd [#allocation10], %s69
      %s71 = sshll.u32 [#allocation9], 4
      %s72 = int_to_ptr.vmem [resolvable:$true] %s71
      %77 = dma.hbm_to_vmem [thread:$0]  %s7, 512, %s72, [#allocation10], 128, 128, 8
    $region33: #{encoder_rnn_forward.1} parent=1 // pred_fallthru
      _
    // Predicated region
    $region34: #{encoder_rnn_forward.1} parent=1 // pred_check
      _
    $region35: #{encoder_rnn_forward.1} parent=1 // pred_check_branch
      %79 = sbr.rel (0) target = $region37
    $region36: #{encoder_rnn_forward.1} parent=1 // pred_region
      %s81 = ssub.s32 512, 512
      %82 = vsyncadd [#allocation10], %s81
      %s83 = sshll.u32 [#allocation11], 4
      %s84 = int_to_ptr.vmem [resolvable:$true] %s83
      %89 = dma.hbm_to_vmem [thread:$0]  %s8, 512, %s84, [#allocation10], 128, 128, 8
    $region37: #{encoder_rnn_forward.1} parent=1 // pred_fallthru
      _
    // Predicated region
    $region38: #{encoder_rnn_forward.1} parent=1 // pred_check
      _
    $region39: #{encoder_rnn_forward.1} parent=1 // pred_check_branch
      %91 = sbr.rel (0) target = $region41
    $region40: #{encoder_rnn_forward.1} parent=1 // pred_region
      _
    $region41: #{encoder_rnn_forward.1} parent=1 // pred_fallthru
      _
    // Predicated region
    $region42: #{encoder_rnn_forward.1} parent=1 // pred_check
      _
    $region43: #{encoder_rnn_forward.1} parent=1 // pred_check_branch
      %93 = sbr.rel (0) target = $region45
    $region44: #{encoder_rnn_forward.1} parent=1 // pred_region
      %94 = dma.done [#allocation4], 512
    $region45: #{encoder_rnn_forward.1} parent=1 // pred_fallthru
      _
    // Predicated region
    $region46: #{encoder_rnn_forward.1} parent=1 // pred_check
      _
    $region47: #{encoder_rnn_forward.1} parent=1 // pred_check_branch
      %96 = sbr.rel (0) target = $region49
    $region48: #{encoder_rnn_forward.1} parent=1 // pred_region
      %97 = dma.done [#allocation7], 512
    $region49: #{encoder_rnn_forward.1} parent=1 // pred_fallthru
      _
    // Predicated region
    $region50: #{encoder_rnn_forward.1} parent=1 // pred_check
      _
    $region51: #{encoder_rnn_forward.1} parent=1 // pred_check_branch
      %99 = sbr.rel (0) target = $region53
    $region52: #{encoder_rnn_forward.1} parent=1 // pred_region
      %100 = dma.done [#allocation7], 512
    $region53: #{encoder_rnn_forward.1} parent=1 // pred_fallthru
      _
    // Predicated region
    $region54: #{encoder_rnn_forward.1} parent=1 // pred_check
      _
    $region55: #{encoder_rnn_forward.1} parent=1 // pred_check_branch
      %102 = sbr.rel (0) target = $region57
    $region56: #{encoder_rnn_forward.1} parent=1 // pred_region
      %103 = dma.done [#allocation10], 512
    $region57: #{encoder_rnn_forward.1} parent=1 // pred_fallthru
      _
    // Predicated region
    $region58: #{encoder_rnn_forward.1} parent=1 // pred_check
      _
    $region59: #{encoder_rnn_forward.1} parent=1 // pred_check_branch
      %105 = sbr.rel (0) target = $region61
    $region60: #{encoder_rnn_forward.1} parent=1 // pred_region
      %106 = dma.done [#allocation10], 512
    $region61: #{encoder_rnn_forward.1} parent=1 // pred_fallthru
      _
    %v107 = vld [vmem:[%s0] sm:$0xff]
    %v108 = vld [vmem:[%s0 + $0x8] sm:$0xff]
    %v109 = vlaneseq
    %v110 = vand.u32 %v109, 127
    %111 = vset.pattern.permute.xlu0 0
    %112 = vperm.xlu0 %111, %v107
    %v113 = vpop.permute.xlu0 %112
    %114 = vset.pattern.permute.xlu0 0
    %115 = vperm.xlu0 %114, %v108
    %v116 = vpop.permute.xlu0 %115
    %vm117 = vcmp.eq.s32.totalorder %v113, %v110
    %vm118 = vcmp.eq.s32.totalorder %v116, %v110
    %v119 = vsel %vm117, 1, 0
    %v120 = vsel %vm118, 1, 0
    %v121 = vcvt.s32.f32 %v119
    %v122 = vcvt.s32.f32 %v120
    %v123 = vld [vmem:[%s1] sm:$0xff]
    %v124 = vld [vmem:[%s1 + $0x8] sm:$0xff]
    %v125 = vld [vmem:[%s1 + $0x10] sm:$0xff]
    %v126 = vld [vmem:[%s1 + $0x18] sm:$0xff]
    %v127 = vld [vmem:[%s1 + $0x20] sm:$0xff]
    %v128 = vld [vmem:[%s1 + $0x28] sm:$0xff]
    %v129 = vld [vmem:[%s1 + $0x30] sm:$0x3]
    %vm130 = vcmask 408576
    %v132 = vsel %vm130, %v121, 0
    %v135 = vsel %vm130, %v122, 0
    %vm137 = vcmask 1041408
    %v139 = vsel %vm137, %v129, 0
    %141 = vmatprep.subr.mxu0 0.0
    %142 = vmatpush1.msra.mxu0 %v123
    %143 = vmatprep.subr.mxu0 0.0
    %144 = vmatpush1.msra.mxu0 %v124
    %145 = vmatprep.subr.mxu0 0.0
    %146 = vmatpush1.msra.mxu0 %v125
    %147 = vmatprep.subr.mxu0 0.0
    %148 = vmatpush1.msra.mxu0 %v126
    %149 = vmatprep.subr.mxu0 0.0
    %150 = vmatpush1.msra.mxu0 %v127
    %151 = vmatprep.subr.mxu0 0.0
    %152 = vmatpush1.msra.mxu0 %v128
    %153 = vmatprep.subr.mxu0 0.0
    %154 = vmatpush1.msra.mxu0 %v139
    %155 = vmatprep.subr.mxu0 0.0
    %156 = vmatpush1.msra.mxu0 0.0
    %157 = vmatprep.subr.mxu0 0.0
    %158 = vmatpush1.msra.mxu0 0.0
    %159 = vmatprep.subr.mxu0 0.0
    %160 = vmatpush1.msra.mxu0 0.0
    %161 = vmatprep.subr.mxu0 0.0
    %162 = vmatpush1.msra.mxu0 0.0
    %163 = vmatprep.subr.mxu0 0.0
    %164 = vmatpush1.msra.mxu0 0.0
    %165 = vmatprep.subr.mxu0 0.0
    %166 = vmatpush1.msra.mxu0 0.0
    %167 = vmatprep.subr.mxu0 0.0
    %168 = vmatpush1.msra.mxu0 0.0
    %169 = vmatprep.subr.mxu0 0.0
    %170 = vmatpush1.msra.mxu0 0.0
    %171 = vmatprep.subr.mxu0 0.0
    %172 = vmatpush1.msra.mxu0 0.0
    %173 = vmatprep.subr.mxu0 0.0
    %174 = vmatpush1.msra.mxu0 0.0
    %175 = vmatprep.subr.mxu0 0.0
    %176 = vmatpush1.msra.mxu0 0.0
    %177 = vmatprep.subr.mxu0 0.0
    %178 = vmatpush1.msra.mxu0 0.0
    %179 = vmatprep.subr.mxu0 0.0
    %180 = vmatpush1.msra.mxu0 0.0
    %181 = vmatprep.subr.mxu0 0.0
    %182 = vmatpush1.msra.mxu0 0.0
    %183 = vmatprep.subr.mxu0 0.0
    %184 = vmatpush1.msra.mxu0 0.0
    %185 = vmatprep.subr.mxu0 0.0
    %186 = vmatpush1.msra.mxu0 0.0
    %187 = vmatprep.subr.mxu0 0.0
    %188 = vmatpush1.msra.mxu0 0.0
    %189 = vmatprep.subr.mxu0 0.0
    %190 = vmatpush1.msra.mxu0 0.0
    %191 = vmatprep.subr.mxu0 0.0
    %192 = vmatpush1.msra.mxu0 0.0
    %193 = vmatprep.subr.mxu0 0.0
    %194 = vmatpush1.msra.mxu0 0.0
    %195 = vmatprep.subr.mxu0 0.0
    %196 = vmatpush1.msra.mxu0 0.0
    %197 = vmatprep.subr.mxu0 0.0
    %198 = vmatpush1.msra.mxu0 0.0
    %199 = vmatprep.subr.mxu0 0.0
    %200 = vmatpush1.msra.mxu0 0.0
    %201 = vmatprep.subr.mxu0 0.0
    %202 = vmatpush1.msra.mxu0 0.0
    %203 = vmatprep.subr.mxu0 0.0
    %204 = vmatpush1.msra.mxu0 0.0
    %205 = vmatprep.mubr.f32.mxu0 0.0
    %206 = vmatmul.mubr.f32.gmra.mrb[0].mxu0 %v132
    %v207 = vpop.f32.mrb[0].mxu0
    %v208 = vadd.f32 0.0, %v207
    %v209 = vpop.f32.mrb[0].mxu0
    %210 = vmatprep.mubr.f32.mxu0 0.0
    %211 = vmatmul.mubr.f32.gmra.mrb[0].mxu0 %v135
    %v212 = vpop.f32.mrb[0].mxu0
    %v213 = vadd.f32 0.0, %v212
    %v214 = vpop.f32.mrb[0].mxu0
    %215 = vdwg.mxu0
    %v216 = vld [vmem:[#allocation3] sm:$0xff]
    %v217 = vld [vmem:[#allocation3 + $0x8] sm:$0xff]
    %v218 = vld [vmem:[#allocation3 + $0x10] sm:$0xff]
    %v219 = vld [vmem:[#allocation3 + $0x18] sm:$0xff]
    %v220 = vld [vmem:[#allocation6] sm:$0xff]
    %v221 = vld [vmem:[#allocation6 + $0x8] sm:$0xff]
    %v222 = vld [vmem:[#allocation6 + $0x10] sm:$0xff]
    %v223 = vld [vmem:[#allocation6 + $0x18] sm:$0xff]
    %v224 = vld [vmem:[#allocation8] sm:$0xff]
    %v225 = vld [vmem:[#allocation8 + $0x8] sm:$0xff]
    %v226 = vld [vmem:[#allocation8 + $0x10] sm:$0xff]
    %v227 = vld [vmem:[#allocation8 + $0x18] sm:$0xff]
    %v228 = vld [vmem:[%s5] sm:$0x3]
    %v230 = vlaneseq
    %v231 = vshrl.u32 %v230, 7
    %v232 = vsub.s32 0, %v231
    %v233 = vrot.slane %v228, %v232
    %v234 = vlaneseq
    %v235 = vshrl.u32 %v234, 7
    %v236 = vsub.s32 1, %v235
    %v237 = vrot.slane %v228, %v236
    %vm240 = vcmask 130048
    %v242 = vsel %vm240, %v208, 0
    %v245 = vsel %vm240, %v213, 0
    %247 = vmatprep.subr.mxu0 %v217
    %248 = vmatpush1.msra.mxu0 %v216
    %249 = vmatprep.subr.mxu0 %v219
    %250 = vmatpush1.msra.mxu0 %v218
    %251 = vmatprep.subr.mxu0 0.0
    %252 = vmatpush1.msra.mxu0 0.0
    %253 = vmatprep.subr.mxu0 0.0
    %254 = vmatpush1.msra.mxu0 0.0
    %255 = vmatprep.subr.mxu0 0.0
    %256 = vmatpush1.msra.mxu0 0.0
    %257 = vmatprep.subr.mxu0 0.0
    %258 = vmatpush1.msra.mxu0 0.0
    %259 = vmatprep.subr.mxu0 0.0
    %260 = vmatpush1.msra.mxu0 0.0
    %261 = vmatprep.subr.mxu0 0.0
    %262 = vmatpush1.msra.mxu0 0.0
    %263 = vmatprep.subr.mxu0 0.0
    %264 = vmatpush1.msra.mxu0 0.0
    %265 = vmatprep.subr.mxu0 0.0
    %266 = vmatpush1.msra.mxu0 0.0
    %267 = vmatprep.subr.mxu0 0.0
    %268 = vmatpush1.msra.mxu0 0.0
    %269 = vmatprep.subr.mxu0 0.0
    %270 = vmatpush1.msra.mxu0 0.0
    %271 = vmatprep.subr.mxu0 0.0
    %272 = vmatpush1.msra.mxu0 0.0
    %273 = vmatprep.subr.mxu0 0.0
    %274 = vmatpush1.msra.mxu0 0.0
    %275 = vmatprep.subr.mxu0 0.0
    %276 = vmatpush1.msra.mxu0 0.0
    %277 = vmatprep.subr.mxu0 0.0
    %278 = vmatpush1.msra.mxu0 0.0
    %279 = vmatprep.subr.mxu0 0.0
    %280 = vmatpush1.msra.mxu0 0.0
    %281 = vmatprep.subr.mxu0 0.0
    %282 = vmatpush1.msra.mxu0 0.0
    %283 = vmatprep.subr.mxu0 0.0
    %284 = vmatpush1.msra.mxu0 0.0
    %285 = vmatprep.subr.mxu0 0.0
    %286 = vmatpush1.msra.mxu0 0.0
    %287 = vmatprep.subr.mxu0 0.0
    %288 = vmatpush1.msra.mxu0 0.0
    %289 = vmatprep.subr.mxu0 0.0
    %290 = vmatpush1.msra.mxu0 0.0
    %291 = vmatprep.subr.mxu0 0.0
    %292 = vmatpush1.msra.mxu0 0.0
    %293 = vmatprep.subr.mxu0 0.0
    %294 = vmatpush1.msra.mxu0 0.0
    %295 = vmatprep.subr.mxu0 0.0
    %296 = vmatpush1.msra.mxu0 0.0
    %297 = vmatprep.subr.mxu0 0.0
    %298 = vmatpush1.msra.mxu0 0.0
    %299 = vmatprep.subr.mxu0 0.0
    %300 = vmatpush1.msra.mxu0 0.0
    %301 = vmatprep.subr.mxu0 0.0
    %302 = vmatpush1.msra.mxu0 0.0
    %303 = vmatprep.subr.mxu0 0.0
    %304 = vmatpush1.msra.mxu0 0.0
    %305 = vmatprep.subr.mxu0 0.0
    %306 = vmatpush1.msra.mxu0 0.0
    %307 = vmatprep.subr.mxu0 0.0
    %308 = vmatpush1.msra.mxu0 0.0
    %309 = vmatprep.subr.mxu0 0.0
    %310 = vmatpush1.msra.mxu0 0.0
    %311 = vmatprep.mubr.f32.mxu0 0.0
    %312 = vmatmul.mubr.f32.gmra.mrb[0].mxu0 %v242
    %v313 = vpop.f32.mrb[0].mxu0
    %v314 = vadd.f32 %v233, %v313
    %v315 = vpop.f32.mrb[0].mxu0
    %v316 = vadd.f32 %v237, %v315
    %317 = vmatprep.mubr.f32.mxu0 0.0
    %318 = vmatmul.mubr.f32.gmra.mrb[0].mxu0 %v245
    %v319 = vpop.f32.mrb[0].mxu0
    %v320 = vadd.f32 %v233, %v319
    %v321 = vpop.f32.mrb[0].mxu0
    %v322 = vadd.f32 %v237, %v321
    %323 = vdwg.mxu0
    %vm324 = vcmask 261120
    %v326 = vsel %vm324, 0.0, 0
    %328 = vmatprep.subr.mxu0 0.0
    %329 = vmatpush1.msra.mxu0 %v220
    %330 = vmatprep.subr.mxu0 0.0
    %331 = vmatpush1.msra.mxu0 %v221
    %332 = vmatprep.subr.mxu0 0.0
    %333 = vmatpush1.msra.mxu0 %v222
    %334 = vmatprep.subr.mxu0 0.0
    %335 = vmatpush1.msra.mxu0 %v223
    %336 = vmatprep.subr.mxu0 0.0
    %337 = vmatpush1.msra.mxu0 0.0
    %338 = vmatprep.subr.mxu0 0.0
    %339 = vmatpush1.msra.mxu0 0.0
    %340 = vmatprep.subr.mxu0 0.0
    %341 = vmatpush1.msra.mxu0 0.0
    %342 = vmatprep.subr.mxu0 0.0
    %343 = vmatpush1.msra.mxu0 0.0
    %344 = vmatprep.subr.mxu0 0.0
    %345 = vmatpush1.msra.mxu0 0.0
    %346 = vmatprep.subr.mxu0 0.0
    %347 = vmatpush1.msra.mxu0 0.0
    %348 = vmatprep.subr.mxu0 0.0
    %349 = vmatpush1.msra.mxu0 0.0
    %350 = vmatprep.subr.mxu0 0.0
    %351 = vmatpush1.msra.mxu0 0.0
    %352 = vmatprep.subr.mxu0 0.0
    %353 = vmatpush1.msra.mxu0 0.0
    %354 = vmatprep.subr.mxu0 0.0
    %355 = vmatpush1.msra.mxu0 0.0
    %356 = vmatprep.subr.mxu0 0.0
    %357 = vmatpush1.msra.mxu0 0.0
    %358 = vmatprep.subr.mxu0 0.0
    %359 = vmatpush1.msra.mxu0 0.0
    %360 = vmatprep.subr.mxu0 0.0
    %361 = vmatpush1.msra.mxu0 0.0
    %362 = vmatprep.subr.mxu0 0.0
    %363 = vmatpush1.msra.mxu0 0.0
    %364 = vmatprep.subr.mxu0 0.0
    %365 = vmatpush1.msra.mxu0 0.0
    %366 = vmatprep.subr.mxu0 0.0
    %367 = vmatpush1.msra.mxu0 0.0
    %368 = vmatprep.subr.mxu0 0.0
    %369 = vmatpush1.msra.mxu0 0.0
    %370 = vmatprep.subr.mxu0 0.0
    %371 = vmatpush1.msra.mxu0 0.0
    %372 = vmatprep.subr.mxu0 0.0
    %373 = vmatpush1.msra.mxu0 0.0
    %374 = vmatprep.subr.mxu0 0.0
    %375 = vmatpush1.msra.mxu0 0.0
    %376 = vmatprep.subr.mxu0 0.0
    %377 = vmatpush1.msra.mxu0 0.0
    %378 = vmatprep.subr.mxu0 0.0
    %379 = vmatpush1.msra.mxu0 0.0
    %380 = vmatprep.subr.mxu0 0.0
    %381 = vmatpush1.msra.mxu0 0.0
    %382 = vmatprep.subr.mxu0 0.0
    %383 = vmatpush1.msra.mxu0 0.0
    %384 = vmatprep.subr.mxu0 0.0
    %385 = vmatpush1.msra.mxu0 0.0
    %386 = vmatprep.subr.mxu0 0.0
    %387 = vmatpush1.msra.mxu0 0.0
    %388 = vmatprep.subr.mxu0 0.0
    %389 = vmatpush1.msra.mxu0 0.0
    %390 = vmatprep.subr.mxu0 0.0
    %391 = vmatpush1.msra.mxu0 0.0
    %392 = vmatprep.mubr.f32.mxu0 0.0
    %393 = vmatmul.mubr.f32.gmra.mrb[0].mxu0 %v326
    %v394 = vpop.f32.mrb[0].mxu0
    %v395 = vadd.f32 0.0, %v394
    %v396 = vpop.f32.mrb[0].mxu0
    %397 = vdwg.mxu0
    %v398 = vadd.f32 %v314, %v395
    %399 = vmatprep.subr.mxu0 0.0
    %400 = vmatpush1.msra.mxu0 %v224
    %401 = vmatprep.subr.mxu0 0.0
    %402 = vmatpush1.msra.mxu0 %v225
    %403 = vmatprep.subr.mxu0 0.0
    %404 = vmatpush1.msra.mxu0 %v226
    %405 = vmatprep.subr.mxu0 0.0
    %406 = vmatpush1.msra.mxu0 %v227
    %407 = vmatprep.subr.mxu0 0.0
    %408 = vmatpush1.msra.mxu0 0.0
    %409 = vmatprep.subr.mxu0 0.0
    %410 = vmatpush1.msra.mxu0 0.0
    %411 = vmatprep.subr.mxu0 0.0
    %412 = vmatpush1.msra.mxu0 0.0
    %413 = vmatprep.subr.mxu0 0.0
    %414 = vmatpush1.msra.mxu0 0.0
    %415 = vmatprep.subr.mxu0 0.0
    %416 = vmatpush1.msra.mxu0 0.0
    %417 = vmatprep.subr.mxu0 0.0
    %418 = vmatpush1.msra.mxu0 0.0
    %419 = vmatprep.subr.mxu0 0.0
    %420 = vmatpush1.msra.mxu0 0.0
    %421 = vmatprep.subr.mxu0 0.0
    %422 = vmatpush1.msra.mxu0 0.0
    %423 = vmatprep.subr.mxu0 0.0
    %424 = vmatpush1.msra.mxu0 0.0
    %425 = vmatprep.subr.mxu0 0.0
    %426 = vmatpush1.msra.mxu0 0.0
    %427 = vmatprep.subr.mxu0 0.0
    %428 = vmatpush1.msra.mxu0 0.0
    %429 = vmatprep.subr.mxu0 0.0
    %430 = vmatpush1.msra.mxu0 0.0
    %431 = vmatprep.subr.mxu0 0.0
    %432 = vmatpush1.msra.mxu0 0.0
    %433 = vmatprep.subr.mxu0 0.0
    %434 = vmatpush1.msra.mxu0 0.0
    %435 = vmatprep.subr.mxu0 0.0
    %436 = vmatpush1.msra.mxu0 0.0
    %437 = vmatprep.subr.mxu0 0.0
    %438 = vmatpush1.msra.mxu0 0.0
    %439 = vmatprep.subr.mxu0 0.0
    %440 = vmatpush1.msra.mxu0 0.0
    %441 = vmatprep.subr.mxu0 0.0
    %442 = vmatpush1.msra.mxu0 0.0
    %443 = vmatprep.subr.mxu0 0.0
    %444 = vmatpush1.msra.mxu0 0.0
    %445 = vmatprep.subr.mxu0 0.0
    %446 = vmatpush1.msra.mxu0 0.0
    %447 = vmatprep.subr.mxu0 0.0
    %448 = vmatpush1.msra.mxu0 0.0
    %449 = vmatprep.subr.mxu0 0.0
    %450 = vmatpush1.msra.mxu0 0.0
    %451 = vmatprep.subr.mxu0 0.0
    %452 = vmatpush1.msra.mxu0 0.0
    %453 = vmatprep.subr.mxu0 0.0
    %454 = vmatpush1.msra.mxu0 0.0
    %455 = vmatprep.subr.mxu0 0.0
    %456 = vmatpush1.msra.mxu0 0.0
    %457 = vmatprep.subr.mxu0 0.0
    %458 = vmatpush1.msra.mxu0 0.0
    %459 = vmatprep.subr.mxu0 0.0
    %460 = vmatpush1.msra.mxu0 0.0
    %461 = vmatprep.subr.mxu0 0.0
    %462 = vmatpush1.msra.mxu0 0.0
    %463 = vmatprep.mubr.f32.mxu0 0.0
    %464 = vmatmul.mubr.f32.gmra.mrb[0].mxu0 %v326
    %v465 = vpop.f32.mrb[0].mxu0
    %v466 = vadd.f32 0.0, %v465
    %v467 = vpop.f32.mrb[0].mxu0
    %468 = vdwg.mxu0
    %v470 = vrot.slane %v466, 2
    %v472 = vadd.f32 %v322, %v470
    %v473 = vxor.u32 %v398, 2147483648
    %v474 = vmul.f32 %v473, 1.442695
    %v475 = vpow.pop %v474
    %v476 = vadd.f32 %v475, 1.0
    %v477 = vrcp.pop %v476
    %v478 = vmul.f32 1.0, %v477
    %v479 = vtanh.pop %v398
    %v480 = vmul.f32 %v478, 0.0
    %482 = vrot.lane.b32.xlu0 %v479, 32
    %v483 = vpop.permute.xlu0 %482
    %v485 = vmul.f32 %v478, %v483
    %487 = vrot.lane.b32.xlu0 %v485, 32
    %v488 = vpop.permute.xlu0 %487
    %v490 = vadd.f32 %v480, %v488
    %v491 = vtanh.pop %v490
    %493 = vrot.lane.b32.xlu0 %v491, 32
    %v494 = vpop.permute.xlu0 %493
    %v496 = vmul.f32 %v478, %v494
    %v497 = vxor.u32 %v472, 2147483648
    %v498 = vmul.f32 %v497, 1.442695
    %v499 = vpow.pop %v498
    %v500 = vadd.f32 %v499, 1.0
    %v501 = vrcp.pop %v500
    %v502 = vmul.f32 1.0, %v501
    %v503 = vtanh.pop %v472
    %v504 = vmul.f32 %v502, 0.0
    %506 = vrot.lane.b32.xlu0 %v503, 32
    %v507 = vpop.permute.xlu0 %506
    %v509 = vmul.f32 %v502, %v507
    %511 = vrot.lane.b32.xlu0 %v509, 32
    %v512 = vpop.permute.xlu0 %511
    %v514 = vadd.f32 %v504, %v512
    %v515 = vtanh.pop %v514
    %517 = vrot.lane.b32.xlu0 %v515, 32
    %v518 = vpop.permute.xlu0 %517
    %v520 = vmul.f32 %v502, %v518
    %522 = vrot.lane.b32.xlu0 %v496, 64
    %v523 = vpop.permute.xlu0 %522
    %vm525 = vcmask 254976
    %526 = vst.msk [vmem:[#allocation2] sm:$0x3] %vm525, %v523
    %528 = vrot.lane.b32.xlu0 %v520, 96
    %v529 = vpop.permute.xlu0 %528
    %vm531 = vcmask 523526
    %532 = vst.msk [vmem:[#allocation2 + $0x8] sm:$0xc0] %vm531, %v529
    %v533 = vsel %vm324, %v523, 0
    %535 = vmatprep.subr.mxu0 0.0
    %536 = vmatpush1.msra.mxu0 %v220
    %537 = vmatprep.subr.mxu0 0.0
    %538 = vmatpush1.msra.mxu0 %v221
    %539 = vmatprep.subr.mxu0 0.0
    %540 = vmatpush1.msra.mxu0 %v222
    %541 = vmatprep.subr.mxu0 0.0
    %542 = vmatpush1.msra.mxu0 %v223
    %543 = vmatprep.subr.mxu0 0.0
    %544 = vmatpush1.msra.mxu0 0.0
    %545 = vmatprep.subr.mxu0 0.0
    %546 = vmatpush1.msra.mxu0 0.0
    %547 = vmatprep.subr.mxu0 0.0
    %548 = vmatpush1.msra.mxu0 0.0
    %549 = vmatprep.subr.mxu0 0.0
    %550 = vmatpush1.msra.mxu0 0.0
    %551 = vmatprep.subr.mxu0 0.0
    %552 = vmatpush1.msra.mxu0 0.0
    %553 = vmatprep.subr.mxu0 0.0
    %554 = vmatpush1.msra.mxu0 0.0
    %555 = vmatprep.subr.mxu0 0.0
    %556 = vmatpush1.msra.mxu0 0.0
    %557 = vmatprep.subr.mxu0 0.0
    %558 = vmatpush1.msra.mxu0 0.0
    %559 = vmatprep.subr.mxu0 0.0
    %560 = vmatpush1.msra.mxu0 0.0
    %561 = vmatprep.subr.mxu0 0.0
    %562 = vmatpush1.msra.mxu0 0.0
    %563 = vmatprep.subr.mxu0 0.0
    %564 = vmatpush1.msra.mxu0 0.0
    %565 = vmatprep.subr.mxu0 0.0
    %566 = vmatpush1.msra.mxu0 0.0
    %567 = vmatprep.subr.mxu0 0.0
    %568 = vmatpush1.msra.mxu0 0.0
    %569 = vmatprep.subr.mxu0 0.0
    %570 = vmatpush1.msra.mxu0 0.0
    %571 = vmatprep.subr.mxu0 0.0
    %572 = vmatpush1.msra.mxu0 0.0
    %573 = vmatprep.subr.mxu0 0.0
    %574 = vmatpush1.msra.mxu0 0.0
    %575 = vmatprep.subr.mxu0 0.0
    %576 = vmatpush1.msra.mxu0 0.0
    %577 = vmatprep.subr.mxu0 0.0
    %578 = vmatpush1.msra.mxu0 0.0
    %579 = vmatprep.subr.mxu0 0.0
    %580 = vmatpush1.msra.mxu0 0.0
    %581 = vmatprep.subr.mxu0 0.0
    %582 = vmatpush1.msra.mxu0 0.0
    %583 = vmatprep.subr.mxu0 0.0
    %584 = vmatpush1.msra.mxu0 0.0
    %585 = vmatprep.subr.mxu0 0.0
    %586 = vmatpush1.msra.mxu0 0.0
    %587 = vmatprep.subr.mxu0 0.0
    %588 = vmatpush1.msra.mxu0 0.0
    %589 = vmatprep.subr.mxu0 0.0
    %590 = vmatpush1.msra.mxu0 0.0
    %591 = vmatprep.subr.mxu0 0.0
    %592 = vmatpush1.msra.mxu0 0.0
    %593 = vmatprep.subr.mxu0 0.0
    %594 = vmatpush1.msra.mxu0 0.0
    %595 = vmatprep.subr.mxu0 0.0
    %596 = vmatpush1.msra.mxu0 0.0
    %597 = vmatprep.subr.mxu0 0.0
    %598 = vmatpush1.msra.mxu0 0.0
    %599 = vmatprep.mubr.f32.mxu0 0.0
    %600 = vmatmul.mubr.f32.gmra.mrb[0].mxu0 %v533
    %v601 = vpop.f32.mrb[0].mxu0
    %v602 = vadd.f32 0.0, %v601
    %v603 = vpop.f32.mrb[0].mxu0
    %604 = vdwg.mxu0
    %v606 = vrot.slane %v602, 6
    %v608 = vadd.f32 %v314, %v606
    %v609 = vrot.slane %v520, 6
    %610 = vrot.lane.b32.xlu0 %v609, 64
    %v611 = vpop.permute.xlu0 %610
    %v612 = vsel %vm324, %v611, 0
    %614 = vmatprep.subr.mxu0 0.0
    %615 = vmatpush1.msra.mxu0 %v224
    %616 = vmatprep.subr.mxu0 0.0
    %617 = vmatpush1.msra.mxu0 %v225
    %618 = vmatprep.subr.mxu0 0.0
    %619 = vmatpush1.msra.mxu0 %v226
    %620 = vmatprep.subr.mxu0 0.0
    %621 = vmatpush1.msra.mxu0 %v227
    %622 = vmatprep.subr.mxu0 0.0
    %623 = vmatpush1.msra.mxu0 0.0
    %624 = vmatprep.subr.mxu0 0.0
    %625 = vmatpush1.msra.mxu0 0.0
    %626 = vmatprep.subr.mxu0 0.0
    %627 = vmatpush1.msra.mxu0 0.0
    %628 = vmatprep.subr.mxu0 0.0
    %629 = vmatpush1.msra.mxu0 0.0
    %630 = vmatprep.subr.mxu0 0.0
    %631 = vmatpush1.msra.mxu0 0.0
    %632 = vmatprep.subr.mxu0 0.0
    %633 = vmatpush1.msra.mxu0 0.0
    %634 = vmatprep.subr.mxu0 0.0
    %635 = vmatpush1.msra.mxu0 0.0
    %636 = vmatprep.subr.mxu0 0.0
    %637 = vmatpush1.msra.mxu0 0.0
    %638 = vmatprep.subr.mxu0 0.0
    %639 = vmatpush1.msra.mxu0 0.0
    %640 = vmatprep.subr.mxu0 0.0
    %641 = vmatpush1.msra.mxu0 0.0
    %642 = vmatprep.subr.mxu0 0.0
    %643 = vmatpush1.msra.mxu0 0.0
    %644 = vmatprep.subr.mxu0 0.0
    %645 = vmatpush1.msra.mxu0 0.0
    %646 = vmatprep.subr.mxu0 0.0
    %647 = vmatpush1.msra.mxu0 0.0
    %648 = vmatprep.subr.mxu0 0.0
    %649 = vmatpush1.msra.mxu0 0.0
    %650 = vmatprep.subr.mxu0 0.0
    %651 = vmatpush1.msra.mxu0 0.0
    %652 = vmatprep.subr.mxu0 0.0
    %653 = vmatpush1.msra.mxu0 0.0
    %654 = vmatprep.subr.mxu0 0.0
    %655 = vmatpush1.msra.mxu0 0.0
    %656 = vmatprep.subr.mxu0 0.0
    %657 = vmatpush1.msra.mxu0 0.0
    %658 = vmatprep.subr.mxu0 0.0
    %659 = vmatpush1.msra.mxu0 0.0
    %660 = vmatprep.subr.mxu0 0.0
    %661 = vmatpush1.msra.mxu0 0.0
    %662 = vmatprep.subr.mxu0 0.0
    %663 = vmatpush1.msra.mxu0 0.0
    %664 = vmatprep.subr.mxu0 0.0
    %665 = vmatpush1.msra.mxu0 0.0
    %666 = vmatprep.subr.mxu0 0.0
    %667 = vmatpush1.msra.mxu0 0.0
    %668 = vmatprep.subr.mxu0 0.0
    %669 = vmatpush1.msra.mxu0 0.0
    %670 = vmatprep.subr.mxu0 0.0
    %671 = vmatpush1.msra.mxu0 0.0
    %672 = vmatprep.subr.mxu0 0.0
    %673 = vmatpush1.msra.mxu0 0.0
    %674 = vmatprep.subr.mxu0 0.0
    %675 = vmatpush1.msra.mxu0 0.0
    %676 = vmatprep.subr.mxu0 0.0
    %677 = vmatpush1.msra.mxu0 0.0
    %678 = vmatprep.mubr.f32.mxu0 0.0
    %679 = vmatmul.mubr.f32.gmra.mrb[0].mxu0 %v612
    %v680 = vpop.f32.mrb[0].mxu0
    %v681 = vadd.f32 0.0, %v680
    %v682 = vpop.f32.mrb[0].mxu0
    %683 = vdwg.mxu0
    %v685 = vrot.slane %v681, 4
    %v687 = vadd.f32 %v322, %v685
    %v688 = vxor.u32 %v608, 2147483648
    %v689 = vmul.f32 %v688, 1.442695
    %v690 = vpow.pop %v689
    %v691 = vadd.f32 %v690, 1.0
    %v692 = vrcp.pop %v691
    %v693 = vmul.f32 1.0, %v692
    %v694 = vtanh.pop %v608
    %v696 = vrot.slane %v490, 6
    %v698 = vmul.f32 %v693, %v696
    %700 = vrot.lane.b32.xlu0 %v694, 32
    %v701 = vpop.permute.xlu0 %700
    %v703 = vmul.f32 %v693, %v701
    %705 = vrot.lane.b32.xlu0 %v703, 32
    %v706 = vpop.permute.xlu0 %705
    %v708 = vadd.f32 %v698, %v706
    %v709 = vtanh.pop %v708
    %711 = vrot.lane.b32.xlu0 %v709, 32
    %v712 = vpop.permute.xlu0 %711
    %v714 = vmul.f32 %v693, %v712
    %v715 = vxor.u32 %v687, 2147483648
    %v716 = vmul.f32 %v715, 1.442695
    %v717 = vpow.pop %v716
    %v718 = vadd.f32 %v717, 1.0
    %v719 = vrcp.pop %v718
    %v720 = vmul.f32 1.0, %v719
    %v721 = vtanh.pop %v687
    %v723 = vrot.slane %v514, 2
    %v725 = vmul.f32 %v720, %v723
    %727 = vrot.lane.b32.xlu0 %v721, 32
    %v728 = vpop.permute.xlu0 %727
    %v730 = vmul.f32 %v720, %v728
    %732 = vrot.lane.b32.xlu0 %v730, 32
    %v733 = vpop.permute.xlu0 %732
    %v735 = vadd.f32 %v725, %v733
    %v736 = vtanh.pop %v735
    %738 = vrot.lane.b32.xlu0 %v736, 32
    %v739 = vpop.permute.xlu0 %738
    %v741 = vmul.f32 %v720, %v739
    %743 = vrot.lane.b32.xlu0 %v714, 64
    %v744 = vpop.permute.xlu0 %743
    %vm746 = vcmask 257026
    %747 = vst.msk [vmem:[#allocation2] sm:$0xc] %vm746, %v744
    %749 = vrot.lane.b32.xlu0 %v741, 96
    %v750 = vpop.permute.xlu0 %749
    %vm752 = vcmask 521476
    %753 = vst.msk [vmem:[#allocation2 + $0x8] sm:$0x30] %vm752, %v750
    %v754 = vrot.slane %v714, 2
    %755 = vrot.lane.b32.xlu0 %v754, 64
    %v756 = vpop.permute.xlu0 %755
    %v757 = vsel %vm324, %v756, 0
    %759 = vmatprep.subr.mxu0 0.0
    %760 = vmatpush1.msra.mxu0 %v220
    %761 = vmatprep.subr.mxu0 0.0
    %762 = vmatpush1.msra.mxu0 %v221
    %763 = vmatprep.subr.mxu0 0.0
    %764 = vmatpush1.msra.mxu0 %v222
    %765 = vmatprep.subr.mxu0 0.0
    %766 = vmatpush1.msra.mxu0 %v223
    %767 = vmatprep.subr.mxu0 0.0
    %768 = vmatpush1.msra.mxu0 0.0
    %769 = vmatprep.subr.mxu0 0.0
    %770 = vmatpush1.msra.mxu0 0.0
    %771 = vmatprep.subr.mxu0 0.0
    %772 = vmatpush1.msra.mxu0 0.0
    %773 = vmatprep.subr.mxu0 0.0
    %774 = vmatpush1.msra.mxu0 0.0
    %775 = vmatprep.subr.mxu0 0.0
    %776 = vmatpush1.msra.mxu0 0.0
    %777 = vmatprep.subr.mxu0 0.0
    %778 = vmatpush1.msra.mxu0 0.0
    %779 = vmatprep.subr.mxu0 0.0
    %780 = vmatpush1.msra.mxu0 0.0
    %781 = vmatprep.subr.mxu0 0.0
    %782 = vmatpush1.msra.mxu0 0.0
    %783 = vmatprep.subr.mxu0 0.0
    %784 = vmatpush1.msra.mxu0 0.0
    %785 = vmatprep.subr.mxu0 0.0
    %786 = vmatpush1.msra.mxu0 0.0
    %787 = vmatprep.subr.mxu0 0.0
    %788 = vmatpush1.msra.mxu0 0.0
    %789 = vmatprep.subr.mxu0 0.0
    %790 = vmatpush1.msra.mxu0 0.0
    %791 = vmatprep.subr.mxu0 0.0
    %792 = vmatpush1.msra.mxu0 0.0
    %793 = vmatprep.subr.mxu0 0.0
    %794 = vmatpush1.msra.mxu0 0.0
    %795 = vmatprep.subr.mxu0 0.0
    %796 = vmatpush1.msra.mxu0 0.0
    %797 = vmatprep.subr.mxu0 0.0
    %798 = vmatpush1.msra.mxu0 0.0
    %799 = vmatprep.subr.mxu0 0.0
    %800 = vmatpush1.msra.mxu0 0.0
    %801 = vmatprep.subr.mxu0 0.0
    %802 = vmatpush1.msra.mxu0 0.0
    %803 = vmatprep.subr.mxu0 0.0
    %804 = vmatpush1.msra.mxu0 0.0
    %805 = vmatprep.subr.mxu0 0.0
    %806 = vmatpush1.msra.mxu0 0.0
    %807 = vmatprep.subr.mxu0 0.0
    %808 = vmatpush1.msra.mxu0 0.0
    %809 = vmatprep.subr.mxu0 0.0
    %810 = vmatpush1.msra.mxu0 0.0
    %811 = vmatprep.subr.mxu0 0.0
    %812 = vmatpush1.msra.mxu0 0.0
    %813 = vmatprep.subr.mxu0 0.0
    %814 = vmatpush1.msra.mxu0 0.0
    %815 = vmatprep.subr.mxu0 0.0
    %816 = vmatpush1.msra.mxu0 0.0
    %817 = vmatprep.subr.mxu0 0.0
    %818 = vmatpush1.msra.mxu0 0.0
    %819 = vmatprep.subr.mxu0 0.0
    %820 = vmatpush1.msra.mxu0 0.0
    %821 = vmatprep.subr.mxu0 0.0
    %822 = vmatpush1.msra.mxu0 0.0
    %823 = vmatprep.mubr.f32.mxu0 0.0
    %824 = vmatmul.mubr.f32.gmra.mrb[0].mxu0 %v757
    %v825 = vpop.f32.mrb[0].mxu0
    %v826 = vadd.f32 0.0, %v825
    %v827 = vpop.f32.mrb[0].mxu0
    %828 = vdwg.mxu0
    %v830 = vrot.slane %v826, 4
    %v832 = vadd.f32 %v314, %v830
    %v833 = vrot.slane %v741, 4
    %834 = vrot.lane.b32.xlu0 %v833, 64
    %v835 = vpop.permute.xlu0 %834
    %v836 = vsel %vm324, %v835, 0
    %838 = vmatprep.subr.mxu0 0.0
    %839 = vmatpush1.msra.mxu0 %v224
    %840 = vmatprep.subr.mxu0 0.0
    %841 = vmatpush1.msra.mxu0 %v225
    %842 = vmatprep.subr.mxu0 0.0
    %843 = vmatpush1.msra.mxu0 %v226
    %844 = vmatprep.subr.mxu0 0.0
    %845 = vmatpush1.msra.mxu0 %v227
    %846 = vmatprep.subr.mxu0 0.0
    %847 = vmatpush1.msra.mxu0 0.0
    %848 = vmatprep.subr.mxu0 0.0
    %849 = vmatpush1.msra.mxu0 0.0
    %850 = vmatprep.subr.mxu0 0.0
    %851 = vmatpush1.msra.mxu0 0.0
    %852 = vmatprep.subr.mxu0 0.0
    %853 = vmatpush1.msra.mxu0 0.0
    %854 = vmatprep.subr.mxu0 0.0
    %855 = vmatpush1.msra.mxu0 0.0
    %856 = vmatprep.subr.mxu0 0.0
    %857 = vmatpush1.msra.mxu0 0.0
    %858 = vmatprep.subr.mxu0 0.0
    %859 = vmatpush1.msra.mxu0 0.0
    %860 = vmatprep.subr.mxu0 0.0
    %861 = vmatpush1.msra.mxu0 0.0
    %862 = vmatprep.subr.mxu0 0.0
    %863 = vmatpush1.msra.mxu0 0.0
    %864 = vmatprep.subr.mxu0 0.0
    %865 = vmatpush1.msra.mxu0 0.0
    %866 = vmatprep.subr.mxu0 0.0
    %867 = vmatpush1.msra.mxu0 0.0
    %868 = vmatprep.subr.mxu0 0.0
    %869 = vmatpush1.msra.mxu0 0.0
    %870 = vmatprep.subr.mxu0 0.0
    %871 = vmatpush1.msra.mxu0 0.0
    %872 = vmatprep.subr.mxu0 0.0
    %873 = vmatpush1.msra.mxu0 0.0
    %874 = vmatprep.subr.mxu0 0.0
    %875 = vmatpush1.msra.mxu0 0.0
    %876 = vmatprep.subr.mxu0 0.0
    %877 = vmatpush1.msra.mxu0 0.0
    %878 = vmatprep.subr.mxu0 0.0
    %879 = vmatpush1.msra.mxu0 0.0
    %880 = vmatprep.subr.mxu0 0.0
    %881 = vmatpush1.msra.mxu0 0.0
    %882 = vmatprep.subr.mxu0 0.0
    %883 = vmatpush1.msra.mxu0 0.0
    %884 = vmatprep.subr.mxu0 0.0
    %885 = vmatpush1.msra.mxu0 0.0
    %886 = vmatprep.subr.mxu0 0.0
    %887 = vmatpush1.msra.mxu0 0.0
    %888 = vmatprep.subr.mxu0 0.0
    %889 = vmatpush1.msra.mxu0 0.0
    %890 = vmatprep.subr.mxu0 0.0
    %891 = vmatpush1.msra.mxu0 0.0
    %892 = vmatprep.subr.mxu0 0.0
    %893 = vmatpush1.msra.mxu0 0.0
    %894 = vmatprep.subr.mxu0 0.0
    %895 = vmatpush1.msra.mxu0 0.0
    %896 = vmatprep.subr.mxu0 0.0
    %897 = vmatpush1.msra.mxu0 0.0
    %898 = vmatprep.subr.mxu0 0.0
    %899 = vmatpush1.msra.mxu0 0.0
    %900 = vmatprep.subr.mxu0 0.0
    %901 = vmatpush1.msra.mxu0 0.0
    %902 = vmatprep.mubr.f32.mxu0 0.0
    %903 = vmatmul.mubr.f32.gmra.mrb[0].mxu0 %v836
    %v904 = vpop.f32.mrb[0].mxu0
    %v905 = vadd.f32 0.0, %v904
    %v906 = vpop.f32.mrb[0].mxu0
    %907 = vdwg.mxu0
    %v909 = vrot.slane %v905, 6
    %v911 = vadd.f32 %v322, %v909
    %v912 = vxor.u32 %v832, 2147483648
    %v913 = vmul.f32 %v912, 1.442695
    %v914 = vpow.pop %v913
    %v915 = vadd.f32 %v914, 1.0
    %v916 = vrcp.pop %v915
    %v917 = vmul.f32 1.0, %v916
    %v918 = vtanh.pop %v832
    %v920 = vrot.slane %v708, 6
    %v922 = vmul.f32 %v917, %v920
    %924 = vrot.lane.b32.xlu0 %v918, 32
    %v925 = vpop.permute.xlu0 %924
    %v927 = vmul.f32 %v917, %v925
    %929 = vrot.lane.b32.xlu0 %v927, 32
    %v930 = vpop.permute.xlu0 %929
    %v932 = vadd.f32 %v922, %v930
    %v933 = vtanh.pop %v932
    %935 = vrot.lane.b32.xlu0 %v933, 32
    %v936 = vpop.permute.xlu0 %935
    %v938 = vmul.f32 %v917, %v936
    %v939 = vxor.u32 %v911, 2147483648
    %v940 = vmul.f32 %v939, 1.442695
    %v941 = vpow.pop %v940
    %v942 = vadd.f32 %v941, 1.0
    %v943 = vrcp.pop %v942
    %v944 = vmul.f32 1.0, %v943
    %v945 = vtanh.pop %v911
    %v947 = vrot.slane %v735, 2
    %v949 = vmul.f32 %v944, %v947
    %951 = vrot.lane.b32.xlu0 %v945, 32
    %v952 = vpop.permute.xlu0 %951
    %v954 = vmul.f32 %v944, %v952
    %956 = vrot.lane.b32.xlu0 %v954, 32
    %v957 = vpop.permute.xlu0 %956
    %v959 = vadd.f32 %v949, %v957
    %v960 = vtanh.pop %v959
    %962 = vrot.lane.b32.xlu0 %v960, 32
    %v963 = vpop.permute.xlu0 %962
    %v965 = vmul.f32 %v944, %v963
    %967 = vrot.lane.b32.xlu0 %v938, 64
    %v968 = vpop.permute.xlu0 %967
    %vm970 = vcmask 259076
    %971 = vst.msk [vmem:[#allocation2] sm:$0x30] %vm970, %v968
    %973 = vrot.lane.b32.xlu0 %v965, 96
    %v974 = vpop.permute.xlu0 %973
    %vm976 = vcmask 519426
    %977 = vst.msk [vmem:[#allocation2 + $0x8] sm:$0xc] %vm976, %v974
    %v978 = vrot.slane %v938, 4
    %979 = vrot.lane.b32.xlu0 %v978, 64
    %v980 = vpop.permute.xlu0 %979
    %v981 = vsel %vm324, %v980, 0
    %983 = vmatprep.subr.mxu0 0.0
    %984 = vmatpush1.msra.mxu0 %v220
    %985 = vmatprep.subr.mxu0 0.0
    %986 = vmatpush1.msra.mxu0 %v221
    %987 = vmatprep.subr.mxu0 0.0
    %988 = vmatpush1.msra.mxu0 %v222
    %989 = vmatprep.subr.mxu0 0.0
    %990 = vmatpush1.msra.mxu0 %v223
    %991 = vmatprep.subr.mxu0 0.0
    %992 = vmatpush1.msra.mxu0 0.0
    %993 = vmatprep.subr.mxu0 0.0
    %994 = vmatpush1.msra.mxu0 0.0
    %995 = vmatprep.subr.mxu0 0.0
    %996 = vmatpush1.msra.mxu0 0.0
    %997 = vmatprep.subr.mxu0 0.0
    %998 = vmatpush1.msra.mxu0 0.0
    %999 = vmatprep.subr.mxu0 0.0
    %1000 = vmatpush1.msra.mxu0 0.0
    %1001 = vmatprep.subr.mxu0 0.0
    %1002 = vmatpush1.msra.mxu0 0.0
    %1003 = vmatprep.subr.mxu0 0.0
    %1004 = vmatpush1.msra.mxu0 0.0
    %1005 = vmatprep.subr.mxu0 0.0
    %1006 = vmatpush1.msra.mxu0 0.0
    %1007 = vmatprep.subr.mxu0 0.0
    %1008 = vmatpush1.msra.mxu0 0.0
    %1009 = vmatprep.subr.mxu0 0.0
    %1010 = vmatpush1.msra.mxu0 0.0
    %1011 = vmatprep.subr.mxu0 0.0
    %1012 = vmatpush1.msra.mxu0 0.0
    %1013 = vmatprep.subr.mxu0 0.0
    %1014 = vmatpush1.msra.mxu0 0.0
    %1015 = vmatprep.subr.mxu0 0.0
    %1016 = vmatpush1.msra.mxu0 0.0
    %1017 = vmatprep.subr.mxu0 0.0
    %1018 = vmatpush1.msra.mxu0 0.0
    %1019 = vmatprep.subr.mxu0 0.0
    %1020 = vmatpush1.msra.mxu0 0.0
    %1021 = vmatprep.subr.mxu0 0.0
    %1022 = vmatpush1.msra.mxu0 0.0
    %1023 = vmatprep.subr.mxu0 0.0
    %1024 = vmatpush1.msra.mxu0 0.0
    %1025 = vmatprep.subr.mxu0 0.0
    %1026 = vmatpush1.msra.mxu0 0.0
    %1027 = vmatprep.subr.mxu0 0.0
    %1028 = vmatpush1.msra.mxu0 0.0
    %1029 = vmatprep.subr.mxu0 0.0
    %1030 = vmatpush1.msra.mxu0 0.0
    %1031 = vmatprep.subr.mxu0 0.0
    %1032 = vmatpush1.msra.mxu0 0.0
    %1033 = vmatprep.subr.mxu0 0.0
    %1034 = vmatpush1.msra.mxu0 0.0
    %1035 = vmatprep.subr.mxu0 0.0
    %1036 = vmatpush1.msra.mxu0 0.0
    %1037 = vmatprep.subr.mxu0 0.0
    %1038 = vmatpush1.msra.mxu0 0.0
    %1039 = vmatprep.subr.mxu0 0.0
    %1040 = vmatpush1.msra.mxu0 0.0
    %1041 = vmatprep.subr.mxu0 0.0
    %1042 = vmatpush1.msra.mxu0 0.0
    %1043 = vmatprep.subr.mxu0 0.0
    %1044 = vmatpush1.msra.mxu0 0.0
    %1045 = vmatprep.subr.mxu0 0.0
    %1046 = vmatpush1.msra.mxu0 0.0
    %1047 = vmatprep.mubr.f32.mxu0 0.0
    %1048 = vmatmul.mubr.f32.gmra.mrb[0].mxu0 %v981
    %v1049 = vpop.f32.mrb[0].mxu0
    %v1050 = vadd.f32 0.0, %v1049
    %v1051 = vpop.f32.mrb[0].mxu0
    %1052 = vdwg.mxu0
    %v1054 = vrot.slane %v1050, 2
    %v1056 = vadd.f32 %v314, %v1054
    %v1057 = vrot.slane %v965, 2
    %1058 = vrot.lane.b32.xlu0 %v1057, 64
    %v1059 = vpop.permute.xlu0 %1058
    %v1060 = vsel %vm324, %v1059, 0
    %1062 = vmatprep.subr.mxu0 0.0
    %1063 = vmatpush1.msra.mxu0 %v224
    %1064 = vmatprep.subr.mxu0 0.0
    %1065 = vmatpush1.msra.mxu0 %v225
    %1066 = vmatprep.subr.mxu0 0.0
    %1067 = vmatpush1.msra.mxu0 %v226
    %1068 = vmatprep.subr.mxu0 0.0
    %1069 = vmatpush1.msra.mxu0 %v227
    %1070 = vmatprep.subr.mxu0 0.0
    %1071 = vmatpush1.msra.mxu0 0.0
    %1072 = vmatprep.subr.mxu0 0.0
    %1073 = vmatpush1.msra.mxu0 0.0
    %1074 = vmatprep.subr.mxu0 0.0
    %1075 = vmatpush1.msra.mxu0 0.0
    %1076 = vmatprep.subr.mxu0 0.0
    %1077 = vmatpush1.msra.mxu0 0.0
    %1078 = vmatprep.subr.mxu0 0.0
    %1079 = vmatpush1.msra.mxu0 0.0
    %1080 = vmatprep.subr.mxu0 0.0
    %1081 = vmatpush1.msra.mxu0 0.0
    %1082 = vmatprep.subr.mxu0 0.0
    %1083 = vmatpush1.msra.mxu0 0.0
    %1084 = vmatprep.subr.mxu0 0.0
    %1085 = vmatpush1.msra.mxu0 0.0
    %1086 = vmatprep.subr.mxu0 0.0
    %1087 = vmatpush1.msra.mxu0 0.0
    %1088 = vmatprep.subr.mxu0 0.0
    %1089 = vmatpush1.msra.mxu0 0.0
    %1090 = vmatprep.subr.mxu0 0.0
    %1091 = vmatpush1.msra.mxu0 0.0
    %1092 = vmatprep.subr.mxu0 0.0
    %1093 = vmatpush1.msra.mxu0 0.0
    %1094 = vmatprep.subr.mxu0 0.0
    %1095 = vmatpush1.msra.mxu0 0.0
    %1096 = vmatprep.subr.mxu0 0.0
    %1097 = vmatpush1.msra.mxu0 0.0
    %1098 = vmatprep.subr.mxu0 0.0
    %1099 = vmatpush1.msra.mxu0 0.0
    %1100 = vmatprep.subr.mxu0 0.0
    %1101 = vmatpush1.msra.mxu0 0.0
    %1102 = vmatprep.subr.mxu0 0.0
    %1103 = vmatpush1.msra.mxu0 0.0
    %1104 = vmatprep.subr.mxu0 0.0
    %1105 = vmatpush1.msra.mxu0 0.0
    %1106 = vmatprep.subr.mxu0 0.0
    %1107 = vmatpush1.msra.mxu0 0.0
    %1108 = vmatprep.subr.mxu0 0.0
    %1109 = vmatpush1.msra.mxu0 0.0
    %1110 = vmatprep.subr.mxu0 0.0
    %1111 = vmatpush1.msra.mxu0 0.0
    %1112 = vmatprep.subr.mxu0 0.0
    %1113 = vmatpush1.msra.mxu0 0.0
    %1114 = vmatprep.subr.mxu0 0.0
    %1115 = vmatpush1.msra.mxu0 0.0
    %1116 = vmatprep.subr.mxu0 0.0
    %1117 = vmatpush1.msra.mxu0 0.0
    %1118 = vmatprep.subr.mxu0 0.0
    %1119 = vmatpush1.msra.mxu0 0.0
    %1120 = vmatprep.subr.mxu0 0.0
    %1121 = vmatpush1.msra.mxu0 0.0
    %1122 = vmatprep.subr.mxu0 0.0
    %1123 = vmatpush1.msra.mxu0 0.0
    %1124 = vmatprep.subr.mxu0 0.0
    %1125 = vmatpush1.msra.mxu0 0.0
    %1126 = vmatprep.mubr.f32.mxu0 0.0
    %1127 = vmatmul.mubr.f32.gmra.mrb[0].mxu0 %v1060
    %v1128 = vpop.f32.mrb[0].mxu0
    %v1129 = vadd.f32 0.0, %v1128
    %v1130 = vpop.f32.mrb[0].mxu0
    %1131 = vdwg.mxu0
    %v1132 = vadd.f32 %v322, %v1129
    %v1133 = vxor.u32 %v1056, 2147483648
    %v1134 = vmul.f32 %v1133, 1.442695
    %v1135 = vpow.pop %v1134
    %v1136 = vadd.f32 %v1135, 1.0
    %v1137 = vrcp.pop %v1136
    %v1138 = vmul.f32 1.0, %v1137
    %v1139 = vtanh.pop %v1056
    %v1141 = vrot.slane %v932, 6
    %v1143 = vmul.f32 %v1138, %v1141
    %1145 = vrot.lane.b32.xlu0 %v1139, 32
    %v1146 = vpop.permute.xlu0 %1145
    %v1148 = vmul.f32 %v1138, %v1146
    %1150 = vrot.lane.b32.xlu0 %v1148, 32
    %v1151 = vpop.permute.xlu0 %1150
    %v1153 = vadd.f32 %v1143, %v1151
    %v1154 = vtanh.pop %v1153
    %1156 = vrot.lane.b32.xlu0 %v1154, 32
    %v1157 = vpop.permute.xlu0 %1156
    %v1159 = vmul.f32 %v1138, %v1157
    %v1160 = vxor.u32 %v1132, 2147483648
    %v1161 = vmul.f32 %v1160, 1.442695
    %v1162 = vpow.pop %v1161
    %v1163 = vadd.f32 %v1162, 1.0
    %v1164 = vrcp.pop %v1163
    %v1165 = vmul.f32 1.0, %v1164
    %v1166 = vtanh.pop %v1132
    %v1168 = vrot.slane %v959, 2
    %v1170 = vmul.f32 %v1165, %v1168
    %1172 = vrot.lane.b32.xlu0 %v1166, 32
    %v1173 = vpop.permute.xlu0 %1172
    %v1175 = vmul.f32 %v1165, %v1173
    %1177 = vrot.lane.b32.xlu0 %v1175, 32
    %v1178 = vpop.permute.xlu0 %1177
    %v1180 = vadd.f32 %v1170, %v1178
    %v1181 = vtanh.pop %v1180
    %1183 = vrot.lane.b32.xlu0 %v1181, 32
    %v1184 = vpop.permute.xlu0 %1183
    %v1186 = vmul.f32 %v1165, %v1184
    %1188 = vrot.lane.b32.xlu0 %v1159, 64
    %v1189 = vpop.permute.xlu0 %1188
    %vm1191 = vcmask 261126
    %1192 = vst.msk [vmem:[#allocation2] sm:$0xc0] %vm1191, %v1189
    %1194 = vrot.lane.b32.xlu0 %v1186, 96
    %v1195 = vpop.permute.xlu0 %1194
    %vm1197 = vcmask 517376
    %1198 = vst.msk [vmem:[#allocation2 + $0x8] sm:$0x3] %vm1197, %v1195
    %v1199 = vrot.slane %v1159, 6
    %1200 = vrot.lane.b32.xlu0 %v1199, 64
    %v1201 = vpop.permute.xlu0 %1200
    %v1202 = vsel %vm324, %v1201, 0
    %1204 = vmatprep.subr.mxu0 0.0
    %1205 = vmatpush1.msra.mxu0 %v220
    %1206 = vmatprep.subr.mxu0 0.0
    %1207 = vmatpush1.msra.mxu0 %v221
    %1208 = vmatprep.subr.mxu0 0.0
    %1209 = vmatpush1.msra.mxu0 %v222
    %1210 = vmatprep.subr.mxu0 0.0
    %1211 = vmatpush1.msra.mxu0 %v223
    %1212 = vmatprep.subr.mxu0 0.0
    %1213 = vmatpush1.msra.mxu0 0.0
    %1214 = vmatprep.subr.mxu0 0.0
    %1215 = vmatpush1.msra.mxu0 0.0
    %1216 = vmatprep.subr.mxu0 0.0
    %1217 = vmatpush1.msra.mxu0 0.0
    %1218 = vmatprep.subr.mxu0 0.0
    %1219 = vmatpush1.msra.mxu0 0.0
    %1220 = vmatprep.subr.mxu0 0.0
    %1221 = vmatpush1.msra.mxu0 0.0
    %1222 = vmatprep.subr.mxu0 0.0
    %1223 = vmatpush1.msra.mxu0 0.0
    %1224 = vmatprep.subr.mxu0 0.0
    %1225 = vmatpush1.msra.mxu0 0.0
    %1226 = vmatprep.subr.mxu0 0.0
    %1227 = vmatpush1.msra.mxu0 0.0
    %1228 = vmatprep.subr.mxu0 0.0
    %1229 = vmatpush1.msra.mxu0 0.0
    %1230 = vmatprep.subr.mxu0 0.0
    %1231 = vmatpush1.msra.mxu0 0.0
    %1232 = vmatprep.subr.mxu0 0.0
    %1233 = vmatpush1.msra.mxu0 0.0
    %1234 = vmatprep.subr.mxu0 0.0
    %1235 = vmatpush1.msra.mxu0 0.0
    %1236 = vmatprep.subr.mxu0 0.0
    %1237 = vmatpush1.msra.mxu0 0.0
    %1238 = vmatprep.subr.mxu0 0.0
    %1239 = vmatpush1.msra.mxu0 0.0
    %1240 = vmatprep.subr.mxu0 0.0
    %1241 = vmatpush1.msra.mxu0 0.0
    %1242 = vmatprep.subr.mxu0 0.0
    %1243 = vmatpush1.msra.mxu0 0.0
    %1244 = vmatprep.subr.mxu0 0.0
    %1245 = vmatpush1.msra.mxu0 0.0
    %1246 = vmatprep.subr.mxu0 0.0
    %1247 = vmatpush1.msra.mxu0 0.0
    %1248 = vmatprep.subr.mxu0 0.0
    %1249 = vmatpush1.msra.mxu0 0.0
    %1250 = vmatprep.subr.mxu0 0.0
    %1251 = vmatpush1.msra.mxu0 0.0
    %1252 = vmatprep.subr.mxu0 0.0
    %1253 = vmatpush1.msra.mxu0 0.0
    %1254 = vmatprep.subr.mxu0 0.0
    %1255 = vmatpush1.msra.mxu0 0.0
    %1256 = vmatprep.subr.mxu0 0.0
    %1257 = vmatpush1.msra.mxu0 0.0
    %1258 = vmatprep.subr.mxu0 0.0
    %1259 = vmatpush1.msra.mxu0 0.0
    %1260 = vmatprep.subr.mxu0 0.0
    %1261 = vmatpush1.msra.mxu0 0.0
    %1262 = vmatprep.subr.mxu0 0.0
    %1263 = vmatpush1.msra.mxu0 0.0
    %1264 = vmatprep.subr.mxu0 0.0
    %1265 = vmatpush1.msra.mxu0 0.0
    %1266 = vmatprep.subr.mxu0 0.0
    %1267 = vmatpush1.msra.mxu0 0.0
    %1268 = vmatprep.mubr.f32.mxu0 0.0
    %1269 = vmatmul.mubr.f32.gmra.mrb[0].mxu0 %v1202
    %v1270 = vpop.f32.mrb[0].mxu0
    %v1271 = vadd.f32 0.0, %v1270
    %v1272 = vpop.f32.mrb[0].mxu0
    %1273 = vdwg.mxu0
    %v1274 = vadd.f32 %v320, %v1271
    %1275 = vrot.lane.b32.xlu0 %v1186, 64
    %v1276 = vpop.permute.xlu0 %1275
    %v1277 = vsel %vm324, %v1276, 0
    %1279 = vmatprep.subr.mxu0 0.0
    %1280 = vmatpush1.msra.mxu0 %v224
    %1281 = vmatprep.subr.mxu0 0.0
    %1282 = vmatpush1.msra.mxu0 %v225
    %1283 = vmatprep.subr.mxu0 0.0
    %1284 = vmatpush1.msra.mxu0 %v226
    %1285 = vmatprep.subr.mxu0 0.0
    %1286 = vmatpush1.msra.mxu0 %v227
    %1287 = vmatprep.subr.mxu0 0.0
    %1288 = vmatpush1.msra.mxu0 0.0
    %1289 = vmatprep.subr.mxu0 0.0
    %1290 = vmatpush1.msra.mxu0 0.0
    %1291 = vmatprep.subr.mxu0 0.0
    %1292 = vmatpush1.msra.mxu0 0.0
    %1293 = vmatprep.subr.mxu0 0.0
    %1294 = vmatpush1.msra.mxu0 0.0
    %1295 = vmatprep.subr.mxu0 0.0
    %1296 = vmatpush1.msra.mxu0 0.0
    %1297 = vmatprep.subr.mxu0 0.0
    %1298 = vmatpush1.msra.mxu0 0.0
    %1299 = vmatprep.subr.mxu0 0.0
    %1300 = vmatpush1.msra.mxu0 0.0
    %1301 = vmatprep.subr.mxu0 0.0
    %1302 = vmatpush1.msra.mxu0 0.0
    %1303 = vmatprep.subr.mxu0 0.0
    %1304 = vmatpush1.msra.mxu0 0.0
    %1305 = vmatprep.subr.mxu0 0.0
    %1306 = vmatpush1.msra.mxu0 0.0
    %1307 = vmatprep.subr.mxu0 0.0
    %1308 = vmatpush1.msra.mxu0 0.0
    %1309 = vmatprep.subr.mxu0 0.0
    %1310 = vmatpush1.msra.mxu0 0.0
    %1311 = vmatprep.subr.mxu0 0.0
    %1312 = vmatpush1.msra.mxu0 0.0
    %1313 = vmatprep.subr.mxu0 0.0
    %1314 = vmatpush1.msra.mxu0 0.0
    %1315 = vmatprep.subr.mxu0 0.0
    %1316 = vmatpush1.msra.mxu0 0.0
    %1317 = vmatprep.subr.mxu0 0.0
    %1318 = vmatpush1.msra.mxu0 0.0
    %1319 = vmatprep.subr.mxu0 0.0
    %1320 = vmatpush1.msra.mxu0 0.0
    %1321 = vmatprep.subr.mxu0 0.0
    %1322 = vmatpush1.msra.mxu0 0.0
    %1323 = vmatprep.subr.mxu0 0.0
    %1324 = vmatpush1.msra.mxu0 0.0
    %1325 = vmatprep.subr.mxu0 0.0
    %1326 = vmatpush1.msra.mxu0 0.0
    %1327 = vmatprep.subr.mxu0 0.0
    %1328 = vmatpush1.msra.mxu0 0.0
    %1329 = vmatprep.subr.mxu0 0.0
    %1330 = vmatpush1.msra.mxu0 0.0
    %1331 = vmatprep.subr.mxu0 0.0
    %1332 = vmatpush1.msra.mxu0 0.0
    %1333 = vmatprep.subr.mxu0 0.0
    %1334 = vmatpush1.msra.mxu0 0.0
    %1335 = vmatprep.subr.mxu0 0.0
    %1336 = vmatpush1.msra.mxu0 0.0
    %1337 = vmatprep.subr.mxu0 0.0
    %1338 = vmatpush1.msra.mxu0 0.0
    %1339 = vmatprep.subr.mxu0 0.0
    %1340 = vmatpush1.msra.mxu0 0.0
    %1341 = vmatprep.subr.mxu0 0.0
    %1342 = vmatpush1.msra.mxu0 0.0
    %1343 = vmatprep.mubr.f32.mxu0 0.0
    %1344 = vmatmul.mubr.f32.gmra.mrb[0].mxu0 %v1277
    %v1345 = vpop.f32.mrb[0].mxu0
    %v1346 = vadd.f32 0.0, %v1345
    %v1347 = vpop.f32.mrb[0].mxu0
    %1348 = vdwg.mxu0
    %v1350 = vrot.slane %v1346, 2
    %v1352 = vadd.f32 %v316, %v1350
    %v1353 = vxor.u32 %v1274, 2147483648
    %v1354 = vmul.f32 %v1353, 1.442695
    %v1355 = vpow.pop %v1354
    %v1356 = vadd.f32 %v1355, 1.0
    %v1357 = vrcp.pop %v1356
    %v1358 = vmul.f32 1.0, %v1357
    %v1359 = vtanh.pop %v1274
    %v1361 = vrot.slane %v1153, 6
    %v1363 = vmul.f32 %v1358, %v1361
    %1365 = vrot.lane.b32.xlu0 %v1359, 32
    %v1366 = vpop.permute.xlu0 %1365
    %v1368 = vmul.f32 %v1358, %v1366
    %1370 = vrot.lane.b32.xlu0 %v1368, 32
    %v1371 = vpop.permute.xlu0 %1370
    %v1373 = vadd.f32 %v1363, %v1371
    %v1374 = vtanh.pop %v1373
    %1376 = vrot.lane.b32.xlu0 %v1374, 32
    %v1377 = vpop.permute.xlu0 %1376
    %v1379 = vmul.f32 %v1358, %v1377
    %v1380 = vxor.u32 %v1352, 2147483648
    %v1381 = vmul.f32 %v1380, 1.442695
    %v1382 = vpow.pop %v1381
    %v1383 = vadd.f32 %v1382, 1.0
    %v1384 = vrcp.pop %v1383
    %v1385 = vmul.f32 1.0, %v1384
    %v1386 = vtanh.pop %v1352
    %v1388 = vrot.slane %v1180, 2
    %v1390 = vmul.f32 %v1385, %v1388
    %1392 = vrot.lane.b32.xlu0 %v1386, 32
    %v1393 = vpop.permute.xlu0 %1392
    %v1395 = vmul.f32 %v1385, %v1393
    %1397 = vrot.lane.b32.xlu0 %v1395, 32
    %v1398 = vpop.permute.xlu0 %1397
    %v1400 = vadd.f32 %v1390, %v1398
    %v1401 = vtanh.pop %v1400
    %1403 = vrot.lane.b32.xlu0 %v1401, 32
    %v1404 = vpop.permute.xlu0 %1403
    %v1406 = vmul.f32 %v1385, %v1404
    %1408 = vrot.lane.b32.xlu0 %v1379, 64
    %v1409 = vpop.permute.xlu0 %1408
    %1411 = vst.msk [vmem:[#allocation2 + $0x8] sm:$0x3] %vm525, %v1409
    %1413 = vrot.lane.b32.xlu0 %v1406, 96
    %v1414 = vpop.permute.xlu0 %1413
    %1416 = vst.msk [vmem:[#allocation2] sm:$0xc0] %vm531, %v1414
    %v1417 = vsel %vm324, %v1409, 0
    %1419 = vmatprep.subr.mxu0 0.0
    %1420 = vmatpush1.msra.mxu0 %v220
    %1421 = vmatprep.subr.mxu0 0.0
    %1422 = vmatpush1.msra.mxu0 %v221
    %1423 = vmatprep.subr.mxu0 0.0
    %1424 = vmatpush1.msra.mxu0 %v222
    %1425 = vmatprep.subr.mxu0 0.0
    %1426 = vmatpush1.msra.mxu0 %v223
    %1427 = vmatprep.subr.mxu0 0.0
    %1428 = vmatpush1.msra.mxu0 0.0
    %1429 = vmatprep.subr.mxu0 0.0
    %1430 = vmatpush1.msra.mxu0 0.0
    %1431 = vmatprep.subr.mxu0 0.0
    %1432 = vmatpush1.msra.mxu0 0.0
    %1433 = vmatprep.subr.mxu0 0.0
    %1434 = vmatpush1.msra.mxu0 0.0
    %1435 = vmatprep.subr.mxu0 0.0
    %1436 = vmatpush1.msra.mxu0 0.0
    %1437 = vmatprep.subr.mxu0 0.0
    %1438 = vmatpush1.msra.mxu0 0.0
    %1439 = vmatprep.subr.mxu0 0.0
    %1440 = vmatpush1.msra.mxu0 0.0
    %1441 = vmatprep.subr.mxu0 0.0
    %1442 = vmatpush1.msra.mxu0 0.0
    %1443 = vmatprep.subr.mxu0 0.0
    %1444 = vmatpush1.msra.mxu0 0.0
    %1445 = vmatprep.subr.mxu0 0.0
    %1446 = vmatpush1.msra.mxu0 0.0
    %1447 = vmatprep.subr.mxu0 0.0
    %1448 = vmatpush1.msra.mxu0 0.0
    %1449 = vmatprep.subr.mxu0 0.0
    %1450 = vmatpush1.msra.mxu0 0.0
    %1451 = vmatprep.subr.mxu0 0.0
    %1452 = vmatpush1.msra.mxu0 0.0
    %1453 = vmatprep.subr.mxu0 0.0
    %1454 = vmatpush1.msra.mxu0 0.0
    %1455 = vmatprep.subr.mxu0 0.0
    %1456 = vmatpush1.msra.mxu0 0.0
    %1457 = vmatprep.subr.mxu0 0.0
    %1458 = vmatpush1.msra.mxu0 0.0
    %1459 = vmatprep.subr.mxu0 0.0
    %1460 = vmatpush1.msra.mxu0 0.0
    %1461 = vmatprep.subr.mxu0 0.0
    %1462 = vmatpush1.msra.mxu0 0.0
    %1463 = vmatprep.subr.mxu0 0.0
    %1464 = vmatpush1.msra.mxu0 0.0
    %1465 = vmatprep.subr.mxu0 0.0
    %1466 = vmatpush1.msra.mxu0 0.0
    %1467 = vmatprep.subr.mxu0 0.0
    %1468 = vmatpush1.msra.mxu0 0.0
    %1469 = vmatprep.subr.mxu0 0.0
    %1470 = vmatpush1.msra.mxu0 0.0
    %1471 = vmatprep.subr.mxu0 0.0
    %1472 = vmatpush1.msra.mxu0 0.0
    %1473 = vmatprep.subr.mxu0 0.0
    %1474 = vmatpush1.msra.mxu0 0.0
    %1475 = vmatprep.subr.mxu0 0.0
    %1476 = vmatpush1.msra.mxu0 0.0
    %1477 = vmatprep.subr.mxu0 0.0
    %1478 = vmatpush1.msra.mxu0 0.0
    %1479 = vmatprep.subr.mxu0 0.0
    %1480 = vmatpush1.msra.mxu0 0.0
    %1481 = vmatprep.subr.mxu0 0.0
    %1482 = vmatpush1.msra.mxu0 0.0
    %1483 = vmatprep.mubr.f32.mxu0 0.0
    %1484 = vmatmul.mubr.f32.gmra.mrb[0].mxu0 %v1417
    %v1485 = vpop.f32.mrb[0].mxu0
    %v1486 = vadd.f32 0.0, %v1485
    %v1487 = vpop.f32.mrb[0].mxu0
    %1488 = vdwg.mxu0
    %v1490 = vrot.slane %v1486, 6
    %v1492 = vadd.f32 %v320, %v1490
    %v1493 = vrot.slane %v1406, 6
    %1494 = vrot.lane.b32.xlu0 %v1493, 64
    %v1495 = vpop.permute.xlu0 %1494
    %v1496 = vsel %vm324, %v1495, 0
    %1498 = vmatprep.subr.mxu0 0.0
    %1499 = vmatpush1.msra.mxu0 %v224
    %1500 = vmatprep.subr.mxu0 0.0
    %1501 = vmatpush1.msra.mxu0 %v225
    %1502 = vmatprep.subr.mxu0 0.0
    %1503 = vmatpush1.msra.mxu0 %v226
    %1504 = vmatprep.subr.mxu0 0.0
    %1505 = vmatpush1.msra.mxu0 %v227
    %1506 = vmatprep.subr.mxu0 0.0
    %1507 = vmatpush1.msra.mxu0 0.0
    %1508 = vmatprep.subr.mxu0 0.0
    %1509 = vmatpush1.msra.mxu0 0.0
    %1510 = vmatprep.subr.mxu0 0.0
    %1511 = vmatpush1.msra.mxu0 0.0
    %1512 = vmatprep.subr.mxu0 0.0
    %1513 = vmatpush1.msra.mxu0 0.0
    %1514 = vmatprep.subr.mxu0 0.0
    %1515 = vmatpush1.msra.mxu0 0.0
    %1516 = vmatprep.subr.mxu0 0.0
    %1517 = vmatpush1.msra.mxu0 0.0
    %1518 = vmatprep.subr.mxu0 0.0
    %1519 = vmatpush1.msra.mxu0 0.0
    %1520 = vmatprep.subr.mxu0 0.0
    %1521 = vmatpush1.msra.mxu0 0.0
    %1522 = vmatprep.subr.mxu0 0.0
    %1523 = vmatpush1.msra.mxu0 0.0
    %1524 = vmatprep.subr.mxu0 0.0
    %1525 = vmatpush1.msra.mxu0 0.0
    %1526 = vmatprep.subr.mxu0 0.0
    %1527 = vmatpush1.msra.mxu0 0.0
    %1528 = vmatprep.subr.mxu0 0.0
    %1529 = vmatpush1.msra.mxu0 0.0
    %1530 = vmatprep.subr.mxu0 0.0
    %1531 = vmatpush1.msra.mxu0 0.0
    %1532 = vmatprep.subr.mxu0 0.0
    %1533 = vmatpush1.msra.mxu0 0.0
    %1534 = vmatprep.subr.mxu0 0.0
    %1535 = vmatpush1.msra.mxu0 0.0
    %1536 = vmatprep.subr.mxu0 0.0
    %1537 = vmatpush1.msra.mxu0 0.0
    %1538 = vmatprep.subr.mxu0 0.0
    %1539 = vmatpush1.msra.mxu0 0.0
    %1540 = vmatprep.subr.mxu0 0.0
    %1541 = vmatpush1.msra.mxu0 0.0
    %1542 = vmatprep.subr.mxu0 0.0
    %1543 = vmatpush1.msra.mxu0 0.0
    %1544 = vmatprep.subr.mxu0 0.0
    %1545 = vmatpush1.msra.mxu0 0.0
    %1546 = vmatprep.subr.mxu0 0.0
    %1547 = vmatpush1.msra.mxu0 0.0
    %1548 = vmatprep.subr.mxu0 0.0
    %1549 = vmatpush1.msra.mxu0 0.0
    %1550 = vmatprep.subr.mxu0 0.0
    %1551 = vmatpush1.msra.mxu0 0.0
    %1552 = vmatprep.subr.mxu0 0.0
    %1553 = vmatpush1.msra.mxu0 0.0
    %1554 = vmatprep.subr.mxu0 0.0
    %1555 = vmatpush1.msra.mxu0 0.0
    %1556 = vmatprep.subr.mxu0 0.0
    %1557 = vmatpush1.msra.mxu0 0.0
    %1558 = vmatprep.subr.mxu0 0.0
    %1559 = vmatpush1.msra.mxu0 0.0
    %1560 = vmatprep.subr.mxu0 0.0
    %1561 = vmatpush1.msra.mxu0 0.0
    %1562 = vmatprep.mubr.f32.mxu0 0.0
    %1563 = vmatmul.mubr.f32.gmra.mrb[0].mxu0 %v1496
    %v1564 = vpop.f32.mrb[0].mxu0
    %v1565 = vadd.f32 0.0, %v1564
    %v1566 = vpop.f32.mrb[0].mxu0
    %1567 = vdwg.mxu0
    %v1569 = vrot.slane %v1565, 4
    %v1571 = vadd.f32 %v316, %v1569
    %v1572 = vxor.u32 %v1492, 2147483648
    %v1573 = vmul.f32 %v1572, 1.442695
    %v1574 = vpow.pop %v1573
    %v1575 = vadd.f32 %v1574, 1.0
    %v1576 = vrcp.pop %v1575
    %v1577 = vmul.f32 1.0, %v1576
    %v1578 = vtanh.pop %v1492
    %v1580 = vrot.slane %v1373, 6
    %v1582 = vmul.f32 %v1577, %v1580
    %1584 = vrot.lane.b32.xlu0 %v1578, 32
    %v1585 = vpop.permute.xlu0 %1584
    %v1587 = vmul.f32 %v1577, %v1585
    %1589 = vrot.lane.b32.xlu0 %v1587, 32
    %v1590 = vpop.permute.xlu0 %1589
    %v1592 = vadd.f32 %v1582, %v1590
    %v1593 = vtanh.pop %v1592
    %1595 = vrot.lane.b32.xlu0 %v1593, 32
    %v1596 = vpop.permute.xlu0 %1595
    %v1598 = vmul.f32 %v1577, %v1596
    %v1599 = vxor.u32 %v1571, 2147483648
    %v1600 = vmul.f32 %v1599, 1.442695
    %v1601 = vpow.pop %v1600
    %v1602 = vadd.f32 %v1601, 1.0
    %v1603 = vrcp.pop %v1602
    %v1604 = vmul.f32 1.0, %v1603
    %v1605 = vtanh.pop %v1571
    %v1607 = vrot.slane %v1400, 2
    %v1609 = vmul.f32 %v1604, %v1607
    %1611 = vrot.lane.b32.xlu0 %v1605, 32
    %v1612 = vpop.permute.xlu0 %1611
    %v1614 = vmul.f32 %v1604, %v1612
    %1616 = vrot.lane.b32.xlu0 %v1614, 32
    %v1617 = vpop.permute.xlu0 %1616
    %v1619 = vadd.f32 %v1609, %v1617
    %v1620 = vtanh.pop %v1619
    %1622 = vrot.lane.b32.xlu0 %v1620, 32
    %v1623 = vpop.permute.xlu0 %1622
    %v1625 = vmul.f32 %v1604, %v1623
    %1627 = vrot.lane.b32.xlu0 %v1598, 64
    %v1628 = vpop.permute.xlu0 %1627
    %1630 = vst.msk [vmem:[#allocation2 + $0x8] sm:$0xc] %vm746, %v1628
    %1632 = vrot.lane.b32.xlu0 %v1625, 96
    %v1633 = vpop.permute.xlu0 %1632
    %1635 = vst.msk [vmem:[#allocation2] sm:$0x30] %vm752, %v1633
    %v1636 = vrot.slane %v1598, 2
    %1637 = vrot.lane.b32.xlu0 %v1636, 64
    %v1638 = vpop.permute.xlu0 %1637
    %v1639 = vsel %vm324, %v1638, 0
    %1641 = vmatprep.subr.mxu0 0.0
    %1642 = vmatpush1.msra.mxu0 %v220
    %1643 = vmatprep.subr.mxu0 0.0
    %1644 = vmatpush1.msra.mxu0 %v221
    %1645 = vmatprep.subr.mxu0 0.0
    %1646 = vmatpush1.msra.mxu0 %v222
    %1647 = vmatprep.subr.mxu0 0.0
    %1648 = vmatpush1.msra.mxu0 %v223
    %1649 = vmatprep.subr.mxu0 0.0
    %1650 = vmatpush1.msra.mxu0 0.0
    %1651 = vmatprep.subr.mxu0 0.0
    %1652 = vmatpush1.msra.mxu0 0.0
    %1653 = vmatprep.subr.mxu0 0.0
    %1654 = vmatpush1.msra.mxu0 0.0
    %1655 = vmatprep.subr.mxu0 0.0
    %1656 = vmatpush1.msra.mxu0 0.0
    %1657 = vmatprep.subr.mxu0 0.0
    %1658 = vmatpush1.msra.mxu0 0.0
    %1659 = vmatprep.subr.mxu0 0.0
    %1660 = vmatpush1.msra.mxu0 0.0
    %1661 = vmatprep.subr.mxu0 0.0
    %1662 = vmatpush1.msra.mxu0 0.0
    %1663 = vmatprep.subr.mxu0 0.0
    %1664 = vmatpush1.msra.mxu0 0.0
    %1665 = vmatprep.subr.mxu0 0.0
    %1666 = vmatpush1.msra.mxu0 0.0
    %1667 = vmatprep.subr.mxu0 0.0
    %1668 = vmatpush1.msra.mxu0 0.0
    %1669 = vmatprep.subr.mxu0 0.0
    %1670 = vmatpush1.msra.mxu0 0.0
    %1671 = vmatprep.subr.mxu0 0.0
    %1672 = vmatpush1.msra.mxu0 0.0
    %1673 = vmatprep.subr.mxu0 0.0
    %1674 = vmatpush1.msra.mxu0 0.0
    %1675 = vmatprep.subr.mxu0 0.0
    %1676 = vmatpush1.msra.mxu0 0.0
    %1677 = vmatprep.subr.mxu0 0.0
    %1678 = vmatpush1.msra.mxu0 0.0
    %1679 = vmatprep.subr.mxu0 0.0
    %1680 = vmatpush1.msra.mxu0 0.0
    %1681 = vmatprep.subr.mxu0 0.0
    %1682 = vmatpush1.msra.mxu0 0.0
    %1683 = vmatprep.subr.mxu0 0.0
    %1684 = vmatpush1.msra.mxu0 0.0
    %1685 = vmatprep.subr.mxu0 0.0
    %1686 = vmatpush1.msra.mxu0 0.0
    %1687 = vmatprep.subr.mxu0 0.0
    %1688 = vmatpush1.msra.mxu0 0.0
    %1689 = vmatprep.subr.mxu0 0.0
    %1690 = vmatpush1.msra.mxu0 0.0
    %1691 = vmatprep.subr.mxu0 0.0
    %1692 = vmatpush1.msra.mxu0 0.0
    %1693 = vmatprep.subr.mxu0 0.0
    %1694 = vmatpush1.msra.mxu0 0.0
    %1695 = vmatprep.subr.mxu0 0.0
    %1696 = vmatpush1.msra.mxu0 0.0
    %1697 = vmatprep.subr.mxu0 0.0
    %1698 = vmatpush1.msra.mxu0 0.0
    %1699 = vmatprep.subr.mxu0 0.0
    %1700 = vmatpush1.msra.mxu0 0.0
    %1701 = vmatprep.subr.mxu0 0.0
    %1702 = vmatpush1.msra.mxu0 0.0
    %1703 = vmatprep.subr.mxu0 0.0
    %1704 = vmatpush1.msra.mxu0 0.0
    %1705 = vmatprep.mubr.f32.mxu0 0.0
    %1706 = vmatmul.mubr.f32.gmra.mrb[0].mxu0 %v1639
    %v1707 = vpop.f32.mrb[0].mxu0
    %v1708 = vadd.f32 0.0, %v1707
    %v1709 = vpop.f32.mrb[0].mxu0
    %1710 = vdwg.mxu0
    %v1712 = vrot.slane %v1708, 4
    %v1714 = vadd.f32 %v320, %v1712
    %v1715 = vrot.slane %v1625, 4
    %1716 = vrot.lane.b32.xlu0 %v1715, 64
    %v1717 = vpop.permute.xlu0 %1716
    %v1718 = vsel %vm324, %v1717, 0
    %1720 = vmatprep.subr.mxu0 0.0
    %1721 = vmatpush1.msra.mxu0 %v224
    %1722 = vmatprep.subr.mxu0 0.0
    %1723 = vmatpush1.msra.mxu0 %v225
    %1724 = vmatprep.subr.mxu0 0.0
    %1725 = vmatpush1.msra.mxu0 %v226
    %1726 = vmatprep.subr.mxu0 0.0
    %1727 = vmatpush1.msra.mxu0 %v227
    %1728 = vmatprep.subr.mxu0 0.0
    %1729 = vmatpush1.msra.mxu0 0.0
    %1730 = vmatprep.subr.mxu0 0.0
    %1731 = vmatpush1.msra.mxu0 0.0
    %1732 = vmatprep.subr.mxu0 0.0
    %1733 = vmatpush1.msra.mxu0 0.0
    %1734 = vmatprep.subr.mxu0 0.0
    %1735 = vmatpush1.msra.mxu0 0.0
    %1736 = vmatprep.subr.mxu0 0.0
    %1737 = vmatpush1.msra.mxu0 0.0
    %1738 = vmatprep.subr.mxu0 0.0
    %1739 = vmatpush1.msra.mxu0 0.0
    %1740 = vmatprep.subr.mxu0 0.0
    %1741 = vmatpush1.msra.mxu0 0.0
    %1742 = vmatprep.subr.mxu0 0.0
    %1743 = vmatpush1.msra.mxu0 0.0
    %1744 = vmatprep.subr.mxu0 0.0
    %1745 = vmatpush1.msra.mxu0 0.0
    %1746 = vmatprep.subr.mxu0 0.0
    %1747 = vmatpush1.msra.mxu0 0.0
    %1748 = vmatprep.subr.mxu0 0.0
    %1749 = vmatpush1.msra.mxu0 0.0
    %1750 = vmatprep.subr.mxu0 0.0
    %1751 = vmatpush1.msra.mxu0 0.0
    %1752 = vmatprep.subr.mxu0 0.0
    %1753 = vmatpush1.msra.mxu0 0.0
    %1754 = vmatprep.subr.mxu0 0.0
    %1755 = vmatpush1.msra.mxu0 0.0
    %1756 = vmatprep.subr.mxu0 0.0
    %1757 = vmatpush1.msra.mxu0 0.0
    %1758 = vmatprep.subr.mxu0 0.0
    %1759 = vmatpush1.msra.mxu0 0.0
    %1760 = vmatprep.subr.mxu0 0.0
    %1761 = vmatpush1.msra.mxu0 0.0
    %1762 = vmatprep.subr.mxu0 0.0
    %1763 = vmatpush1.msra.mxu0 0.0
    %1764 = vmatprep.subr.mxu0 0.0
    %1765 = vmatpush1.msra.mxu0 0.0
    %1766 = vmatprep.subr.mxu0 0.0
    %1767 = vmatpush1.msra.mxu0 0.0
    %1768 = vmatprep.subr.mxu0 0.0
    %1769 = vmatpush1.msra.mxu0 0.0
    %1770 = vmatprep.subr.mxu0 0.0
    %1771 = vmatpush1.msra.mxu0 0.0
    %1772 = vmatprep.subr.mxu0 0.0
    %1773 = vmatpush1.msra.mxu0 0.0
    %1774 = vmatprep.subr.mxu0 0.0
    %1775 = vmatpush1.msra.mxu0 0.0
    %1776 = vmatprep.subr.mxu0 0.0
    %1777 = vmatpush1.msra.mxu0 0.0
    %1778 = vmatprep.subr.mxu0 0.0
    %1779 = vmatpush1.msra.mxu0 0.0
    %1780 = vmatprep.subr.mxu0 0.0
    %1781 = vmatpush1.msra.mxu0 0.0
    %1782 = vmatprep.subr.mxu0 0.0
    %1783 = vmatpush1.msra.mxu0 0.0
    %1784 = vmatprep.mubr.f32.mxu0 0.0
    %1785 = vmatmul.mubr.f32.gmra.mrb[0].mxu0 %v1718
    %v1786 = vpop.f32.mrb[0].mxu0
    %v1787 = vadd.f32 0.0, %v1786
    %v1788 = vpop.f32.mrb[0].mxu0
    %1789 = vdwg.mxu0
    %v1791 = vrot.slane %v1787, 6
    %v1793 = vadd.f32 %v316, %v1791
    %v1794 = vxor.u32 %v1714, 2147483648
    %v1795 = vmul.f32 %v1794, 1.442695
    %v1796 = vpow.pop %v1795
    %v1797 = vadd.f32 %v1796, 1.0
    %v1798 = vrcp.pop %v1797
    %v1799 = vmul.f32 1.0, %v1798
    %v1800 = vtanh.pop %v1714
    %v1802 = vrot.slane %v1592, 6
    %v1804 = vmul.f32 %v1799, %v1802
    %1806 = vrot.lane.b32.xlu0 %v1800, 32
    %v1807 = vpop.permute.xlu0 %1806
    %v1809 = vmul.f32 %v1799, %v1807
    %1811 = vrot.lane.b32.xlu0 %v1809, 32
    %v1812 = vpop.permute.xlu0 %1811
    %v1814 = vadd.f32 %v1804, %v1812
    %v1815 = vtanh.pop %v1814
    %1817 = vrot.lane.b32.xlu0 %v1815, 32
    %v1818 = vpop.permute.xlu0 %1817
    %v1820 = vmul.f32 %v1799, %v1818
    %v1821 = vxor.u32 %v1793, 2147483648
    %v1822 = vmul.f32 %v1821, 1.442695
    %v1823 = vpow.pop %v1822
    %v1824 = vadd.f32 %v1823, 1.0
    %v1825 = vrcp.pop %v1824
    %v1826 = vmul.f32 1.0, %v1825
    %v1827 = vtanh.pop %v1793
    %v1829 = vrot.slane %v1619, 2
    %v1831 = vmul.f32 %v1826, %v1829
    %1833 = vrot.lane.b32.xlu0 %v1827, 32
    %v1834 = vpop.permute.xlu0 %1833
    %v1836 = vmul.f32 %v1826, %v1834
    %1838 = vrot.lane.b32.xlu0 %v1836, 32
    %v1839 = vpop.permute.xlu0 %1838
    %v1841 = vadd.f32 %v1831, %v1839
    %v1842 = vtanh.pop %v1841
    %1844 = vrot.lane.b32.xlu0 %v1842, 32
    %v1845 = vpop.permute.xlu0 %1844
    %v1847 = vmul.f32 %v1826, %v1845
    %1849 = vrot.lane.b32.xlu0 %v1820, 64
    %v1850 = vpop.permute.xlu0 %1849
    %1852 = vst.msk [vmem:[#allocation2 + $0x8] sm:$0x30] %vm970, %v1850
    %1854 = vrot.lane.b32.xlu0 %v1847, 96
    %v1855 = vpop.permute.xlu0 %1854
    %1857 = vst.msk [vmem:[#allocation2] sm:$0xc] %vm976, %v1855
    %v1858 = vrot.slane %v1820, 4
    %1859 = vrot.lane.b32.xlu0 %v1858, 64
    %v1860 = vpop.permute.xlu0 %1859
    %v1861 = vsel %vm324, %v1860, 0
    %1863 = vmatprep.subr.mxu0 0.0
    %1864 = vmatpush1.msra.mxu0 %v220
    %1865 = vmatprep.subr.mxu0 0.0
    %1866 = vmatpush1.msra.mxu0 %v221
    %1867 = vmatprep.subr.mxu0 0.0
    %1868 = vmatpush1.msra.mxu0 %v222
    %1869 = vmatprep.subr.mxu0 0.0
    %1870 = vmatpush1.msra.mxu0 %v223
    %1871 = vmatprep.subr.mxu0 0.0
    %1872 = vmatpush1.msra.mxu0 0.0
    %1873 = vmatprep.subr.mxu0 0.0
    %1874 = vmatpush1.msra.mxu0 0.0
    %1875 = vmatprep.subr.mxu0 0.0
    %1876 = vmatpush1.msra.mxu0 0.0
    %1877 = vmatprep.subr.mxu0 0.0
    %1878 = vmatpush1.msra.mxu0 0.0
    %1879 = vmatprep.subr.mxu0 0.0
    %1880 = vmatpush1.msra.mxu0 0.0
    %1881 = vmatprep.subr.mxu0 0.0
    %1882 = vmatpush1.msra.mxu0 0.0
    %1883 = vmatprep.subr.mxu0 0.0
    %1884 = vmatpush1.msra.mxu0 0.0
    %1885 = vmatprep.subr.mxu0 0.0
    %1886 = vmatpush1.msra.mxu0 0.0
    %1887 = vmatprep.subr.mxu0 0.0
    %1888 = vmatpush1.msra.mxu0 0.0
    %1889 = vmatprep.subr.mxu0 0.0
    %1890 = vmatpush1.msra.mxu0 0.0
    %1891 = vmatprep.subr.mxu0 0.0
    %1892 = vmatpush1.msra.mxu0 0.0
    %1893 = vmatprep.subr.mxu0 0.0
    %1894 = vmatpush1.msra.mxu0 0.0
    %1895 = vmatprep.subr.mxu0 0.0
    %1896 = vmatpush1.msra.mxu0 0.0
    %1897 = vmatprep.subr.mxu0 0.0
    %1898 = vmatpush1.msra.mxu0 0.0
    %1899 = vmatprep.subr.mxu0 0.0
    %1900 = vmatpush1.msra.mxu0 0.0
    %1901 = vmatprep.subr.mxu0 0.0
    %1902 = vmatpush1.msra.mxu0 0.0
    %1903 = vmatprep.subr.mxu0 0.0
    %1904 = vmatpush1.msra.mxu0 0.0
    %1905 = vmatprep.subr.mxu0 0.0
    %1906 = vmatpush1.msra.mxu0 0.0
    %1907 = vmatprep.subr.mxu0 0.0
    %1908 = vmatpush1.msra.mxu0 0.0
    %1909 = vmatprep.subr.mxu0 0.0
    %1910 = vmatpush1.msra.mxu0 0.0
    %1911 = vmatprep.subr.mxu0 0.0
    %1912 = vmatpush1.msra.mxu0 0.0
    %1913 = vmatprep.subr.mxu0 0.0
    %1914 = vmatpush1.msra.mxu0 0.0
    %1915 = vmatprep.subr.mxu0 0.0
    %1916 = vmatpush1.msra.mxu0 0.0
    %1917 = vmatprep.subr.mxu0 0.0
    %1918 = vmatpush1.msra.mxu0 0.0
    %1919 = vmatprep.subr.mxu0 0.0
    %1920 = vmatpush1.msra.mxu0 0.0
    %1921 = vmatprep.subr.mxu0 0.0
    %1922 = vmatpush1.msra.mxu0 0.0
    %1923 = vmatprep.subr.mxu0 0.0
    %1924 = vmatpush1.msra.mxu0 0.0
    %1925 = vmatprep.subr.mxu0 0.0
    %1926 = vmatpush1.msra.mxu0 0.0
    %1927 = vmatprep.mubr.f32.mxu0 0.0
    %1928 = vmatmul.mubr.f32.gmra.mrb[0].mxu0 %v1861
    %v1929 = vpop.f32.mrb[0].mxu0
    %v1930 = vadd.f32 0.0, %v1929
    %v1931 = vpop.f32.mrb[0].mxu0
    %1932 = vdwg.mxu0
    %v1934 = vrot.slane %v1930, 2
    %v1936 = vadd.f32 %v320, %v1934
    %v1937 = vrot.slane %v1847, 2
    %1938 = vrot.lane.b32.xlu0 %v1937, 64
    %v1939 = vpop.permute.xlu0 %1938
    %v1940 = vsel %vm324, %v1939, 0
    %1942 = vmatprep.subr.mxu0 0.0
    %1943 = vmatpush1.msra.mxu0 %v224
    %1944 = vmatprep.subr.mxu0 0.0
    %1945 = vmatpush1.msra.mxu0 %v225
    %1946 = vmatprep.subr.mxu0 0.0
    %1947 = vmatpush1.msra.mxu0 %v226
    %1948 = vmatprep.subr.mxu0 0.0
    %1949 = vmatpush1.msra.mxu0 %v227
    %1950 = vmatprep.subr.mxu0 0.0
    %1951 = vmatpush1.msra.mxu0 0.0
    %1952 = vmatprep.subr.mxu0 0.0
    %1953 = vmatpush1.msra.mxu0 0.0
    %1954 = vmatprep.subr.mxu0 0.0
    %1955 = vmatpush1.msra.mxu0 0.0
    %1956 = vmatprep.subr.mxu0 0.0
    %1957 = vmatpush1.msra.mxu0 0.0
    %1958 = vmatprep.subr.mxu0 0.0
    %1959 = vmatpush1.msra.mxu0 0.0
    %1960 = vmatprep.subr.mxu0 0.0
    %1961 = vmatpush1.msra.mxu0 0.0
    %1962 = vmatprep.subr.mxu0 0.0
    %1963 = vmatpush1.msra.mxu0 0.0
    %1964 = vmatprep.subr.mxu0 0.0
    %1965 = vmatpush1.msra.mxu0 0.0
    %1966 = vmatprep.subr.mxu0 0.0
    %1967 = vmatpush1.msra.mxu0 0.0
    %1968 = vmatprep.subr.mxu0 0.0
    %1969 = vmatpush1.msra.mxu0 0.0
    %1970 = vmatprep.subr.mxu0 0.0
    %1971 = vmatpush1.msra.mxu0 0.0
    %1972 = vmatprep.subr.mxu0 0.0
    %1973 = vmatpush1.msra.mxu0 0.0
    %1974 = vmatprep.subr.mxu0 0.0
    %1975 = vmatpush1.msra.mxu0 0.0
    %1976 = vmatprep.subr.mxu0 0.0
    %1977 = vmatpush1.msra.mxu0 0.0
    %1978 = vmatprep.subr.mxu0 0.0
    %1979 = vmatpush1.msra.mxu0 0.0
    %1980 = vmatprep.subr.mxu0 0.0
    %1981 = vmatpush1.msra.mxu0 0.0
    %1982 = vmatprep.subr.mxu0 0.0
    %1983 = vmatpush1.msra.mxu0 0.0
    %1984 = vmatprep.subr.mxu0 0.0
    %1985 = vmatpush1.msra.mxu0 0.0
    %1986 = vmatprep.subr.mxu0 0.0
    %1987 = vmatpush1.msra.mxu0 0.0
    %1988 = vmatprep.subr.mxu0 0.0
    %1989 = vmatpush1.msra.mxu0 0.0
    %1990 = vmatprep.subr.mxu0 0.0
    %1991 = vmatpush1.msra.mxu0 0.0
    %1992 = vmatprep.subr.mxu0 0.0
    %1993 = vmatpush1.msra.mxu0 0.0
    %1994 = vmatprep.subr.mxu0 0.0
    %1995 = vmatpush1.msra.mxu0 0.0
    %1996 = vmatprep.subr.mxu0 0.0
    %1997 = vmatpush1.msra.mxu0 0.0
    %1998 = vmatprep.subr.mxu0 0.0
    %1999 = vmatpush1.msra.mxu0 0.0
    %2000 = vmatprep.subr.mxu0 0.0
    %2001 = vmatpush1.msra.mxu0 0.0
    %2002 = vmatprep.subr.mxu0 0.0
    %2003 = vmatpush1.msra.mxu0 0.0
    %2004 = vmatprep.subr.mxu0 0.0
    %2005 = vmatpush1.msra.mxu0 0.0
    %2006 = vmatprep.mubr.f32.mxu0 0.0
    %2007 = vmatmul.mubr.f32.gmra.mrb[0].mxu0 %v1940
    %v2008 = vpop.f32.mrb[0].mxu0
    %v2009 = vadd.f32 0.0, %v2008
    %v2010 = vpop.f32.mrb[0].mxu0
    %2011 = vdwg.mxu0
    %v2012 = vadd.f32 %v316, %v2009
    %v2013 = vxor.u32 %v1936, 2147483648
    %v2014 = vmul.f32 %v2013, 1.442695
    %v2015 = vpow.pop %v2014
    %v2016 = vadd.f32 %v2015, 1.0
    %v2017 = vrcp.pop %v2016
    %v2018 = vmul.f32 1.0, %v2017
    %v2019 = vtanh.pop %v1936
    %v2021 = vrot.slane %v1814, 6
    %v2023 = vmul.f32 %v2018, %v2021
    %2025 = vrot.lane.b32.xlu0 %v2019, 32
    %v2026 = vpop.permute.xlu0 %2025
    %v2028 = vmul.f32 %v2018, %v2026
    %2030 = vrot.lane.b32.xlu0 %v2028, 32
    %v2031 = vpop.permute.xlu0 %2030
    %v2033 = vadd.f32 %v2023, %v2031
    %v2034 = vtanh.pop %v2033
    %2036 = vrot.lane.b32.xlu0 %v2034, 32
    %v2037 = vpop.permute.xlu0 %2036
    %v2039 = vmul.f32 %v2018, %v2037
    %v2040 = vxor.u32 %v2012, 2147483648
    %v2041 = vmul.f32 %v2040, 1.442695
    %v2042 = vpow.pop %v2041
    %v2043 = vadd.f32 %v2042, 1.0
    %v2044 = vrcp.pop %v2043
    %v2045 = vmul.f32 1.0, %v2044
    %v2046 = vtanh.pop %v2012
    %v2048 = vrot.slane %v1841, 2
    %v2050 = vmul.f32 %v2045, %v2048
    %2052 = vrot.lane.b32.xlu0 %v2046, 32
    %v2053 = vpop.permute.xlu0 %2052
    %v2055 = vmul.f32 %v2045, %v2053
    %2057 = vrot.lane.b32.xlu0 %v2055, 32
    %v2058 = vpop.permute.xlu0 %2057
    %v2060 = vadd.f32 %v2050, %v2058
    %v2061 = vtanh.pop %v2060
    %2063 = vrot.lane.b32.xlu0 %v2061, 32
    %v2064 = vpop.permute.xlu0 %2063
    %v2066 = vmul.f32 %v2045, %v2064
    %2068 = vrot.lane.b32.xlu0 %v2039, 64
    %v2069 = vpop.permute.xlu0 %2068
    %2071 = vst.msk [vmem:[#allocation2 + $0x8] sm:$0xc0] %vm1191, %v2069
    %2073 = vrot.lane.b32.xlu0 %v2066, 96
    %v2074 = vpop.permute.xlu0 %2073
    %2076 = vst.msk [vmem:[#allocation2] sm:$0x3] %vm1197, %v2074
    %2077 = vst.msk [vmem:[#allocation12 - $0x6] sm:$0xc0] %vm1191, %v2069
    %2078 = vrot.lane.b32.xlu0 %v2066, 64
    %v2079 = vpop.permute.xlu0 %2078
    %2081 = vst.msk [vmem:[#allocation12 + $0x2] sm:$0x3] %vm525, %v2079
    %2083 = vrot.lane.b32.xlu0 %v2033, 96
    %v2084 = vpop.permute.xlu0 %2083
    %2086 = vst.msk [vmem:[#allocation13 - $0x6] sm:$0xc0] %vm1191, %v2084
    %2088 = vrot.lane.b32.xlu0 %v2060, 96
    %v2089 = vpop.permute.xlu0 %2088
    %2091 = vst.msk [vmem:[#allocation13 + $0x2] sm:$0x3] %vm525, %v2089
    %v2092 = vld [vmem:[#allocation2] sm:$0xff]
    %v2093 = vld [vmem:[#allocation2 + $0x8] sm:$0xff]
    %v2094 = vld [vmem:[%s6] sm:$0xff]
    %v2095 = vld [vmem:[%s6 + $0x8] sm:$0xff]
    %v2096 = vld [vmem:[%s6 + $0x10] sm:$0xff]
    %v2097 = vld [vmem:[%s6 + $0x18] sm:$0xff]
    %v2098 = vld [vmem:[%s6 + $0x20] sm:$0xff]
    %v2099 = vld [vmem:[%s6 + $0x28] sm:$0xff]
    %v2100 = vld [vmem:[%s6 + $0x30] sm:$0xff]
    %v2101 = vld [vmem:[%s6 + $0x38] sm:$0xff]
    %v2102 = vld [vmem:[%s6 + $0x40] sm:$0xff]
    %v2103 = vld [vmem:[%s6 + $0x48] sm:$0xff]
    %v2104 = vld [vmem:[%s6 + $0x50] sm:$0xff]
    %v2105 = vld [vmem:[%s6 + $0x58] sm:$0xff]
    %v2106 = vld [vmem:[%s6 + $0x60] sm:$0xff]
    %v2107 = vld [vmem:[%s6 + $0x68] sm:$0xff]
    %v2108 = vld [vmem:[%s6 + $0x70] sm:$0xff]
    %v2109 = vld [vmem:[%s6 + $0x78] sm:$0xff]
    %v2110 = vld [vmem:[#allocation9] sm:$0xff]
    %v2111 = vld [vmem:[#allocation9 + $0x8] sm:$0xff]
    %v2112 = vld [vmem:[#allocation9 + $0x10] sm:$0xff]
    %v2113 = vld [vmem:[#allocation9 + $0x18] sm:$0xff]
    %v2114 = vld [vmem:[#allocation11] sm:$0xff]
    %v2115 = vld [vmem:[#allocation11 + $0x8] sm:$0xff]
    %v2116 = vld [vmem:[#allocation11 + $0x10] sm:$0xff]
    %v2117 = vld [vmem:[#allocation11 + $0x18] sm:$0xff]
    %v2118 = vld [vmem:[%s9] sm:$0x3]
    %v2120 = vlaneseq
    %v2121 = vshrl.u32 %v2120, 7
    %v2122 = vsub.s32 0, %v2121
    %v2123 = vrot.slane %v2118, %v2122
    %v2124 = vlaneseq
    %v2125 = vshrl.u32 %v2124, 7
    %v2126 = vsub.s32 1, %v2125
    %v2127 = vrot.slane %v2118, %v2126
    %vm2130 = vcmask 523264
    %v2132 = vsel %vm2130, %v2092, 0
    %v2135 = vsel %vm2130, %v2093, 0
    %2137 = vmatprep.subr.mxu0 %v2095
    %2138 = vmatpush1.msra.mxu0 %v2094
    %2139 = vmatprep.subr.mxu0 %v2097
    %2140 = vmatpush1.msra.mxu0 %v2096
    %2141 = vmatprep.subr.mxu0 %v2099
    %2142 = vmatpush1.msra.mxu0 %v2098
    %2143 = vmatprep.subr.mxu0 %v2101
    %2144 = vmatpush1.msra.mxu0 %v2100
    %2145 = vmatprep.subr.mxu0 %v2103
    %2146 = vmatpush1.msra.mxu0 %v2102
    %2147 = vmatprep.subr.mxu0 %v2105
    %2148 = vmatpush1.msra.mxu0 %v2104
    %2149 = vmatprep.subr.mxu0 %v2107
    %2150 = vmatpush1.msra.mxu0 %v2106
    %2151 = vmatprep.subr.mxu0 %v2109
    %2152 = vmatpush1.msra.mxu0 %v2108
    %2153 = vmatprep.subr.mxu0 0.0
    %2154 = vmatpush1.msra.mxu0 0.0
    %2155 = vmatprep.subr.mxu0 0.0
    %2156 = vmatpush1.msra.mxu0 0.0
    %2157 = vmatprep.subr.mxu0 0.0
    %2158 = vmatpush1.msra.mxu0 0.0
    %2159 = vmatprep.subr.mxu0 0.0
    %2160 = vmatpush1.msra.mxu0 0.0
    %2161 = vmatprep.subr.mxu0 0.0
    %2162 = vmatpush1.msra.mxu0 0.0
    %2163 = vmatprep.subr.mxu0 0.0
    %2164 = vmatpush1.msra.mxu0 0.0
    %2165 = vmatprep.subr.mxu0 0.0
    %2166 = vmatpush1.msra.mxu0 0.0
    %2167 = vmatprep.subr.mxu0 0.0
    %2168 = vmatpush1.msra.mxu0 0.0
    %2169 = vmatprep.subr.mxu0 0.0
    %2170 = vmatpush1.msra.mxu0 0.0
    %2171 = vmatprep.subr.mxu0 0.0
    %2172 = vmatpush1.msra.mxu0 0.0
    %2173 = vmatprep.subr.mxu0 0.0
    %2174 = vmatpush1.msra.mxu0 0.0
    %2175 = vmatprep.subr.mxu0 0.0
    %2176 = vmatpush1.msra.mxu0 0.0
    %2177 = vmatprep.subr.mxu0 0.0
    %2178 = vmatpush1.msra.mxu0 0.0
    %2179 = vmatprep.subr.mxu0 0.0
    %2180 = vmatpush1.msra.mxu0 0.0
    %2181 = vmatprep.subr.mxu0 0.0
    %2182 = vmatpush1.msra.mxu0 0.0
    %2183 = vmatprep.subr.mxu0 0.0
    %2184 = vmatpush1.msra.mxu0 0.0
    %2185 = vmatprep.subr.mxu0 0.0
    %2186 = vmatpush1.msra.mxu0 0.0
    %2187 = vmatprep.subr.mxu0 0.0
    %2188 = vmatpush1.msra.mxu0 0.0
    %2189 = vmatprep.subr.mxu0 0.0
    %2190 = vmatpush1.msra.mxu0 0.0
    %2191 = vmatprep.subr.mxu0 0.0
    %2192 = vmatpush1.msra.mxu0 0.0
    %2193 = vmatprep.subr.mxu0 0.0
    %2194 = vmatpush1.msra.mxu0 0.0
    %2195 = vmatprep.subr.mxu0 0.0
    %2196 = vmatpush1.msra.mxu0 0.0
    %2197 = vmatprep.subr.mxu0 0.0
    %2198 = vmatpush1.msra.mxu0 0.0
    %2199 = vmatprep.subr.mxu0 0.0
    %2200 = vmatpush1.msra.mxu0 0.0
    %2201 = vmatprep.mubr.f32.mxu0 0.0
    %2202 = vmatmul.mubr.f32.gmra.mrb[0].mxu0 %v2132
    %v2203 = vpop.f32.mrb[0].mxu0
    %v2204 = vadd.f32 %v2123, %v2203
    %v2205 = vpop.f32.mrb[0].mxu0
    %v2206 = vadd.f32 %v2127, %v2205
    %2207 = vmatprep.mubr.f32.mxu0 0.0
    %2208 = vmatmul.mubr.f32.gmra.mrb[0].mxu0 %v2135
    %v2209 = vpop.f32.mrb[0].mxu0
    %v2210 = vadd.f32 %v2123, %v2209
    %v2211 = vpop.f32.mrb[0].mxu0
    %v2212 = vadd.f32 %v2127, %v2211
    %2213 = vdwg.mxu0
    %2214 = vmatprep.subr.mxu0 0.0
    %2215 = vmatpush1.msra.mxu0 %v2110
    %2216 = vmatprep.subr.mxu0 0.0
    %2217 = vmatpush1.msra.mxu0 %v2111
    %2218 = vmatprep.subr.mxu0 0.0
    %2219 = vmatpush1.msra.mxu0 %v2112
    %2220 = vmatprep.subr.mxu0 0.0
    %2221 = vmatpush1.msra.mxu0 %v2113
    %2222 = vmatprep.subr.mxu0 0.0
    %2223 = vmatpush1.msra.mxu0 0.0
    %2224 = vmatprep.subr.mxu0 0.0
    %2225 = vmatpush1.msra.mxu0 0.0
    %2226 = vmatprep.subr.mxu0 0.0
    %2227 = vmatpush1.msra.mxu0 0.0
    %2228 = vmatprep.subr.mxu0 0.0
    %2229 = vmatpush1.msra.mxu0 0.0
    %2230 = vmatprep.subr.mxu0 0.0
    %2231 = vmatpush1.msra.mxu0 0.0
    %2232 = vmatprep.subr.mxu0 0.0
    %2233 = vmatpush1.msra.mxu0 0.0
    %2234 = vmatprep.subr.mxu0 0.0
    %2235 = vmatpush1.msra.mxu0 0.0
    %2236 = vmatprep.subr.mxu0 0.0
    %2237 = vmatpush1.msra.mxu0 0.0
    %2238 = vmatprep.subr.mxu0 0.0
    %2239 = vmatpush1.msra.mxu0 0.0
    %2240 = vmatprep.subr.mxu0 0.0
    %2241 = vmatpush1.msra.mxu0 0.0
    %2242 = vmatprep.subr.mxu0 0.0
    %2243 = vmatpush1.msra.mxu0 0.0
    %2244 = vmatprep.subr.mxu0 0.0
    %2245 = vmatpush1.msra.mxu0 0.0
    %2246 = vmatprep.subr.mxu0 0.0
    %2247 = vmatpush1.msra.mxu0 0.0
    %2248 = vmatprep.subr.mxu0 0.0
    %2249 = vmatpush1.msra.mxu0 0.0
    %2250 = vmatprep.subr.mxu0 0.0
    %2251 = vmatpush1.msra.mxu0 0.0
    %2252 = vmatprep.subr.mxu0 0.0
    %2253 = vmatpush1.msra.mxu0 0.0
    %2254 = vmatprep.subr.mxu0 0.0
    %2255 = vmatpush1.msra.mxu0 0.0
    %2256 = vmatprep.subr.mxu0 0.0
    %2257 = vmatpush1.msra.mxu0 0.0
    %2258 = vmatprep.subr.mxu0 0.0
    %2259 = vmatpush1.msra.mxu0 0.0
    %2260 = vmatprep.subr.mxu0 0.0
    %2261 = vmatpush1.msra.mxu0 0.0
    %2262 = vmatprep.subr.mxu0 0.0
    %2263 = vmatpush1.msra.mxu0 0.0
    %2264 = vmatprep.subr.mxu0 0.0
    %2265 = vmatpush1.msra.mxu0 0.0
    %2266 = vmatprep.subr.mxu0 0.0
    %2267 = vmatpush1.msra.mxu0 0.0
    %2268 = vmatprep.subr.mxu0 0.0
    %2269 = vmatpush1.msra.mxu0 0.0
    %2270 = vmatprep.subr.mxu0 0.0
    %2271 = vmatpush1.msra.mxu0 0.0
    %2272 = vmatprep.subr.mxu0 0.0
    %2273 = vmatpush1.msra.mxu0 0.0
    %2274 = vmatprep.subr.mxu0 0.0
    %2275 = vmatpush1.msra.mxu0 0.0
    %2276 = vmatprep.subr.mxu0 0.0
    %2277 = vmatpush1.msra.mxu0 0.0
    %2278 = vmatprep.mubr.f32.mxu0 0.0
    %2279 = vmatmul.mubr.f32.gmra.mrb[0].mxu0 %v326
    %v2280 = vpop.f32.mrb[0].mxu0
    %v2281 = vadd.f32 0.0, %v2280
    %v2282 = vpop.f32.mrb[0].mxu0
    %2283 = vdwg.mxu0
    %v2284 = vadd.f32 %v2204, %v2281
    %2285 = vmatprep.subr.mxu0 0.0
    %2286 = vmatpush1.msra.mxu0 %v2114
    %2287 = vmatprep.subr.mxu0 0.0
    %2288 = vmatpush1.msra.mxu0 %v2115
    %2289 = vmatprep.subr.mxu0 0.0
    %2290 = vmatpush1.msra.mxu0 %v2116
    %2291 = vmatprep.subr.mxu0 0.0
    %2292 = vmatpush1.msra.mxu0 %v2117
    %2293 = vmatprep.subr.mxu0 0.0
    %2294 = vmatpush1.msra.mxu0 0.0
    %2295 = vmatprep.subr.mxu0 0.0
    %2296 = vmatpush1.msra.mxu0 0.0
    %2297 = vmatprep.subr.mxu0 0.0
    %2298 = vmatpush1.msra.mxu0 0.0
    %2299 = vmatprep.subr.mxu0 0.0
    %2300 = vmatpush1.msra.mxu0 0.0
    %2301 = vmatprep.subr.mxu0 0.0
    %2302 = vmatpush1.msra.mxu0 0.0
    %2303 = vmatprep.subr.mxu0 0.0
    %2304 = vmatpush1.msra.mxu0 0.0
    %2305 = vmatprep.subr.mxu0 0.0
    %2306 = vmatpush1.msra.mxu0 0.0
    %2307 = vmatprep.subr.mxu0 0.0
    %2308 = vmatpush1.msra.mxu0 0.0
    %2309 = vmatprep.subr.mxu0 0.0
    %2310 = vmatpush1.msra.mxu0 0.0
    %2311 = vmatprep.subr.mxu0 0.0
    %2312 = vmatpush1.msra.mxu0 0.0
    %2313 = vmatprep.subr.mxu0 0.0
    %2314 = vmatpush1.msra.mxu0 0.0
    %2315 = vmatprep.subr.mxu0 0.0
    %2316 = vmatpush1.msra.mxu0 0.0
    %2317 = vmatprep.subr.mxu0 0.0
    %2318 = vmatpush1.msra.mxu0 0.0
    %2319 = vmatprep.subr.mxu0 0.0
    %2320 = vmatpush1.msra.mxu0 0.0
    %2321 = vmatprep.subr.mxu0 0.0
    %2322 = vmatpush1.msra.mxu0 0.0
    %2323 = vmatprep.subr.mxu0 0.0
    %2324 = vmatpush1.msra.mxu0 0.0
    %2325 = vmatprep.subr.mxu0 0.0
    %2326 = vmatpush1.msra.mxu0 0.0
    %2327 = vmatprep.subr.mxu0 0.0
    %2328 = vmatpush1.msra.mxu0 0.0
    %2329 = vmatprep.subr.mxu0 0.0
    %2330 = vmatpush1.msra.mxu0 0.0
    %2331 = vmatprep.subr.mxu0 0.0
    %2332 = vmatpush1.msra.mxu0 0.0
    %2333 = vmatprep.subr.mxu0 0.0
    %2334 = vmatpush1.msra.mxu0 0.0
    %2335 = vmatprep.subr.mxu0 0.0
    %2336 = vmatpush1.msra.mxu0 0.0
    %2337 = vmatprep.subr.mxu0 0.0
    %2338 = vmatpush1.msra.mxu0 0.0
    %2339 = vmatprep.subr.mxu0 0.0
    %2340 = vmatpush1.msra.mxu0 0.0
    %2341 = vmatprep.subr.mxu0 0.0
    %2342 = vmatpush1.msra.mxu0 0.0
    %2343 = vmatprep.subr.mxu0 0.0
    %2344 = vmatpush1.msra.mxu0 0.0
    %2345 = vmatprep.subr.mxu0 0.0
    %2346 = vmatpush1.msra.mxu0 0.0
    %2347 = vmatprep.subr.mxu0 0.0
    %2348 = vmatpush1.msra.mxu0 0.0
    %2349 = vmatprep.mubr.f32.mxu0 0.0
    %2350 = vmatmul.mubr.f32.gmra.mrb[0].mxu0 %v326
    %v2351 = vpop.f32.mrb[0].mxu0
    %v2352 = vadd.f32 0.0, %v2351
    %v2353 = vpop.f32.mrb[0].mxu0
    %2354 = vdwg.mxu0
    %v2356 = vrot.slane %v2352, 2
    %v2358 = vadd.f32 %v2212, %v2356
    %v2359 = vxor.u32 %v2284, 2147483648
    %v2360 = vmul.f32 %v2359, 1.442695
    %v2361 = vpow.pop %v2360
    %v2362 = vadd.f32 %v2361, 1.0
    %v2363 = vrcp.pop %v2362
    %v2364 = vmul.f32 1.0, %v2363
    %v2365 = vtanh.pop %v2284
    %v2366 = vmul.f32 %v2364, 0.0
    %2368 = vrot.lane.b32.xlu0 %v2365, 32
    %v2369 = vpop.permute.xlu0 %2368
    %v2371 = vmul.f32 %v2364, %v2369
    %2373 = vrot.lane.b32.xlu0 %v2371, 32
    %v2374 = vpop.permute.xlu0 %2373
    %v2376 = vadd.f32 %v2366, %v2374
    %v2377 = vtanh.pop %v2376
    %2379 = vrot.lane.b32.xlu0 %v2377, 32
    %v2380 = vpop.permute.xlu0 %2379
    %v2382 = vmul.f32 %v2364, %v2380
    %v2383 = vxor.u32 %v2358, 2147483648
    %v2384 = vmul.f32 %v2383, 1.442695
    %v2385 = vpow.pop %v2384
    %v2386 = vadd.f32 %v2385, 1.0
    %v2387 = vrcp.pop %v2386
    %v2388 = vmul.f32 1.0, %v2387
    %v2389 = vtanh.pop %v2358
    %v2390 = vmul.f32 %v2388, 0.0
    %2392 = vrot.lane.b32.xlu0 %v2389, 32
    %v2393 = vpop.permute.xlu0 %2392
    %v2395 = vmul.f32 %v2388, %v2393
    %2397 = vrot.lane.b32.xlu0 %v2395, 32
    %v2398 = vpop.permute.xlu0 %2397
    %v2400 = vadd.f32 %v2390, %v2398
    %v2401 = vtanh.pop %v2400
    %2403 = vrot.lane.b32.xlu0 %v2401, 32
    %v2404 = vpop.permute.xlu0 %2403
    %v2406 = vmul.f32 %v2388, %v2404
    %2408 = vrot.lane.b32.xlu0 %v2382, 64
    %v2409 = vpop.permute.xlu0 %2408
    %v2410 = vsel %vm324, %v2409, 0
    %2412 = vmatprep.subr.mxu0 0.0
    %2413 = vmatpush1.msra.mxu0 %v2110
    %2414 = vmatprep.subr.mxu0 0.0
    %2415 = vmatpush1.msra.mxu0 %v2111
    %2416 = vmatprep.subr.mxu0 0.0
    %2417 = vmatpush1.msra.mxu0 %v2112
    %2418 = vmatprep.subr.mxu0 0.0
    %2419 = vmatpush1.msra.mxu0 %v2113
    %2420 = vmatprep.subr.mxu0 0.0
    %2421 = vmatpush1.msra.mxu0 0.0
    %2422 = vmatprep.subr.mxu0 0.0
    %2423 = vmatpush1.msra.mxu0 0.0
    %2424 = vmatprep.subr.mxu0 0.0
    %2425 = vmatpush1.msra.mxu0 0.0
    %2426 = vmatprep.subr.mxu0 0.0
    %2427 = vmatpush1.msra.mxu0 0.0
    %2428 = vmatprep.subr.mxu0 0.0
    %2429 = vmatpush1.msra.mxu0 0.0
    %2430 = vmatprep.subr.mxu0 0.0
    %2431 = vmatpush1.msra.mxu0 0.0
    %2432 = vmatprep.subr.mxu0 0.0
    %2433 = vmatpush1.msra.mxu0 0.0
    %2434 = vmatprep.subr.mxu0 0.0
    %2435 = vmatpush1.msra.mxu0 0.0
    %2436 = vmatprep.subr.mxu0 0.0
    %2437 = vmatpush1.msra.mxu0 0.0
    %2438 = vmatprep.subr.mxu0 0.0
    %2439 = vmatpush1.msra.mxu0 0.0
    %2440 = vmatprep.subr.mxu0 0.0
    %2441 = vmatpush1.msra.mxu0 0.0
    %2442 = vmatprep.subr.mxu0 0.0
    %2443 = vmatpush1.msra.mxu0 0.0
    %2444 = vmatprep.subr.mxu0 0.0
    %2445 = vmatpush1.msra.mxu0 0.0
    %2446 = vmatprep.subr.mxu0 0.0
    %2447 = vmatpush1.msra.mxu0 0.0
    %2448 = vmatprep.subr.mxu0 0.0
    %2449 = vmatpush1.msra.mxu0 0.0
    %2450 = vmatprep.subr.mxu0 0.0
    %2451 = vmatpush1.msra.mxu0 0.0
    %2452 = vmatprep.subr.mxu0 0.0
    %2453 = vmatpush1.msra.mxu0 0.0
    %2454 = vmatprep.subr.mxu0 0.0
    %2455 = vmatpush1.msra.mxu0 0.0
    %2456 = vmatprep.subr.mxu0 0.0
    %2457 = vmatpush1.msra.mxu0 0.0
    %2458 = vmatprep.subr.mxu0 0.0
    %2459 = vmatpush1.msra.mxu0 0.0
    %2460 = vmatprep.subr.mxu0 0.0
    %2461 = vmatpush1.msra.mxu0 0.0
    %2462 = vmatprep.subr.mxu0 0.0
    %2463 = vmatpush1.msra.mxu0 0.0
    %2464 = vmatprep.subr.mxu0 0.0
    %2465 = vmatpush1.msra.mxu0 0.0
    %2466 = vmatprep.subr.mxu0 0.0
    %2467 = vmatpush1.msra.mxu0 0.0
    %2468 = vmatprep.subr.mxu0 0.0
    %2469 = vmatpush1.msra.mxu0 0.0
    %2470 = vmatprep.subr.mxu0 0.0
    %2471 = vmatpush1.msra.mxu0 0.0
    %2472 = vmatprep.subr.mxu0 0.0
    %2473 = vmatpush1.msra.mxu0 0.0
    %2474 = vmatprep.subr.mxu0 0.0
    %2475 = vmatpush1.msra.mxu0 0.0
    %2476 = vmatprep.mubr.f32.mxu0 0.0
    %2477 = vmatmul.mubr.f32.gmra.mrb[0].mxu0 %v2410
    %v2478 = vpop.f32.mrb[0].mxu0
    %v2479 = vadd.f32 0.0, %v2478
    %v2480 = vpop.f32.mrb[0].mxu0
    %2481 = vdwg.mxu0
    %v2483 = vrot.slane %v2479, 6
    %v2485 = vadd.f32 %v2204, %v2483
    %v2487 = vrot.slane %v2406, 6
    %2488 = vrot.lane.b32.xlu0 %v2487, 64
    %v2489 = vpop.permute.xlu0 %2488
    %v2490 = vsel %vm324, %v2489, 0
    %2492 = vmatprep.subr.mxu0 0.0
    %2493 = vmatpush1.msra.mxu0 %v2114
    %2494 = vmatprep.subr.mxu0 0.0
    %2495 = vmatpush1.msra.mxu0 %v2115
    %2496 = vmatprep.subr.mxu0 0.0
    %2497 = vmatpush1.msra.mxu0 %v2116
    %2498 = vmatprep.subr.mxu0 0.0
    %2499 = vmatpush1.msra.mxu0 %v2117
    %2500 = vmatprep.subr.mxu0 0.0
    %2501 = vmatpush1.msra.mxu0 0.0
    %2502 = vmatprep.subr.mxu0 0.0
    %2503 = vmatpush1.msra.mxu0 0.0
    %2504 = vmatprep.subr.mxu0 0.0
    %2505 = vmatpush1.msra.mxu0 0.0
    %2506 = vmatprep.subr.mxu0 0.0
    %2507 = vmatpush1.msra.mxu0 0.0
    %2508 = vmatprep.subr.mxu0 0.0
    %2509 = vmatpush1.msra.mxu0 0.0
    %2510 = vmatprep.subr.mxu0 0.0
    %2511 = vmatpush1.msra.mxu0 0.0
    %2512 = vmatprep.subr.mxu0 0.0
    %2513 = vmatpush1.msra.mxu0 0.0
    %2514 = vmatprep.subr.mxu0 0.0
    %2515 = vmatpush1.msra.mxu0 0.0
    %2516 = vmatprep.subr.mxu0 0.0
    %2517 = vmatpush1.msra.mxu0 0.0
    %2518 = vmatprep.subr.mxu0 0.0
    %2519 = vmatpush1.msra.mxu0 0.0
    %2520 = vmatprep.subr.mxu0 0.0
    %2521 = vmatpush1.msra.mxu0 0.0
    %2522 = vmatprep.subr.mxu0 0.0
    %2523 = vmatpush1.msra.mxu0 0.0
    %2524 = vmatprep.subr.mxu0 0.0
    %2525 = vmatpush1.msra.mxu0 0.0
    %2526 = vmatprep.subr.mxu0 0.0
    %2527 = vmatpush1.msra.mxu0 0.0
    %2528 = vmatprep.subr.mxu0 0.0
    %2529 = vmatpush1.msra.mxu0 0.0
    %2530 = vmatprep.subr.mxu0 0.0
    %2531 = vmatpush1.msra.mxu0 0.0
    %2532 = vmatprep.subr.mxu0 0.0
    %2533 = vmatpush1.msra.mxu0 0.0
    %2534 = vmatprep.subr.mxu0 0.0
    %2535 = vmatpush1.msra.mxu0 0.0
    %2536 = vmatprep.subr.mxu0 0.0
    %2537 = vmatpush1.msra.mxu0 0.0
    %2538 = vmatprep.subr.mxu0 0.0
    %2539 = vmatpush1.msra.mxu0 0.0
    %2540 = vmatprep.subr.mxu0 0.0
    %2541 = vmatpush1.msra.mxu0 0.0
    %2542 = vmatprep.subr.mxu0 0.0
    %2543 = vmatpush1.msra.mxu0 0.0
    %2544 = vmatprep.subr.mxu0 0.0
    %2545 = vmatpush1.msra.mxu0 0.0
    %2546 = vmatprep.subr.mxu0 0.0
    %2547 = vmatpush1.msra.mxu0 0.0
    %2548 = vmatprep.subr.mxu0 0.0
    %2549 = vmatpush1.msra.mxu0 0.0
    %2550 = vmatprep.subr.mxu0 0.0
    %2551 = vmatpush1.msra.mxu0 0.0
    %2552 = vmatprep.subr.mxu0 0.0
    %2553 = vmatpush1.msra.mxu0 0.0
    %2554 = vmatprep.subr.mxu0 0.0
    %2555 = vmatpush1.msra.mxu0 0.0
    %2556 = vmatprep.mubr.f32.mxu0 0.0
    %2557 = vmatmul.mubr.f32.gmra.mrb[0].mxu0 %v2490
    %v2558 = vpop.f32.mrb[0].mxu0
    %v2559 = vadd.f32 0.0, %v2558
    %v2560 = vpop.f32.mrb[0].mxu0
    %2561 = vdwg.mxu0
    %v2563 = vrot.slane %v2559, 4
    %v2565 = vadd.f32 %v2212, %v2563
    %v2566 = vxor.u32 %v2485, 2147483648
    %v2567 = vmul.f32 %v2566, 1.442695
    %v2568 = vpow.pop %v2567
    %v2569 = vadd.f32 %v2568, 1.0
    %v2570 = vrcp.pop %v2569
    %v2571 = vmul.f32 1.0, %v2570
    %v2572 = vtanh.pop %v2485
    %v2574 = vrot.slane %v2376, 6
    %v2576 = vmul.f32 %v2571, %v2574
    %2578 = vrot.lane.b32.xlu0 %v2572, 32
    %v2579 = vpop.permute.xlu0 %2578
    %v2581 = vmul.f32 %v2571, %v2579
    %2583 = vrot.lane.b32.xlu0 %v2581, 32
    %v2584 = vpop.permute.xlu0 %2583
    %v2586 = vadd.f32 %v2576, %v2584
    %v2587 = vtanh.pop %v2586
    %2589 = vrot.lane.b32.xlu0 %v2587, 32
    %v2590 = vpop.permute.xlu0 %2589
    %v2592 = vmul.f32 %v2571, %v2590
    %v2593 = vxor.u32 %v2565, 2147483648
    %v2594 = vmul.f32 %v2593, 1.442695
    %v2595 = vpow.pop %v2594
    %v2596 = vadd.f32 %v2595, 1.0
    %v2597 = vrcp.pop %v2596
    %v2598 = vmul.f32 1.0, %v2597
    %v2599 = vtanh.pop %v2565
    %v2601 = vrot.slane %v2400, 2
    %v2603 = vmul.f32 %v2598, %v2601
    %2605 = vrot.lane.b32.xlu0 %v2599, 32
    %v2606 = vpop.permute.xlu0 %2605
    %v2608 = vmul.f32 %v2598, %v2606
    %2610 = vrot.lane.b32.xlu0 %v2608, 32
    %v2611 = vpop.permute.xlu0 %2610
    %v2613 = vadd.f32 %v2603, %v2611
    %v2614 = vtanh.pop %v2613
    %2616 = vrot.lane.b32.xlu0 %v2614, 32
    %v2617 = vpop.permute.xlu0 %2616
    %v2619 = vmul.f32 %v2598, %v2617
    %v2621 = vrot.slane %v2592, 2
    %2622 = vrot.lane.b32.xlu0 %v2621, 64
    %v2623 = vpop.permute.xlu0 %2622
    %v2624 = vsel %vm324, %v2623, 0
    %2626 = vmatprep.subr.mxu0 0.0
    %2627 = vmatpush1.msra.mxu0 %v2110
    %2628 = vmatprep.subr.mxu0 0.0
    %2629 = vmatpush1.msra.mxu0 %v2111
    %2630 = vmatprep.subr.mxu0 0.0
    %2631 = vmatpush1.msra.mxu0 %v2112
    %2632 = vmatprep.subr.mxu0 0.0
    %2633 = vmatpush1.msra.mxu0 %v2113
    %2634 = vmatprep.subr.mxu0 0.0
    %2635 = vmatpush1.msra.mxu0 0.0
    %2636 = vmatprep.subr.mxu0 0.0
    %2637 = vmatpush1.msra.mxu0 0.0
    %2638 = vmatprep.subr.mxu0 0.0
    %2639 = vmatpush1.msra.mxu0 0.0
    %2640 = vmatprep.subr.mxu0 0.0
    %2641 = vmatpush1.msra.mxu0 0.0
    %2642 = vmatprep.subr.mxu0 0.0
    %2643 = vmatpush1.msra.mxu0 0.0
    %2644 = vmatprep.subr.mxu0 0.0
    %2645 = vmatpush1.msra.mxu0 0.0
    %2646 = vmatprep.subr.mxu0 0.0
    %2647 = vmatpush1.msra.mxu0 0.0
    %2648 = vmatprep.subr.mxu0 0.0
    %2649 = vmatpush1.msra.mxu0 0.0
    %2650 = vmatprep.subr.mxu0 0.0
    %2651 = vmatpush1.msra.mxu0 0.0
    %2652 = vmatprep.subr.mxu0 0.0
    %2653 = vmatpush1.msra.mxu0 0.0
    %2654 = vmatprep.subr.mxu0 0.0
    %2655 = vmatpush1.msra.mxu0 0.0
    %2656 = vmatprep.subr.mxu0 0.0
    %2657 = vmatpush1.msra.mxu0 0.0
    %2658 = vmatprep.subr.mxu0 0.0
    %2659 = vmatpush1.msra.mxu0 0.0
    %2660 = vmatprep.subr.mxu0 0.0
    %2661 = vmatpush1.msra.mxu0 0.0
    %2662 = vmatprep.subr.mxu0 0.0
    %2663 = vmatpush1.msra.mxu0 0.0
    %2664 = vmatprep.subr.mxu0 0.0
    %2665 = vmatpush1.msra.mxu0 0.0
    %2666 = vmatprep.subr.mxu0 0.0
    %2667 = vmatpush1.msra.mxu0 0.0
    %2668 = vmatprep.subr.mxu0 0.0
    %2669 = vmatpush1.msra.mxu0 0.0
    %2670 = vmatprep.subr.mxu0 0.0
    %2671 = vmatpush1.msra.mxu0 0.0
    %2672 = vmatprep.subr.mxu0 0.0
    %2673 = vmatpush1.msra.mxu0 0.0
    %2674 = vmatprep.subr.mxu0 0.0
    %2675 = vmatpush1.msra.mxu0 0.0
    %2676 = vmatprep.subr.mxu0 0.0
    %2677 = vmatpush1.msra.mxu0 0.0
    %2678 = vmatprep.subr.mxu0 0.0
    %2679 = vmatpush1.msra.mxu0 0.0
    %2680 = vmatprep.subr.mxu0 0.0
    %2681 = vmatpush1.msra.mxu0 0.0
    %2682 = vmatprep.subr.mxu0 0.0
    %2683 = vmatpush1.msra.mxu0 0.0
    %2684 = vmatprep.subr.mxu0 0.0
    %2685 = vmatpush1.msra.mxu0 0.0
    %2686 = vmatprep.subr.mxu0 0.0
    %2687 = vmatpush1.msra.mxu0 0.0
    %2688 = vmatprep.subr.mxu0 0.0
    %2689 = vmatpush1.msra.mxu0 0.0
    %2690 = vmatprep.mubr.f32.mxu0 0.0
    %2691 = vmatmul.mubr.f32.gmra.mrb[0].mxu0 %v2624
    %v2692 = vpop.f32.mrb[0].mxu0
    %v2693 = vadd.f32 0.0, %v2692
    %v2694 = vpop.f32.mrb[0].mxu0
    %2695 = vdwg.mxu0
    %v2697 = vrot.slane %v2693, 4
    %v2699 = vadd.f32 %v2204, %v2697
    %v2701 = vrot.slane %v2619, 4
    %2702 = vrot.lane.b32.xlu0 %v2701, 64
    %v2703 = vpop.permute.xlu0 %2702
    %v2704 = vsel %vm324, %v2703, 0
    %2706 = vmatprep.subr.mxu0 0.0
    %2707 = vmatpush1.msra.mxu0 %v2114
    %2708 = vmatprep.subr.mxu0 0.0
    %2709 = vmatpush1.msra.mxu0 %v2115
    %2710 = vmatprep.subr.mxu0 0.0
    %2711 = vmatpush1.msra.mxu0 %v2116
    %2712 = vmatprep.subr.mxu0 0.0
    %2713 = vmatpush1.msra.mxu0 %v2117
    %2714 = vmatprep.subr.mxu0 0.0
    %2715 = vmatpush1.msra.mxu0 0.0
    %2716 = vmatprep.subr.mxu0 0.0
    %2717 = vmatpush1.msra.mxu0 0.0
    %2718 = vmatprep.subr.mxu0 0.0
    %2719 = vmatpush1.msra.mxu0 0.0
    %2720 = vmatprep.subr.mxu0 0.0
    %2721 = vmatpush1.msra.mxu0 0.0
    %2722 = vmatprep.subr.mxu0 0.0
    %2723 = vmatpush1.msra.mxu0 0.0
    %2724 = vmatprep.subr.mxu0 0.0
    %2725 = vmatpush1.msra.mxu0 0.0
    %2726 = vmatprep.subr.mxu0 0.0
    %2727 = vmatpush1.msra.mxu0 0.0
    %2728 = vmatprep.subr.mxu0 0.0
    %2729 = vmatpush1.msra.mxu0 0.0
    %2730 = vmatprep.subr.mxu0 0.0
    %2731 = vmatpush1.msra.mxu0 0.0
    %2732 = vmatprep.subr.mxu0 0.0
    %2733 = vmatpush1.msra.mxu0 0.0
    %2734 = vmatprep.subr.mxu0 0.0
    %2735 = vmatpush1.msra.mxu0 0.0
    %2736 = vmatprep.subr.mxu0 0.0
    %2737 = vmatpush1.msra.mxu0 0.0
    %2738 = vmatprep.subr.mxu0 0.0
    %2739 = vmatpush1.msra.mxu0 0.0
    %2740 = vmatprep.subr.mxu0 0.0
    %2741 = vmatpush1.msra.mxu0 0.0
    %2742 = vmatprep.subr.mxu0 0.0
    %2743 = vmatpush1.msra.mxu0 0.0
    %2744 = vmatprep.subr.mxu0 0.0
    %2745 = vmatpush1.msra.mxu0 0.0
    %2746 = vmatprep.subr.mxu0 0.0
    %2747 = vmatpush1.msra.mxu0 0.0
    %2748 = vmatprep.subr.mxu0 0.0
    %2749 = vmatpush1.msra.mxu0 0.0
    %2750 = vmatprep.subr.mxu0 0.0
    %2751 = vmatpush1.msra.mxu0 0.0
    %2752 = vmatprep.subr.mxu0 0.0
    %2753 = vmatpush1.msra.mxu0 0.0
    %2754 = vmatprep.subr.mxu0 0.0
    %2755 = vmatpush1.msra.mxu0 0.0
    %2756 = vmatprep.subr.mxu0 0.0
    %2757 = vmatpush1.msra.mxu0 0.0
    %2758 = vmatprep.subr.mxu0 0.0
    %2759 = vmatpush1.msra.mxu0 0.0
    %2760 = vmatprep.subr.mxu0 0.0
    %2761 = vmatpush1.msra.mxu0 0.0
    %2762 = vmatprep.subr.mxu0 0.0
    %2763 = vmatpush1.msra.mxu0 0.0
    %2764 = vmatprep.subr.mxu0 0.0
    %2765 = vmatpush1.msra.mxu0 0.0
    %2766 = vmatprep.subr.mxu0 0.0
    %2767 = vmatpush1.msra.mxu0 0.0
    %2768 = vmatprep.subr.mxu0 0.0
    %2769 = vmatpush1.msra.mxu0 0.0
    %2770 = vmatprep.mubr.f32.mxu0 0.0
    %2771 = vmatmul.mubr.f32.gmra.mrb[0].mxu0 %v2704
    %v2772 = vpop.f32.mrb[0].mxu0
    %v2773 = vadd.f32 0.0, %v2772
    %v2774 = vpop.f32.mrb[0].mxu0
    %2775 = vdwg.mxu0
    %v2777 = vrot.slane %v2773, 6
    %v2779 = vadd.f32 %v2212, %v2777
    %v2780 = vxor.u32 %v2699, 2147483648
    %v2781 = vmul.f32 %v2780, 1.442695
    %v2782 = vpow.pop %v2781
    %v2783 = vadd.f32 %v2782, 1.0
    %v2784 = vrcp.pop %v2783
    %v2785 = vmul.f32 1.0, %v2784
    %v2786 = vtanh.pop %v2699
    %v2788 = vrot.slane %v2586, 6
    %v2790 = vmul.f32 %v2785, %v2788
    %2792 = vrot.lane.b32.xlu0 %v2786, 32
    %v2793 = vpop.permute.xlu0 %2792
    %v2795 = vmul.f32 %v2785, %v2793
    %2797 = vrot.lane.b32.xlu0 %v2795, 32
    %v2798 = vpop.permute.xlu0 %2797
    %v2800 = vadd.f32 %v2790, %v2798
    %v2801 = vtanh.pop %v2800
    %2803 = vrot.lane.b32.xlu0 %v2801, 32
    %v2804 = vpop.permute.xlu0 %2803
    %v2806 = vmul.f32 %v2785, %v2804
    %v2807 = vxor.u32 %v2779, 2147483648
    %v2808 = vmul.f32 %v2807, 1.442695
    %v2809 = vpow.pop %v2808
    %v2810 = vadd.f32 %v2809, 1.0
    %v2811 = vrcp.pop %v2810
    %v2812 = vmul.f32 1.0, %v2811
    %v2813 = vtanh.pop %v2779
    %v2815 = vrot.slane %v2613, 2
    %v2817 = vmul.f32 %v2812, %v2815
    %2819 = vrot.lane.b32.xlu0 %v2813, 32
    %v2820 = vpop.permute.xlu0 %2819
    %v2822 = vmul.f32 %v2812, %v2820
    %2824 = vrot.lane.b32.xlu0 %v2822, 32
    %v2825 = vpop.permute.xlu0 %2824
    %v2827 = vadd.f32 %v2817, %v2825
    %v2828 = vtanh.pop %v2827
    %2830 = vrot.lane.b32.xlu0 %v2828, 32
    %v2831 = vpop.permute.xlu0 %2830
    %v2833 = vmul.f32 %v2812, %v2831
    %v2835 = vrot.slane %v2806, 4
    %2836 = vrot.lane.b32.xlu0 %v2835, 64
    %v2837 = vpop.permute.xlu0 %2836
    %v2838 = vsel %vm324, %v2837, 0
    %2840 = vmatprep.subr.mxu0 0.0
    %2841 = vmatpush1.msra.mxu0 %v2110
    %2842 = vmatprep.subr.mxu0 0.0
    %2843 = vmatpush1.msra.mxu0 %v2111
    %2844 = vmatprep.subr.mxu0 0.0
    %2845 = vmatpush1.msra.mxu0 %v2112
    %2846 = vmatprep.subr.mxu0 0.0
    %2847 = vmatpush1.msra.mxu0 %v2113
    %2848 = vmatprep.subr.mxu0 0.0
    %2849 = vmatpush1.msra.mxu0 0.0
    %2850 = vmatprep.subr.mxu0 0.0
    %2851 = vmatpush1.msra.mxu0 0.0
    %2852 = vmatprep.subr.mxu0 0.0
    %2853 = vmatpush1.msra.mxu0 0.0
    %2854 = vmatprep.subr.mxu0 0.0
    %2855 = vmatpush1.msra.mxu0 0.0
    %2856 = vmatprep.subr.mxu0 0.0
    %2857 = vmatpush1.msra.mxu0 0.0
    %2858 = vmatprep.subr.mxu0 0.0
    %2859 = vmatpush1.msra.mxu0 0.0
    %2860 = vmatprep.subr.mxu0 0.0
    %2861 = vmatpush1.msra.mxu0 0.0
    %2862 = vmatprep.subr.mxu0 0.0
    %2863 = vmatpush1.msra.mxu0 0.0
    %2864 = vmatprep.subr.mxu0 0.0
    %2865 = vmatpush1.msra.mxu0 0.0
    %2866 = vmatprep.subr.mxu0 0.0
    %2867 = vmatpush1.msra.mxu0 0.0
    %2868 = vmatprep.subr.mxu0 0.0
    %2869 = vmatpush1.msra.mxu0 0.0
    %2870 = vmatprep.subr.mxu0 0.0
    %2871 = vmatpush1.msra.mxu0 0.0
    %2872 = vmatprep.subr.mxu0 0.0
    %2873 = vmatpush1.msra.mxu0 0.0
    %2874 = vmatprep.subr.mxu0 0.0
    %2875 = vmatpush1.msra.mxu0 0.0
    %2876 = vmatprep.subr.mxu0 0.0
    %2877 = vmatpush1.msra.mxu0 0.0
    %2878 = vmatprep.subr.mxu0 0.0
    %2879 = vmatpush1.msra.mxu0 0.0
    %2880 = vmatprep.subr.mxu0 0.0
    %2881 = vmatpush1.msra.mxu0 0.0
    %2882 = vmatprep.subr.mxu0 0.0
    %2883 = vmatpush1.msra.mxu0 0.0
    %2884 = vmatprep.subr.mxu0 0.0
    %2885 = vmatpush1.msra.mxu0 0.0
    %2886 = vmatprep.subr.mxu0 0.0
    %2887 = vmatpush1.msra.mxu0 0.0
    %2888 = vmatprep.subr.mxu0 0.0
    %2889 = vmatpush1.msra.mxu0 0.0
    %2890 = vmatprep.subr.mxu0 0.0
    %2891 = vmatpush1.msra.mxu0 0.0
    %2892 = vmatprep.subr.mxu0 0.0
    %2893 = vmatpush1.msra.mxu0 0.0
    %2894 = vmatprep.subr.mxu0 0.0
    %2895 = vmatpush1.msra.mxu0 0.0
    %2896 = vmatprep.subr.mxu0 0.0
    %2897 = vmatpush1.msra.mxu0 0.0
    %2898 = vmatprep.subr.mxu0 0.0
    %2899 = vmatpush1.msra.mxu0 0.0
    %2900 = vmatprep.subr.mxu0 0.0
    %2901 = vmatpush1.msra.mxu0 0.0
    %2902 = vmatprep.subr.mxu0 0.0
    %2903 = vmatpush1.msra.mxu0 0.0
    %2904 = vmatprep.mubr.f32.mxu0 0.0
    %2905 = vmatmul.mubr.f32.gmra.mrb[0].mxu0 %v2838
    %v2906 = vpop.f32.mrb[0].mxu0
    %v2907 = vadd.f32 0.0, %v2906
    %v2908 = vpop.f32.mrb[0].mxu0
    %2909 = vdwg.mxu0
    %v2911 = vrot.slane %v2907, 2
    %v2913 = vadd.f32 %v2204, %v2911
    %v2915 = vrot.slane %v2833, 2
    %2916 = vrot.lane.b32.xlu0 %v2915, 64
    %v2917 = vpop.permute.xlu0 %2916
    %v2918 = vsel %vm324, %v2917, 0
    %2920 = vmatprep.subr.mxu0 0.0
    %2921 = vmatpush1.msra.mxu0 %v2114
    %2922 = vmatprep.subr.mxu0 0.0
    %2923 = vmatpush1.msra.mxu0 %v2115
    %2924 = vmatprep.subr.mxu0 0.0
    %2925 = vmatpush1.msra.mxu0 %v2116
    %2926 = vmatprep.subr.mxu0 0.0
    %2927 = vmatpush1.msra.mxu0 %v2117
    %2928 = vmatprep.subr.mxu0 0.0
    %2929 = vmatpush1.msra.mxu0 0.0
    %2930 = vmatprep.subr.mxu0 0.0
    %2931 = vmatpush1.msra.mxu0 0.0
    %2932 = vmatprep.subr.mxu0 0.0
    %2933 = vmatpush1.msra.mxu0 0.0
    %2934 = vmatprep.subr.mxu0 0.0
    %2935 = vmatpush1.msra.mxu0 0.0
    %2936 = vmatprep.subr.mxu0 0.0
    %2937 = vmatpush1.msra.mxu0 0.0
    %2938 = vmatprep.subr.mxu0 0.0
    %2939 = vmatpush1.msra.mxu0 0.0
    %2940 = vmatprep.subr.mxu0 0.0
    %2941 = vmatpush1.msra.mxu0 0.0
    %2942 = vmatprep.subr.mxu0 0.0
    %2943 = vmatpush1.msra.mxu0 0.0
    %2944 = vmatprep.subr.mxu0 0.0
    %2945 = vmatpush1.msra.mxu0 0.0
    %2946 = vmatprep.subr.mxu0 0.0
    %2947 = vmatpush1.msra.mxu0 0.0
    %2948 = vmatprep.subr.mxu0 0.0
    %2949 = vmatpush1.msra.mxu0 0.0
    %2950 = vmatprep.subr.mxu0 0.0
    %2951 = vmatpush1.msra.mxu0 0.0
    %2952 = vmatprep.subr.mxu0 0.0
    %2953 = vmatpush1.msra.mxu0 0.0
    %2954 = vmatprep.subr.mxu0 0.0
    %2955 = vmatpush1.msra.mxu0 0.0
    %2956 = vmatprep.subr.mxu0 0.0
    %2957 = vmatpush1.msra.mxu0 0.0
    %2958 = vmatprep.subr.mxu0 0.0
    %2959 = vmatpush1.msra.mxu0 0.0
    %2960 = vmatprep.subr.mxu0 0.0
    %2961 = vmatpush1.msra.mxu0 0.0
    %2962 = vmatprep.subr.mxu0 0.0
    %2963 = vmatpush1.msra.mxu0 0.0
    %2964 = vmatprep.subr.mxu0 0.0
    %2965 = vmatpush1.msra.mxu0 0.0
    %2966 = vmatprep.subr.mxu0 0.0
    %2967 = vmatpush1.msra.mxu0 0.0
    %2968 = vmatprep.subr.mxu0 0.0
    %2969 = vmatpush1.msra.mxu0 0.0
    %2970 = vmatprep.subr.mxu0 0.0
    %2971 = vmatpush1.msra.mxu0 0.0
    %2972 = vmatprep.subr.mxu0 0.0
    %2973 = vmatpush1.msra.mxu0 0.0
    %2974 = vmatprep.subr.mxu0 0.0
    %2975 = vmatpush1.msra.mxu0 0.0
    %2976 = vmatprep.subr.mxu0 0.0
    %2977 = vmatpush1.msra.mxu0 0.0
    %2978 = vmatprep.subr.mxu0 0.0
    %2979 = vmatpush1.msra.mxu0 0.0
    %2980 = vmatprep.subr.mxu0 0.0
    %2981 = vmatpush1.msra.mxu0 0.0
    %2982 = vmatprep.subr.mxu0 0.0
    %2983 = vmatpush1.msra.mxu0 0.0
    %2984 = vmatprep.mubr.f32.mxu0 0.0
    %2985 = vmatmul.mubr.f32.gmra.mrb[0].mxu0 %v2918
    %v2986 = vpop.f32.mrb[0].mxu0
    %v2987 = vadd.f32 0.0, %v2986
    %v2988 = vpop.f32.mrb[0].mxu0
    %2989 = vdwg.mxu0
    %v2990 = vadd.f32 %v2212, %v2987
    %v2991 = vxor.u32 %v2913, 2147483648
    %v2992 = vmul.f32 %v2991, 1.442695
    %v2993 = vpow.pop %v2992
    %v2994 = vadd.f32 %v2993, 1.0
    %v2995 = vrcp.pop %v2994
    %v2996 = vmul.f32 1.0, %v2995
    %v2997 = vtanh.pop %v2913
    %v2999 = vrot.slane %v2800, 6
    %v3001 = vmul.f32 %v2996, %v2999
    %3003 = vrot.lane.b32.xlu0 %v2997, 32
    %v3004 = vpop.permute.xlu0 %3003
    %v3006 = vmul.f32 %v2996, %v3004
    %3008 = vrot.lane.b32.xlu0 %v3006, 32
    %v3009 = vpop.permute.xlu0 %3008
    %v3011 = vadd.f32 %v3001, %v3009
    %v3012 = vtanh.pop %v3011
    %3014 = vrot.lane.b32.xlu0 %v3012, 32
    %v3015 = vpop.permute.xlu0 %3014
    %v3017 = vmul.f32 %v2996, %v3015
    %v3018 = vxor.u32 %v2990, 2147483648
    %v3019 = vmul.f32 %v3018, 1.442695
    %v3020 = vpow.pop %v3019
    %v3021 = vadd.f32 %v3020, 1.0
    %v3022 = vrcp.pop %v3021
    %v3023 = vmul.f32 1.0, %v3022
    %v3024 = vtanh.pop %v2990
    %v3026 = vrot.slane %v2827, 2
    %v3028 = vmul.f32 %v3023, %v3026
    %3030 = vrot.lane.b32.xlu0 %v3024, 32
    %v3031 = vpop.permute.xlu0 %3030
    %v3033 = vmul.f32 %v3023, %v3031
    %3035 = vrot.lane.b32.xlu0 %v3033, 32
    %v3036 = vpop.permute.xlu0 %3035
    %v3038 = vadd.f32 %v3028, %v3036
    %v3039 = vtanh.pop %v3038
    %3041 = vrot.lane.b32.xlu0 %v3039, 32
    %v3042 = vpop.permute.xlu0 %3041
    %v3044 = vmul.f32 %v3023, %v3042
    %v3046 = vrot.slane %v3017, 6
    %3047 = vrot.lane.b32.xlu0 %v3046, 64
    %v3048 = vpop.permute.xlu0 %3047
    %v3049 = vsel %vm324, %v3048, 0
    %3051 = vmatprep.subr.mxu0 0.0
    %3052 = vmatpush1.msra.mxu0 %v2110
    %3053 = vmatprep.subr.mxu0 0.0
    %3054 = vmatpush1.msra.mxu0 %v2111
    %3055 = vmatprep.subr.mxu0 0.0
    %3056 = vmatpush1.msra.mxu0 %v2112
    %3057 = vmatprep.subr.mxu0 0.0
    %3058 = vmatpush1.msra.mxu0 %v2113
    %3059 = vmatprep.subr.mxu0 0.0
    %3060 = vmatpush1.msra.mxu0 0.0
    %3061 = vmatprep.subr.mxu0 0.0
    %3062 = vmatpush1.msra.mxu0 0.0
    %3063 = vmatprep.subr.mxu0 0.0
    %3064 = vmatpush1.msra.mxu0 0.0
    %3065 = vmatprep.subr.mxu0 0.0
    %3066 = vmatpush1.msra.mxu0 0.0
    %3067 = vmatprep.subr.mxu0 0.0
    %3068 = vmatpush1.msra.mxu0 0.0
    %3069 = vmatprep.subr.mxu0 0.0
    %3070 = vmatpush1.msra.mxu0 0.0
    %3071 = vmatprep.subr.mxu0 0.0
    %3072 = vmatpush1.msra.mxu0 0.0
    %3073 = vmatprep.subr.mxu0 0.0
    %3074 = vmatpush1.msra.mxu0 0.0
    %3075 = vmatprep.subr.mxu0 0.0
    %3076 = vmatpush1.msra.mxu0 0.0
    %3077 = vmatprep.subr.mxu0 0.0
    %3078 = vmatpush1.msra.mxu0 0.0
    %3079 = vmatprep.subr.mxu0 0.0
    %3080 = vmatpush1.msra.mxu0 0.0
    %3081 = vmatprep.subr.mxu0 0.0
    %3082 = vmatpush1.msra.mxu0 0.0
    %3083 = vmatprep.subr.mxu0 0.0
    %3084 = vmatpush1.msra.mxu0 0.0
    %3085 = vmatprep.subr.mxu0 0.0
    %3086 = vmatpush1.msra.mxu0 0.0
    %3087 = vmatprep.subr.mxu0 0.0
    %3088 = vmatpush1.msra.mxu0 0.0
    %3089 = vmatprep.subr.mxu0 0.0
    %3090 = vmatpush1.msra.mxu0 0.0
    %3091 = vmatprep.subr.mxu0 0.0
    %3092 = vmatpush1.msra.mxu0 0.0
    %3093 = vmatprep.subr.mxu0 0.0
    %3094 = vmatpush1.msra.mxu0 0.0
    %3095 = vmatprep.subr.mxu0 0.0
    %3096 = vmatpush1.msra.mxu0 0.0
    %3097 = vmatprep.subr.mxu0 0.0
    %3098 = vmatpush1.msra.mxu0 0.0
    %3099 = vmatprep.subr.mxu0 0.0
    %3100 = vmatpush1.msra.mxu0 0.0
    %3101 = vmatprep.subr.mxu0 0.0
    %3102 = vmatpush1.msra.mxu0 0.0
    %3103 = vmatprep.subr.mxu0 0.0
    %3104 = vmatpush1.msra.mxu0 0.0
    %3105 = vmatprep.subr.mxu0 0.0
    %3106 = vmatpush1.msra.mxu0 0.0
    %3107 = vmatprep.subr.mxu0 0.0
    %3108 = vmatpush1.msra.mxu0 0.0
    %3109 = vmatprep.subr.mxu0 0.0
    %3110 = vmatpush1.msra.mxu0 0.0
    %3111 = vmatprep.subr.mxu0 0.0
    %3112 = vmatpush1.msra.mxu0 0.0
    %3113 = vmatprep.subr.mxu0 0.0
    %3114 = vmatpush1.msra.mxu0 0.0
    %3115 = vmatprep.mubr.f32.mxu0 0.0
    %3116 = vmatmul.mubr.f32.gmra.mrb[0].mxu0 %v3049
    %v3117 = vpop.f32.mrb[0].mxu0
    %v3118 = vadd.f32 0.0, %v3117
    %v3119 = vpop.f32.mrb[0].mxu0
    %3120 = vdwg.mxu0
    %v3121 = vadd.f32 %v2210, %v3118
    %3123 = vrot.lane.b32.xlu0 %v3044, 64
    %v3124 = vpop.permute.xlu0 %3123
    %v3125 = vsel %vm324, %v3124, 0
    %3127 = vmatprep.subr.mxu0 0.0
    %3128 = vmatpush1.msra.mxu0 %v2114
    %3129 = vmatprep.subr.mxu0 0.0
    %3130 = vmatpush1.msra.mxu0 %v2115
    %3131 = vmatprep.subr.mxu0 0.0
    %3132 = vmatpush1.msra.mxu0 %v2116
    %3133 = vmatprep.subr.mxu0 0.0
    %3134 = vmatpush1.msra.mxu0 %v2117
    %3135 = vmatprep.subr.mxu0 0.0
    %3136 = vmatpush1.msra.mxu0 0.0
    %3137 = vmatprep.subr.mxu0 0.0
    %3138 = vmatpush1.msra.mxu0 0.0
    %3139 = vmatprep.subr.mxu0 0.0
    %3140 = vmatpush1.msra.mxu0 0.0
    %3141 = vmatprep.subr.mxu0 0.0
    %3142 = vmatpush1.msra.mxu0 0.0
    %3143 = vmatprep.subr.mxu0 0.0
    %3144 = vmatpush1.msra.mxu0 0.0
    %3145 = vmatprep.subr.mxu0 0.0
    %3146 = vmatpush1.msra.mxu0 0.0
    %3147 = vmatprep.subr.mxu0 0.0
    %3148 = vmatpush1.msra.mxu0 0.0
    %3149 = vmatprep.subr.mxu0 0.0
    %3150 = vmatpush1.msra.mxu0 0.0
    %3151 = vmatprep.subr.mxu0 0.0
    %3152 = vmatpush1.msra.mxu0 0.0
    %3153 = vmatprep.subr.mxu0 0.0
    %3154 = vmatpush1.msra.mxu0 0.0
    %3155 = vmatprep.subr.mxu0 0.0
    %3156 = vmatpush1.msra.mxu0 0.0
    %3157 = vmatprep.subr.mxu0 0.0
    %3158 = vmatpush1.msra.mxu0 0.0
    %3159 = vmatprep.subr.mxu0 0.0
    %3160 = vmatpush1.msra.mxu0 0.0
    %3161 = vmatprep.subr.mxu0 0.0
    %3162 = vmatpush1.msra.mxu0 0.0
    %3163 = vmatprep.subr.mxu0 0.0
    %3164 = vmatpush1.msra.mxu0 0.0
    %3165 = vmatprep.subr.mxu0 0.0
    %3166 = vmatpush1.msra.mxu0 0.0
    %3167 = vmatprep.subr.mxu0 0.0
    %3168 = vmatpush1.msra.mxu0 0.0
    %3169 = vmatprep.subr.mxu0 0.0
    %3170 = vmatpush1.msra.mxu0 0.0
    %3171 = vmatprep.subr.mxu0 0.0
    %3172 = vmatpush1.msra.mxu0 0.0
    %3173 = vmatprep.subr.mxu0 0.0
    %3174 = vmatpush1.msra.mxu0 0.0
    %3175 = vmatprep.subr.mxu0 0.0
    %3176 = vmatpush1.msra.mxu0 0.0
    %3177 = vmatprep.subr.mxu0 0.0
    %3178 = vmatpush1.msra.mxu0 0.0
    %3179 = vmatprep.subr.mxu0 0.0
    %3180 = vmatpush1.msra.mxu0 0.0
    %3181 = vmatprep.subr.mxu0 0.0
    %3182 = vmatpush1.msra.mxu0 0.0
    %3183 = vmatprep.subr.mxu0 0.0
    %3184 = vmatpush1.msra.mxu0 0.0
    %3185 = vmatprep.subr.mxu0 0.0
    %3186 = vmatpush1.msra.mxu0 0.0
    %3187 = vmatprep.subr.mxu0 0.0
    %3188 = vmatpush1.msra.mxu0 0.0
    %3189 = vmatprep.subr.mxu0 0.0
    %3190 = vmatpush1.msra.mxu0 0.0
    %3191 = vmatprep.mubr.f32.mxu0 0.0
    %3192 = vmatmul.mubr.f32.gmra.mrb[0].mxu0 %v3125
    %v3193 = vpop.f32.mrb[0].mxu0
    %v3194 = vadd.f32 0.0, %v3193
    %v3195 = vpop.f32.mrb[0].mxu0
    %3196 = vdwg.mxu0
    %v3198 = vrot.slane %v3194, 2
    %v3200 = vadd.f32 %v2206, %v3198
    %v3201 = vxor.u32 %v3121, 2147483648
    %v3202 = vmul.f32 %v3201, 1.442695
    %v3203 = vpow.pop %v3202
    %v3204 = vadd.f32 %v3203, 1.0
    %v3205 = vrcp.pop %v3204
    %v3206 = vmul.f32 1.0, %v3205
    %v3207 = vtanh.pop %v3121
    %v3209 = vrot.slane %v3011, 6
    %v3211 = vmul.f32 %v3206, %v3209
    %3213 = vrot.lane.b32.xlu0 %v3207, 32
    %v3214 = vpop.permute.xlu0 %3213
    %v3216 = vmul.f32 %v3206, %v3214
    %3218 = vrot.lane.b32.xlu0 %v3216, 32
    %v3219 = vpop.permute.xlu0 %3218
    %v3221 = vadd.f32 %v3211, %v3219
    %v3222 = vtanh.pop %v3221
    %3224 = vrot.lane.b32.xlu0 %v3222, 32
    %v3225 = vpop.permute.xlu0 %3224
    %v3227 = vmul.f32 %v3206, %v3225
    %v3228 = vxor.u32 %v3200, 2147483648
    %v3229 = vmul.f32 %v3228, 1.442695
    %v3230 = vpow.pop %v3229
    %v3231 = vadd.f32 %v3230, 1.0
    %v3232 = vrcp.pop %v3231
    %v3233 = vmul.f32 1.0, %v3232
    %v3234 = vtanh.pop %v3200
    %v3236 = vrot.slane %v3038, 2
    %v3238 = vmul.f32 %v3233, %v3236
    %3240 = vrot.lane.b32.xlu0 %v3234, 32
    %v3241 = vpop.permute.xlu0 %3240
    %v3243 = vmul.f32 %v3233, %v3241
    %3245 = vrot.lane.b32.xlu0 %v3243, 32
    %v3246 = vpop.permute.xlu0 %3245
    %v3248 = vadd.f32 %v3238, %v3246
    %v3249 = vtanh.pop %v3248
    %3251 = vrot.lane.b32.xlu0 %v3249, 32
    %v3252 = vpop.permute.xlu0 %3251
    %v3254 = vmul.f32 %v3233, %v3252
    %3256 = vrot.lane.b32.xlu0 %v3227, 64
    %v3257 = vpop.permute.xlu0 %3256
    %v3258 = vsel %vm324, %v3257, 0
    %3260 = vmatprep.subr.mxu0 0.0
    %3261 = vmatpush1.msra.mxu0 %v2110
    %3262 = vmatprep.subr.mxu0 0.0
    %3263 = vmatpush1.msra.mxu0 %v2111
    %3264 = vmatprep.subr.mxu0 0.0
    %3265 = vmatpush1.msra.mxu0 %v2112
    %3266 = vmatprep.subr.mxu0 0.0
    %3267 = vmatpush1.msra.mxu0 %v2113
    %3268 = vmatprep.subr.mxu0 0.0
    %3269 = vmatpush1.msra.mxu0 0.0
    %3270 = vmatprep.subr.mxu0 0.0
    %3271 = vmatpush1.msra.mxu0 0.0
    %3272 = vmatprep.subr.mxu0 0.0
    %3273 = vmatpush1.msra.mxu0 0.0
    %3274 = vmatprep.subr.mxu0 0.0
    %3275 = vmatpush1.msra.mxu0 0.0
    %3276 = vmatprep.subr.mxu0 0.0
    %3277 = vmatpush1.msra.mxu0 0.0
    %3278 = vmatprep.subr.mxu0 0.0
    %3279 = vmatpush1.msra.mxu0 0.0
    %3280 = vmatprep.subr.mxu0 0.0
    %3281 = vmatpush1.msra.mxu0 0.0
    %3282 = vmatprep.subr.mxu0 0.0
    %3283 = vmatpush1.msra.mxu0 0.0
    %3284 = vmatprep.subr.mxu0 0.0
    %3285 = vmatpush1.msra.mxu0 0.0
    %3286 = vmatprep.subr.mxu0 0.0
    %3287 = vmatpush1.msra.mxu0 0.0
    %3288 = vmatprep.subr.mxu0 0.0
    %3289 = vmatpush1.msra.mxu0 0.0
    %3290 = vmatprep.subr.mxu0 0.0
    %3291 = vmatpush1.msra.mxu0 0.0
    %3292 = vmatprep.subr.mxu0 0.0
    %3293 = vmatpush1.msra.mxu0 0.0
    %3294 = vmatprep.subr.mxu0 0.0
    %3295 = vmatpush1.msra.mxu0 0.0
    %3296 = vmatprep.subr.mxu0 0.0
    %3297 = vmatpush1.msra.mxu0 0.0
    %3298 = vmatprep.subr.mxu0 0.0
    %3299 = vmatpush1.msra.mxu0 0.0
    %3300 = vmatprep.subr.mxu0 0.0
    %3301 = vmatpush1.msra.mxu0 0.0
    %3302 = vmatprep.subr.mxu0 0.0
    %3303 = vmatpush1.msra.mxu0 0.0
    %3304 = vmatprep.subr.mxu0 0.0
    %3305 = vmatpush1.msra.mxu0 0.0
    %3306 = vmatprep.subr.mxu0 0.0
    %3307 = vmatpush1.msra.mxu0 0.0
    %3308 = vmatprep.subr.mxu0 0.0
    %3309 = vmatpush1.msra.mxu0 0.0
    %3310 = vmatprep.subr.mxu0 0.0
    %3311 = vmatpush1.msra.mxu0 0.0
    %3312 = vmatprep.subr.mxu0 0.0
    %3313 = vmatpush1.msra.mxu0 0.0
    %3314 = vmatprep.subr.mxu0 0.0
    %3315 = vmatpush1.msra.mxu0 0.0
    %3316 = vmatprep.subr.mxu0 0.0
    %3317 = vmatpush1.msra.mxu0 0.0
    %3318 = vmatprep.subr.mxu0 0.0
    %3319 = vmatpush1.msra.mxu0 0.0
    %3320 = vmatprep.subr.mxu0 0.0
    %3321 = vmatpush1.msra.mxu0 0.0
    %3322 = vmatprep.subr.mxu0 0.0
    %3323 = vmatpush1.msra.mxu0 0.0
    %3324 = vmatprep.mubr.f32.mxu0 0.0
    %3325 = vmatmul.mubr.f32.gmra.mrb[0].mxu0 %v3258
    %v3326 = vpop.f32.mrb[0].mxu0
    %v3327 = vadd.f32 0.0, %v3326
    %v3328 = vpop.f32.mrb[0].mxu0
    %3329 = vdwg.mxu0
    %v3331 = vrot.slane %v3327, 6
    %v3333 = vadd.f32 %v2210, %v3331
    %v3335 = vrot.slane %v3254, 6
    %3336 = vrot.lane.b32.xlu0 %v3335, 64
    %v3337 = vpop.permute.xlu0 %3336
    %v3338 = vsel %vm324, %v3337, 0
    %3340 = vmatprep.subr.mxu0 0.0
    %3341 = vmatpush1.msra.mxu0 %v2114
    %3342 = vmatprep.subr.mxu0 0.0
    %3343 = vmatpush1.msra.mxu0 %v2115
    %3344 = vmatprep.subr.mxu0 0.0
    %3345 = vmatpush1.msra.mxu0 %v2116
    %3346 = vmatprep.subr.mxu0 0.0
    %3347 = vmatpush1.msra.mxu0 %v2117
    %3348 = vmatprep.subr.mxu0 0.0
    %3349 = vmatpush1.msra.mxu0 0.0
    %3350 = vmatprep.subr.mxu0 0.0
    %3351 = vmatpush1.msra.mxu0 0.0
    %3352 = vmatprep.subr.mxu0 0.0
    %3353 = vmatpush1.msra.mxu0 0.0
    %3354 = vmatprep.subr.mxu0 0.0
    %3355 = vmatpush1.msra.mxu0 0.0
    %3356 = vmatprep.subr.mxu0 0.0
    %3357 = vmatpush1.msra.mxu0 0.0
    %3358 = vmatprep.subr.mxu0 0.0
    %3359 = vmatpush1.msra.mxu0 0.0
    %3360 = vmatprep.subr.mxu0 0.0
    %3361 = vmatpush1.msra.mxu0 0.0
    %3362 = vmatprep.subr.mxu0 0.0
    %3363 = vmatpush1.msra.mxu0 0.0
    %3364 = vmatprep.subr.mxu0 0.0
    %3365 = vmatpush1.msra.mxu0 0.0
    %3366 = vmatprep.subr.mxu0 0.0
    %3367 = vmatpush1.msra.mxu0 0.0
    %3368 = vmatprep.subr.mxu0 0.0
    %3369 = vmatpush1.msra.mxu0 0.0
    %3370 = vmatprep.subr.mxu0 0.0
    %3371 = vmatpush1.msra.mxu0 0.0
    %3372 = vmatprep.subr.mxu0 0.0
    %3373 = vmatpush1.msra.mxu0 0.0
    %3374 = vmatprep.subr.mxu0 0.0
    %3375 = vmatpush1.msra.mxu0 0.0
    %3376 = vmatprep.subr.mxu0 0.0
    %3377 = vmatpush1.msra.mxu0 0.0
    %3378 = vmatprep.subr.mxu0 0.0
    %3379 = vmatpush1.msra.mxu0 0.0
    %3380 = vmatprep.subr.mxu0 0.0
    %3381 = vmatpush1.msra.mxu0 0.0
    %3382 = vmatprep.subr.mxu0 0.0
    %3383 = vmatpush1.msra.mxu0 0.0
    %3384 = vmatprep.subr.mxu0 0.0
    %3385 = vmatpush1.msra.mxu0 0.0
    %3386 = vmatprep.subr.mxu0 0.0
    %3387 = vmatpush1.msra.mxu0 0.0
    %3388 = vmatprep.subr.mxu0 0.0
    %3389 = vmatpush1.msra.mxu0 0.0
    %3390 = vmatprep.subr.mxu0 0.0
    %3391 = vmatpush1.msra.mxu0 0.0
    %3392 = vmatprep.subr.mxu0 0.0
    %3393 = vmatpush1.msra.mxu0 0.0
    %3394 = vmatprep.subr.mxu0 0.0
    %3395 = vmatpush1.msra.mxu0 0.0
    %3396 = vmatprep.subr.mxu0 0.0
    %3397 = vmatpush1.msra.mxu0 0.0
    %3398 = vmatprep.subr.mxu0 0.0
    %3399 = vmatpush1.msra.mxu0 0.0
    %3400 = vmatprep.subr.mxu0 0.0
    %3401 = vmatpush1.msra.mxu0 0.0
    %3402 = vmatprep.subr.mxu0 0.0
    %3403 = vmatpush1.msra.mxu0 0.0
    %3404 = vmatprep.mubr.f32.mxu0 0.0
    %3405 = vmatmul.mubr.f32.gmra.mrb[0].mxu0 %v3338
    %v3406 = vpop.f32.mrb[0].mxu0
    %v3407 = vadd.f32 0.0, %v3406
    %v3408 = vpop.f32.mrb[0].mxu0
    %3409 = vdwg.mxu0
    %v3411 = vrot.slane %v3407, 4
    %v3413 = vadd.f32 %v2206, %v3411
    %v3414 = vxor.u32 %v3333, 2147483648
    %v3415 = vmul.f32 %v3414, 1.442695
    %v3416 = vpow.pop %v3415
    %v3417 = vadd.f32 %v3416, 1.0
    %v3418 = vrcp.pop %v3417
    %v3419 = vmul.f32 1.0, %v3418
    %v3420 = vtanh.pop %v3333
    %v3422 = vrot.slane %v3221, 6
    %v3424 = vmul.f32 %v3419, %v3422
    %3426 = vrot.lane.b32.xlu0 %v3420, 32
    %v3427 = vpop.permute.xlu0 %3426
    %v3429 = vmul.f32 %v3419, %v3427
    %3431 = vrot.lane.b32.xlu0 %v3429, 32
    %v3432 = vpop.permute.xlu0 %3431
    %v3434 = vadd.f32 %v3424, %v3432
    %v3435 = vtanh.pop %v3434
    %3437 = vrot.lane.b32.xlu0 %v3435, 32
    %v3438 = vpop.permute.xlu0 %3437
    %v3440 = vmul.f32 %v3419, %v3438
    %v3441 = vxor.u32 %v3413, 2147483648
    %v3442 = vmul.f32 %v3441, 1.442695
    %v3443 = vpow.pop %v3442
    %v3444 = vadd.f32 %v3443, 1.0
    %v3445 = vrcp.pop %v3444
    %v3446 = vmul.f32 1.0, %v3445
    %v3447 = vtanh.pop %v3413
    %v3449 = vrot.slane %v3248, 2
    %v3451 = vmul.f32 %v3446, %v3449
    %3453 = vrot.lane.b32.xlu0 %v3447, 32
    %v3454 = vpop.permute.xlu0 %3453
    %v3456 = vmul.f32 %v3446, %v3454
    %3458 = vrot.lane.b32.xlu0 %v3456, 32
    %v3459 = vpop.permute.xlu0 %3458
    %v3461 = vadd.f32 %v3451, %v3459
    %v3462 = vtanh.pop %v3461
    %3464 = vrot.lane.b32.xlu0 %v3462, 32
    %v3465 = vpop.permute.xlu0 %3464
    %v3467 = vmul.f32 %v3446, %v3465
    %v3469 = vrot.slane %v3440, 2
    %3470 = vrot.lane.b32.xlu0 %v3469, 64
    %v3471 = vpop.permute.xlu0 %3470
    %v3472 = vsel %vm324, %v3471, 0
    %3474 = vmatprep.subr.mxu0 0.0
    %3475 = vmatpush1.msra.mxu0 %v2110
    %3476 = vmatprep.subr.mxu0 0.0
    %3477 = vmatpush1.msra.mxu0 %v2111
    %3478 = vmatprep.subr.mxu0 0.0
    %3479 = vmatpush1.msra.mxu0 %v2112
    %3480 = vmatprep.subr.mxu0 0.0
    %3481 = vmatpush1.msra.mxu0 %v2113
    %3482 = vmatprep.subr.mxu0 0.0
    %3483 = vmatpush1.msra.mxu0 0.0
    %3484 = vmatprep.subr.mxu0 0.0
    %3485 = vmatpush1.msra.mxu0 0.0
    %3486 = vmatprep.subr.mxu0 0.0
    %3487 = vmatpush1.msra.mxu0 0.0
    %3488 = vmatprep.subr.mxu0 0.0
    %3489 = vmatpush1.msra.mxu0 0.0
    %3490 = vmatprep.subr.mxu0 0.0
    %3491 = vmatpush1.msra.mxu0 0.0
    %3492 = vmatprep.subr.mxu0 0.0
    %3493 = vmatpush1.msra.mxu0 0.0
    %3494 = vmatprep.subr.mxu0 0.0
    %3495 = vmatpush1.msra.mxu0 0.0
    %3496 = vmatprep.subr.mxu0 0.0
    %3497 = vmatpush1.msra.mxu0 0.0
    %3498 = vmatprep.subr.mxu0 0.0
    %3499 = vmatpush1.msra.mxu0 0.0
    %3500 = vmatprep.subr.mxu0 0.0
    %3501 = vmatpush1.msra.mxu0 0.0
    %3502 = vmatprep.subr.mxu0 0.0
    %3503 = vmatpush1.msra.mxu0 0.0
    %3504 = vmatprep.subr.mxu0 0.0
    %3505 = vmatpush1.msra.mxu0 0.0
    %3506 = vmatprep.subr.mxu0 0.0
    %3507 = vmatpush1.msra.mxu0 0.0
    %3508 = vmatprep.subr.mxu0 0.0
    %3509 = vmatpush1.msra.mxu0 0.0
    %3510 = vmatprep.subr.mxu0 0.0
    %3511 = vmatpush1.msra.mxu0 0.0
    %3512 = vmatprep.subr.mxu0 0.0
    %3513 = vmatpush1.msra.mxu0 0.0
    %3514 = vmatprep.subr.mxu0 0.0
    %3515 = vmatpush1.msra.mxu0 0.0
    %3516 = vmatprep.subr.mxu0 0.0
    %3517 = vmatpush1.msra.mxu0 0.0
    %3518 = vmatprep.subr.mxu0 0.0
    %3519 = vmatpush1.msra.mxu0 0.0
    %3520 = vmatprep.subr.mxu0 0.0
    %3521 = vmatpush1.msra.mxu0 0.0
    %3522 = vmatprep.subr.mxu0 0.0
    %3523 = vmatpush1.msra.mxu0 0.0
    %3524 = vmatprep.subr.mxu0 0.0
    %3525 = vmatpush1.msra.mxu0 0.0
    %3526 = vmatprep.subr.mxu0 0.0
    %3527 = vmatpush1.msra.mxu0 0.0
    %3528 = vmatprep.subr.mxu0 0.0
    %3529 = vmatpush1.msra.mxu0 0.0
    %3530 = vmatprep.subr.mxu0 0.0
    %3531 = vmatpush1.msra.mxu0 0.0
    %3532 = vmatprep.subr.mxu0 0.0
    %3533 = vmatpush1.msra.mxu0 0.0
    %3534 = vmatprep.subr.mxu0 0.0
    %3535 = vmatpush1.msra.mxu0 0.0
    %3536 = vmatprep.subr.mxu0 0.0
    %3537 = vmatpush1.msra.mxu0 0.0
    %3538 = vmatprep.mubr.f32.mxu0 0.0
    %3539 = vmatmul.mubr.f32.gmra.mrb[0].mxu0 %v3472
    %v3540 = vpop.f32.mrb[0].mxu0
    %v3541 = vadd.f32 0.0, %v3540
    %v3542 = vpop.f32.mrb[0].mxu0
    %3543 = vdwg.mxu0
    %v3545 = vrot.slane %v3541, 4
    %v3547 = vadd.f32 %v2210, %v3545
    %v3549 = vrot.slane %v3467, 4
    %3550 = vrot.lane.b32.xlu0 %v3549, 64
    %v3551 = vpop.permute.xlu0 %3550
    %v3552 = vsel %vm324, %v3551, 0
    %3554 = vmatprep.subr.mxu0 0.0
    %3555 = vmatpush1.msra.mxu0 %v2114
    %3556 = vmatprep.subr.mxu0 0.0
    %3557 = vmatpush1.msra.mxu0 %v2115
    %3558 = vmatprep.subr.mxu0 0.0
    %3559 = vmatpush1.msra.mxu0 %v2116
    %3560 = vmatprep.subr.mxu0 0.0
    %3561 = vmatpush1.msra.mxu0 %v2117
    %3562 = vmatprep.subr.mxu0 0.0
    %3563 = vmatpush1.msra.mxu0 0.0
    %3564 = vmatprep.subr.mxu0 0.0
    %3565 = vmatpush1.msra.mxu0 0.0
    %3566 = vmatprep.subr.mxu0 0.0
    %3567 = vmatpush1.msra.mxu0 0.0
    %3568 = vmatprep.subr.mxu0 0.0
    %3569 = vmatpush1.msra.mxu0 0.0
    %3570 = vmatprep.subr.mxu0 0.0
    %3571 = vmatpush1.msra.mxu0 0.0
    %3572 = vmatprep.subr.mxu0 0.0
    %3573 = vmatpush1.msra.mxu0 0.0
    %3574 = vmatprep.subr.mxu0 0.0
    %3575 = vmatpush1.msra.mxu0 0.0
    %3576 = vmatprep.subr.mxu0 0.0
    %3577 = vmatpush1.msra.mxu0 0.0
    %3578 = vmatprep.subr.mxu0 0.0
    %3579 = vmatpush1.msra.mxu0 0.0
    %3580 = vmatprep.subr.mxu0 0.0
    %3581 = vmatpush1.msra.mxu0 0.0
    %3582 = vmatprep.subr.mxu0 0.0
    %3583 = vmatpush1.msra.mxu0 0.0
    %3584 = vmatprep.subr.mxu0 0.0
    %3585 = vmatpush1.msra.mxu0 0.0
    %3586 = vmatprep.subr.mxu0 0.0
    %3587 = vmatpush1.msra.mxu0 0.0
    %3588 = vmatprep.subr.mxu0 0.0
    %3589 = vmatpush1.msra.mxu0 0.0
    %3590 = vmatprep.subr.mxu0 0.0
    %3591 = vmatpush1.msra.mxu0 0.0
    %3592 = vmatprep.subr.mxu0 0.0
    %3593 = vmatpush1.msra.mxu0 0.0
    %3594 = vmatprep.subr.mxu0 0.0
    %3595 = vmatpush1.msra.mxu0 0.0
    %3596 = vmatprep.subr.mxu0 0.0
    %3597 = vmatpush1.msra.mxu0 0.0
    %3598 = vmatprep.subr.mxu0 0.0
    %3599 = vmatpush1.msra.mxu0 0.0
    %3600 = vmatprep.subr.mxu0 0.0
    %3601 = vmatpush1.msra.mxu0 0.0
    %3602 = vmatprep.subr.mxu0 0.0
    %3603 = vmatpush1.msra.mxu0 0.0
    %3604 = vmatprep.subr.mxu0 0.0
    %3605 = vmatpush1.msra.mxu0 0.0
    %3606 = vmatprep.subr.mxu0 0.0
    %3607 = vmatpush1.msra.mxu0 0.0
    %3608 = vmatprep.subr.mxu0 0.0
    %3609 = vmatpush1.msra.mxu0 0.0
    %3610 = vmatprep.subr.mxu0 0.0
    %3611 = vmatpush1.msra.mxu0 0.0
    %3612 = vmatprep.subr.mxu0 0.0
    %3613 = vmatpush1.msra.mxu0 0.0
    %3614 = vmatprep.subr.mxu0 0.0
    %3615 = vmatpush1.msra.mxu0 0.0
    %3616 = vmatprep.subr.mxu0 0.0
    %3617 = vmatpush1.msra.mxu0 0.0
    %3618 = vmatprep.mubr.f32.mxu0 0.0
    %3619 = vmatmul.mubr.f32.gmra.mrb[0].mxu0 %v3552
    %v3620 = vpop.f32.mrb[0].mxu0
    %v3621 = vadd.f32 0.0, %v3620
    %v3622 = vpop.f32.mrb[0].mxu0
    %3623 = vdwg.mxu0
    %v3625 = vrot.slane %v3621, 6
    %v3627 = vadd.f32 %v2206, %v3625
    %v3628 = vxor.u32 %v3547, 2147483648
    %v3629 = vmul.f32 %v3628, 1.442695
    %v3630 = vpow.pop %v3629
    %v3631 = vadd.f32 %v3630, 1.0
    %v3632 = vrcp.pop %v3631
    %v3633 = vmul.f32 1.0, %v3632
    %v3634 = vtanh.pop %v3547
    %v3636 = vrot.slane %v3434, 6
    %v3638 = vmul.f32 %v3633, %v3636
    %3640 = vrot.lane.b32.xlu0 %v3634, 32
    %v3641 = vpop.permute.xlu0 %3640
    %v3643 = vmul.f32 %v3633, %v3641
    %3645 = vrot.lane.b32.xlu0 %v3643, 32
    %v3646 = vpop.permute.xlu0 %3645
    %v3648 = vadd.f32 %v3638, %v3646
    %v3649 = vtanh.pop %v3648
    %3651 = vrot.lane.b32.xlu0 %v3649, 32
    %v3652 = vpop.permute.xlu0 %3651
    %v3654 = vmul.f32 %v3633, %v3652
    %v3655 = vxor.u32 %v3627, 2147483648
    %v3656 = vmul.f32 %v3655, 1.442695
    %v3657 = vpow.pop %v3656
    %v3658 = vadd.f32 %v3657, 1.0
    %v3659 = vrcp.pop %v3658
    %v3660 = vmul.f32 1.0, %v3659
    %v3661 = vtanh.pop %v3627
    %v3663 = vrot.slane %v3461, 2
    %v3665 = vmul.f32 %v3660, %v3663
    %3667 = vrot.lane.b32.xlu0 %v3661, 32
    %v3668 = vpop.permute.xlu0 %3667
    %v3670 = vmul.f32 %v3660, %v3668
    %3672 = vrot.lane.b32.xlu0 %v3670, 32
    %v3673 = vpop.permute.xlu0 %3672
    %v3675 = vadd.f32 %v3665, %v3673
    %v3676 = vtanh.pop %v3675
    %3678 = vrot.lane.b32.xlu0 %v3676, 32
    %v3679 = vpop.permute.xlu0 %3678
    %v3681 = vmul.f32 %v3660, %v3679
    %v3683 = vrot.slane %v3654, 4
    %3684 = vrot.lane.b32.xlu0 %v3683, 64
    %v3685 = vpop.permute.xlu0 %3684
    %v3686 = vsel %vm324, %v3685, 0
    %3688 = vmatprep.subr.mxu0 0.0
    %3689 = vmatpush1.msra.mxu0 %v2110
    %3690 = vmatprep.subr.mxu0 0.0
    %3691 = vmatpush1.msra.mxu0 %v2111
    %3692 = vmatprep.subr.mxu0 0.0
    %3693 = vmatpush1.msra.mxu0 %v2112
    %3694 = vmatprep.subr.mxu0 0.0
    %3695 = vmatpush1.msra.mxu0 %v2113
    %3696 = vmatprep.subr.mxu0 0.0
    %3697 = vmatpush1.msra.mxu0 0.0
    %3698 = vmatprep.subr.mxu0 0.0
    %3699 = vmatpush1.msra.mxu0 0.0
    %3700 = vmatprep.subr.mxu0 0.0
    %3701 = vmatpush1.msra.mxu0 0.0
    %3702 = vmatprep.subr.mxu0 0.0
    %3703 = vmatpush1.msra.mxu0 0.0
    %3704 = vmatprep.subr.mxu0 0.0
    %3705 = vmatpush1.msra.mxu0 0.0
    %3706 = vmatprep.subr.mxu0 0.0
    %3707 = vmatpush1.msra.mxu0 0.0
    %3708 = vmatprep.subr.mxu0 0.0
    %3709 = vmatpush1.msra.mxu0 0.0
    %3710 = vmatprep.subr.mxu0 0.0
    %3711 = vmatpush1.msra.mxu0 0.0
    %3712 = vmatprep.subr.mxu0 0.0
    %3713 = vmatpush1.msra.mxu0 0.0
    %3714 = vmatprep.subr.mxu0 0.0
    %3715 = vmatpush1.msra.mxu0 0.0
    %3716 = vmatprep.subr.mxu0 0.0
    %3717 = vmatpush1.msra.mxu0 0.0
    %3718 = vmatprep.subr.mxu0 0.0
    %3719 = vmatpush1.msra.mxu0 0.0
    %3720 = vmatprep.subr.mxu0 0.0
    %3721 = vmatpush1.msra.mxu0 0.0
    %3722 = vmatprep.subr.mxu0 0.0
    %3723 = vmatpush1.msra.mxu0 0.0
    %3724 = vmatprep.subr.mxu0 0.0
    %3725 = vmatpush1.msra.mxu0 0.0
    %3726 = vmatprep.subr.mxu0 0.0
    %3727 = vmatpush1.msra.mxu0 0.0
    %3728 = vmatprep.subr.mxu0 0.0
    %3729 = vmatpush1.msra.mxu0 0.0
    %3730 = vmatprep.subr.mxu0 0.0
    %3731 = vmatpush1.msra.mxu0 0.0
    %3732 = vmatprep.subr.mxu0 0.0
    %3733 = vmatpush1.msra.mxu0 0.0
    %3734 = vmatprep.subr.mxu0 0.0
    %3735 = vmatpush1.msra.mxu0 0.0
    %3736 = vmatprep.subr.mxu0 0.0
    %3737 = vmatpush1.msra.mxu0 0.0
    %3738 = vmatprep.subr.mxu0 0.0
    %3739 = vmatpush1.msra.mxu0 0.0
    %3740 = vmatprep.subr.mxu0 0.0
    %3741 = vmatpush1.msra.mxu0 0.0
    %3742 = vmatprep.subr.mxu0 0.0
    %3743 = vmatpush1.msra.mxu0 0.0
    %3744 = vmatprep.subr.mxu0 0.0
    %3745 = vmatpush1.msra.mxu0 0.0
    %3746 = vmatprep.subr.mxu0 0.0
    %3747 = vmatpush1.msra.mxu0 0.0
    %3748 = vmatprep.subr.mxu0 0.0
    %3749 = vmatpush1.msra.mxu0 0.0
    %3750 = vmatprep.subr.mxu0 0.0
    %3751 = vmatpush1.msra.mxu0 0.0
    %3752 = vmatprep.mubr.f32.mxu0 0.0
    %3753 = vmatmul.mubr.f32.gmra.mrb[0].mxu0 %v3686
    %v3754 = vpop.f32.mrb[0].mxu0
    %v3755 = vadd.f32 0.0, %v3754
    %v3756 = vpop.f32.mrb[0].mxu0
    %3757 = vdwg.mxu0
    %v3759 = vrot.slane %v3755, 2
    %v3761 = vadd.f32 %v2210, %v3759
    %v3763 = vrot.slane %v3681, 2
    %3764 = vrot.lane.b32.xlu0 %v3763, 64
    %v3765 = vpop.permute.xlu0 %3764
    %v3766 = vsel %vm324, %v3765, 0
    %3768 = vmatprep.subr.mxu0 0.0
    %3769 = vmatpush1.msra.mxu0 %v2114
    %3770 = vmatprep.subr.mxu0 0.0
    %3771 = vmatpush1.msra.mxu0 %v2115
    %3772 = vmatprep.subr.mxu0 0.0
    %3773 = vmatpush1.msra.mxu0 %v2116
    %3774 = vmatprep.subr.mxu0 0.0
    %3775 = vmatpush1.msra.mxu0 %v2117
    %3776 = vmatprep.subr.mxu0 0.0
    %3777 = vmatpush1.msra.mxu0 0.0
    %3778 = vmatprep.subr.mxu0 0.0
    %3779 = vmatpush1.msra.mxu0 0.0
    %3780 = vmatprep.subr.mxu0 0.0
    %3781 = vmatpush1.msra.mxu0 0.0
    %3782 = vmatprep.subr.mxu0 0.0
    %3783 = vmatpush1.msra.mxu0 0.0
    %3784 = vmatprep.subr.mxu0 0.0
    %3785 = vmatpush1.msra.mxu0 0.0
    %3786 = vmatprep.subr.mxu0 0.0
    %3787 = vmatpush1.msra.mxu0 0.0
    %3788 = vmatprep.subr.mxu0 0.0
    %3789 = vmatpush1.msra.mxu0 0.0
    %3790 = vmatprep.subr.mxu0 0.0
    %3791 = vmatpush1.msra.mxu0 0.0
    %3792 = vmatprep.subr.mxu0 0.0
    %3793 = vmatpush1.msra.mxu0 0.0
    %3794 = vmatprep.subr.mxu0 0.0
    %3795 = vmatpush1.msra.mxu0 0.0
    %3796 = vmatprep.subr.mxu0 0.0
    %3797 = vmatpush1.msra.mxu0 0.0
    %3798 = vmatprep.subr.mxu0 0.0
    %3799 = vmatpush1.msra.mxu0 0.0
    %3800 = vmatprep.subr.mxu0 0.0
    %3801 = vmatpush1.msra.mxu0 0.0
    %3802 = vmatprep.subr.mxu0 0.0
    %3803 = vmatpush1.msra.mxu0 0.0
    %3804 = vmatprep.subr.mxu0 0.0
    %3805 = vmatpush1.msra.mxu0 0.0
    %3806 = vmatprep.subr.mxu0 0.0
    %3807 = vmatpush1.msra.mxu0 0.0
    %3808 = vmatprep.subr.mxu0 0.0
    %3809 = vmatpush1.msra.mxu0 0.0
    %3810 = vmatprep.subr.mxu0 0.0
    %3811 = vmatpush1.msra.mxu0 0.0
    %3812 = vmatprep.subr.mxu0 0.0
    %3813 = vmatpush1.msra.mxu0 0.0
    %3814 = vmatprep.subr.mxu0 0.0
    %3815 = vmatpush1.msra.mxu0 0.0
    %3816 = vmatprep.subr.mxu0 0.0
    %3817 = vmatpush1.msra.mxu0 0.0
    %3818 = vmatprep.subr.mxu0 0.0
    %3819 = vmatpush1.msra.mxu0 0.0
    %3820 = vmatprep.subr.mxu0 0.0
    %3821 = vmatpush1.msra.mxu0 0.0
    %3822 = vmatprep.subr.mxu0 0.0
    %3823 = vmatpush1.msra.mxu0 0.0
    %3824 = vmatprep.subr.mxu0 0.0
    %3825 = vmatpush1.msra.mxu0 0.0
    %3826 = vmatprep.subr.mxu0 0.0
    %3827 = vmatpush1.msra.mxu0 0.0
    %3828 = vmatprep.subr.mxu0 0.0
    %3829 = vmatpush1.msra.mxu0 0.0
    %3830 = vmatprep.subr.mxu0 0.0
    %3831 = vmatpush1.msra.mxu0 0.0
    %3832 = vmatprep.mubr.f32.mxu0 0.0
    %3833 = vmatmul.mubr.f32.gmra.mrb[0].mxu0 %v3766
    %v3834 = vpop.f32.mrb[0].mxu0
    %v3835 = vadd.f32 0.0, %v3834
    %v3836 = vpop.f32.mrb[0].mxu0
    %3837 = vdwg.mxu0
    %v3838 = vadd.f32 %v2206, %v3835
    %v3839 = vxor.u32 %v3761, 2147483648
    %v3840 = vmul.f32 %v3839, 1.442695
    %v3841 = vpow.pop %v3840
    %v3842 = vadd.f32 %v3841, 1.0
    %v3843 = vrcp.pop %v3842
    %v3844 = vmul.f32 1.0, %v3843
    %v3845 = vtanh.pop %v3761
    %v3847 = vrot.slane %v3648, 6
    %v3849 = vmul.f32 %v3844, %v3847
    %3851 = vrot.lane.b32.xlu0 %v3845, 32
    %v3852 = vpop.permute.xlu0 %3851
    %v3854 = vmul.f32 %v3844, %v3852
    %3856 = vrot.lane.b32.xlu0 %v3854, 32
    %v3857 = vpop.permute.xlu0 %3856
    %v3859 = vadd.f32 %v3849, %v3857
    %v3860 = vtanh.pop %v3859
    %3862 = vrot.lane.b32.xlu0 %v3860, 32
    %v3863 = vpop.permute.xlu0 %3862
    %v3865 = vmul.f32 %v3844, %v3863
    %v3866 = vxor.u32 %v3838, 2147483648
    %v3867 = vmul.f32 %v3866, 1.442695
    %v3868 = vpow.pop %v3867
    %v3869 = vadd.f32 %v3868, 1.0
    %v3870 = vrcp.pop %v3869
    %v3871 = vmul.f32 1.0, %v3870
    %v3872 = vtanh.pop %v3838
    %v3874 = vrot.slane %v3675, 2
    %v3876 = vmul.f32 %v3871, %v3874
    %3878 = vrot.lane.b32.xlu0 %v3872, 32
    %v3879 = vpop.permute.xlu0 %3878
    %v3881 = vmul.f32 %v3871, %v3879
    %3883 = vrot.lane.b32.xlu0 %v3881, 32
    %v3884 = vpop.permute.xlu0 %3883
    %v3886 = vadd.f32 %v3876, %v3884
    %v3887 = vtanh.pop %v3886
    %3889 = vrot.lane.b32.xlu0 %v3887, 32
    %v3890 = vpop.permute.xlu0 %3889
    %v3892 = vmul.f32 %v3871, %v3890
    %3894 = vrot.lane.b32.xlu0 %v3865, 64
    %v3895 = vpop.permute.xlu0 %3894
    %3897 = vst.msk [vmem:[#allocation12 - $0x2] sm:$0xc0] %vm1191, %v3895
    %3899 = vrot.lane.b32.xlu0 %v3892, 64
    %v3900 = vpop.permute.xlu0 %3899
    %3902 = vst.msk [vmem:[#allocation12 + $0x6] sm:$0x3] %vm525, %v3900
    %3904 = vrot.lane.b32.xlu0 %v3859, 96
    %v3905 = vpop.permute.xlu0 %3904
    %3907 = vst.msk [vmem:[#allocation13 - $0x2] sm:$0xc0] %vm1191, %v3905
    %3909 = vrot.lane.b32.xlu0 %v3886, 96
    %v3910 = vpop.permute.xlu0 %3909
    %3912 = vst.msk [vmem:[#allocation13 + $0x6] sm:$0x3] %vm525, %v3910
    // Predicated region
    $region62: #{encoder_rnn_forward.1} parent=1 // pred_check
      _
    $region63: #{encoder_rnn_forward.1} parent=1 // pred_check_branch
      %3914 = sbr.rel (0) target = $region65
    $region64: #{encoder_rnn_forward.1} parent=1 // pred_region
      %s3916 = ssub.s32 128, 128
      %3917 = vsyncadd [#allocation5], %s3916
      %s3919 = sshll.u32 [#allocation12], 4
      %s3920 = int_to_ptr.vmem [resolvable:$true] %s3919
      %3922 = dma.vmem_to_hbm [thread:$0]  %s3920, 128, %s10, [#allocation5]
    $region65: #{encoder_rnn_forward.1} parent=1 // pred_fallthru
      _
    // Predicated region
    $region66: #{encoder_rnn_forward.1} parent=1 // pred_check
      _
    $region67: #{encoder_rnn_forward.1} parent=1 // pred_check_branch
      %3924 = sbr.rel (0) target = $region69
    $region68: #{encoder_rnn_forward.1} parent=1 // pred_region
      %s3926 = ssub.s32 128, 128
      %3927 = vsyncadd [#allocation14], %s3926
      %s3929 = sshll.u32 [#allocation13], 4
      %s3930 = int_to_ptr.vmem [resolvable:$true] %s3929
      %3932 = dma.vmem_to_hbm [thread:$0]  %s3930, 128, %s11, [#allocation14]
    $region69: #{encoder_rnn_forward.1} parent=1 // pred_fallthru
      _
    // Predicated region
    $region70: #{encoder_rnn_forward.1} parent=1 // pred_check
      _
    $region71: #{encoder_rnn_forward.1} parent=1 // pred_check_branch
      %3934 = sbr.rel (0) target = $region73
    $region72: #{encoder_rnn_forward.1} parent=1 // pred_region
      %3935 = dma.done [#allocation5], 128
    $region73: #{encoder_rnn_forward.1} parent=1 // pred_fallthru
      _
    // Predicated region
    $region74: #{encoder_rnn_forward.1} parent=1 // pred_check
      _
    $region75: #{encoder_rnn_forward.1} parent=1 // pred_check_branch
      %3937 = sbr.rel (0) target = $region77
    $region76: #{encoder_rnn_forward.1} parent=1 // pred_region
      %3938 = dma.done [#allocation14], 128
    $region77: #{encoder_rnn_forward.1} parent=1 // pred_fallthru
      _
    %3939 = vsyncpa [#allocation4], 1
    %3940 = vsyncpa [#allocation7], 1
    %3941 = vsyncpa [#allocation10], 1
    %3942 = vsyncpa [#allocation5], 1
    %3943 = vsyncpa [#allocation14], 1

</llo_original>
